<compile_context>
chip_gen: v6e
topology: v6e:2x2x1
jax: 0.10.0
libtpu: 0.0.40
codegen_flags: <defaults>
</compile_context>

<pallas_src>
import functools

import jax
import jax.numpy as jnp
import numpy as np
from jax.experimental import pallas as pl
from jax.experimental.pallas import tpu as pltpu


def _layer_norm(y, w, b, eps=1e-5):
    mu = jnp.mean(y, axis=-1, keepdims=True)
    var = jnp.mean(jnp.square(y - mu), axis=-1, keepdims=True)
    return (y - mu) * jax.lax.rsqrt(var + eps) * w + b


# ---------------------------------------------------------------------------
# Fused transformer-block stack: one pallas_call, in-kernel layer loop.
# ---------------------------------------------------------------------------
def _stack_kernel(num_layers, heads,
                  x_ref, mask_ref, w_attn_ref, w1t_ref, w2t_ref,
                  vece_ref, vecff_ref, o_ref):
    x0 = x_ref[...]                      # (M, e) f32 activation block
    mask = mask_ref[...]                 # (M, M) f32 block-diagonal mask (host precomputed)
    m, e = x0.shape

    def layer_body(l, x):
        base = l * (4 * heads)           # dynamic leading-axis offset into weight slab
        ve = vece_ref[l]                 # (6, e)  f32: [bu, ln1w, ln1b, b2, ln2w, ln2b]
        b1 = vecff_ref[l]                # (1, ff) f32
        w1t = w1t_ref[l]                 # (e, ff) bf16
        w2t = w2t_ref[l]                 # (ff, e) bf16
        xb = x.astype(jnp.bfloat16)

        # Self-attention: per-head matmuls with weights indexed on the leading axis
        # (no lane-axis slicing); unify projection accumulated per head (no concat).
        attended = jnp.zeros((m, e), jnp.float32)
        for h in range(heads):           # static unroll over heads
            q = jnp.dot(xb, w_attn_ref[base + 4 * h + 0],   # scale folded at pack time
                        preferred_element_type=jnp.float32)
            k = jnp.dot(xb, w_attn_ref[base + 4 * h + 1],
                        preferred_element_type=jnp.float32)
            v = jnp.dot(xb, w_attn_ref[base + 4 * h + 2],
                        preferred_element_type=jnp.float32)
            s = jax.lax.dot_general(q, k, (((1,), (1,)), ((), ())),
                                    preferred_element_type=jnp.float32)  # (M, M)
            s = s * mask                 # exact: no softmax in the reference
            av = jnp.dot(s, v, preferred_element_type=jnp.float32)       # (M, e)
            attended = attended + jnp.dot(
                av.astype(jnp.bfloat16), w_attn_ref[base + 4 * h + 3],
                preferred_element_type=jnp.float32)

        attended = attended + ve[0:1]                       # unify-heads bias
        x1 = _layer_norm(attended + x, ve[1:2], ve[2:3])

        # Feed-forward over the whole batch block.
        hid = jnp.maximum(
            jnp.dot(x1.astype(jnp.bfloat16), w1t,
                    preferred_element_type=jnp.float32) + b1, 0.0)
        ffo = jnp.dot(hid.astype(jnp.bfloat16), w2t,
                      preferred_element_type=jnp.float32) + ve[3:4]
        return _layer_norm(ffo + x1, ve[4:5], ve[5:6])

    o_ref[...] = jax.lax.fori_loop(0, num_layers, layer_body, x0, unroll=True)


def pack_block_params(blocks, heads, matmul_dtype=jnp.bfloat16):
    """Pack per-layer params into a few slabs; bf16 matmul weights, scale folded."""
    e = blocks[0]["bu"].shape[0]
    ff = blocks[0]["b1"].shape[0]
    scale = float(e) ** -0.25

    w_attn, w1t, w2t, vec_e, vec_ff = [], [], [], [], []
    for blk in blocks:
        for h in range(heads):
            sl = slice(h * e, (h + 1) * e)
            w_attn.append(blk["wq"][sl].T * scale)   # right-multiply Q weight (scaled)
            w_attn.append(blk["wk"][sl].T * scale)   # right-multiply K weight (scaled)
            w_attn.append(blk["wv"][sl].T)           # right-multiply V weight
            w_attn.append(blk["wu"][:, sl].T)        # per-head unify weight (accumulated)
        w1t.append(blk["w1"].T)                      # (e, ff)
        w2t.append(blk["w2"].T)                      # (ff, e)
        vec_e.append(jnp.stack([blk["bu"], blk["ln1w"], blk["ln1b"],
                                blk["b2"], blk["ln2w"], blk["ln2b"]]))
        vec_ff.append(blk["b1"].reshape(1, ff))

    return dict(
        w_attn=jnp.stack(w_attn).astype(matmul_dtype),   # (L*heads*4, e, e)
        w1t=jnp.stack(w1t).astype(matmul_dtype),          # (L, e, ff)
        w2t=jnp.stack(w2t).astype(matmul_dtype),          # (L, ff, e)
        vec_e=jnp.stack(vec_e).astype(jnp.float32),       # (L, 6, e)
        vec_ff=jnp.stack(vec_ff).astype(jnp.float32),     # (L, 1, ff)
    )


def transformer_stack(h0, packed, *, heads, seq_len, num_batch_blocks=1):
    m_total, e = h0.shape
    num_layers = packed["w1t"].shape[0]
    assert m_total % num_batch_blocks == 0
    mblk = m_total // num_batch_blocks
    assert mblk % seq_len == 0
    if num_batch_blocks > 1:
        # (8,128) BlockSpec rule: a partial activation block needs 8-row alignment.
        # With seq_len = t+1 this generally requires sequence padding; keep 1 block
        # unless the caller has padded (v7x megacore sharding then applies).
        assert mblk % 8 == 0, "multi-block tiling needs mblk % 8 == 0 (pad sequences)"

    # Block-diagonal mask (same for every batch block), precomputed on the host.
    row = jnp.arange(mblk) // seq_len
    mask = (row[:, None] == row[None, :]).astype(jnp.float32)

    def const_spec(shape):
        nd = len(shape)
        return pl.BlockSpec(shape, lambda bb, nd=nd: (0,) * nd)

    act_spec = pl.BlockSpec((mblk, e), lambda bb: (bb, 0))
    kernel = functools.partial(_stack_kernel, num_layers, heads)

    return pl.pallas_call(
        kernel,
        grid=(num_batch_blocks,),
        in_specs=[
            act_spec,
            const_spec((mblk, mblk)),
            const_spec(packed["w_attn"].shape),
            const_spec(packed["w1t"].shape),
            const_spec(packed["w2t"].shape),
            const_spec(packed["vec_e"].shape),
            const_spec(packed["vec_ff"].shape),
        ],
        out_specs=act_spec,
        out_shape=jax.ShapeDtypeStruct((m_total, e), jnp.float32),
        compiler_params=pltpu.CompilerParams(
            dimension_semantics=("parallel",),
            vmem_limit_bytes=32 * 1024 * 1024,   # safe on v5e/v6e/v7x at this size
        ),
    )(h0.astype(jnp.float32), mask,
      packed["w_attn"], packed["w1t"], packed["w2t"],
      packed["vec_e"], packed["vec_ff"])


# ---------------------------------------------------------------------------
# Full forward (tiny glue in XLA, hot path in Pallas)
# ---------------------------------------------------------------------------
def transformer_encoder_forward(x, params, heads, packed=None,
                                num_batch_blocks=1):
    b, t, in_dim = x.shape
    e = params["cls"].shape[0]
    if packed is None:
        packed = pack_block_params(params["blocks"], heads)
    # Token embedding and output head are tiny -> plain XLA (per perf review).
    tok = x.reshape(b * t, in_dim) @ params["tok_w"].T + params["tok_b"]
    tok = tok.reshape(b, t, e)
    cls = jnp.broadcast_to(params["cls"][None, None, :], (b, 1, e))
    h0 = jnp.concatenate([cls, tok], axis=1).reshape(b * (t + 1), e)
    h = transformer_stack(h0, packed, heads=heads, seq_len=t + 1,
                          num_batch_blocks=num_batch_blocks)
    cls_out = h.reshape(b, t + 1, e)[:, 0]             # CLS token
    return cls_out @ params["out_w"].T + params["out_b"]


# ---------------------------------------------------------------------------
# Deterministic parameter init (synthetic; no checkpoint)
# ---------------------------------------------------------------------------
def init_params(key, input_dim, output_dim, embed_dim, num_layers, num_heads):
    def nxt():
        nonlocal key
        key, sub = jax.random.split(key)
        return sub

    def rand(shape, scale=0.1):
        return (scale * jax.random.normal(nxt(), shape)).astype(jnp.float32)

    e, h = embed_dim, num_heads
    params = dict(
        tok_w=rand((e, input_dim)),
        tok_b=rand((e,)),
        cls=rand((e,), scale=1.0),
        out_w=rand((output_dim, e)),
        out_b=rand((output_dim,)),
        blocks=[],
    )
    for _ in range(num_layers):
        params["blocks"].append(dict(
            wq=rand((h * e, e)), wk=rand((h * e, e)), wv=rand((h * e, e)),
            wu=rand((e, h * e)), bu=rand((e,)),
            ln1w=jnp.ones((e,), jnp.float32), ln1b=jnp.zeros((e,), jnp.float32),
            w1=rand((4 * e, e)), b1=rand((4 * e,)),
            w2=rand((e, 4 * e)), b2=rand((e,)),
            ln2w=jnp.ones((e,), jnp.float32), ln2b=jnp.zeros((e,), jnp.float32),
        ))
    return params


# ---------------------------------------------------------------------------
# Pure-JAX f32 reference mirroring the torch math (for correctness check)
# ---------------------------------------------------------------------------
def ref_forward(x, params, heads):
    def ln(y, w, b):
        mu = y.mean(-1, keepdims=True)
        var = ((y - mu) ** 2).mean(-1, keepdims=True)
        return (y - mu) / jnp.sqrt(var + 1e-5) * w + b

    b, _, _ = x.shape
    e = params["cls"].shape[0]
    tok = x @ params["tok_w"].T + params["tok_b"]
    h_ = jnp.concatenate(
        [jnp.broadcast_to(params["cls"][None, None], (b, 1, e)), tok], axis=1)
    bb, tt, _ = h_.shape
    for p in params["blocks"]:
        keys = (h_ @ p["wk"].T).reshape(bb, tt, heads, e)
        queries = (h_ @ p["wq"].T).reshape(bb, tt, heads, e)
        values = (h_ @ p["wv"].T).reshape(bb, tt, heads, e)
        keys = jnp.transpose(keys, (0, 2, 1, 3)).reshape(bb * heads, tt, e)
        queries = jnp.transpose(queries, (0, 2, 1, 3)).reshape(bb * heads, tt, e)
        values = jnp.transpose(values, (0, 2, 1, 3)).reshape(bb * heads, tt, e)
        queries = queries / e ** 0.25
        keys = keys / e ** 0.25
        dot = jnp.einsum("bqe,bke->bqk", queries, keys)
        dot = jnp.einsum("bqk,bke->bqe", dot, values).reshape(bb, heads, tt, e)
        dot = jnp.transpose(dot, (0, 2, 1, 3)).reshape(bb, tt, heads * e)
        attended = dot @ p["wu"].T + p["bu"]
        x1 = ln(attended + h_, p["ln1w"], p["ln1b"])
        hid = jax.nn.relu(x1 @ p["w1"].T + p["b1"])
        ffo = hid @ p["w2"].T + p["b2"]
        h_ = ln(ffo + x1, p["ln2w"], p["ln2b"])
    cls_out = h_[:, 0]
    return cls_out @ params["out_w"].T + params["out_b"]


if __name__ == "__main__":
    key = jax.random.PRNGKey(0)
    batch, seq, input_dim = 2, 8, 16
    embed_dim, num_layers, num_heads, output_dim = 32, 2, 4, 8

    key, pkey, xkey = jax.random.split(key, 3)
    params = init_params(pkey, input_dim, output_dim, embed_dim,
                         num_layers, num_heads)
    x = jax.random.normal(xkey, (batch, seq, input_dim), jnp.float32)

    packed = pack_block_params(params["blocks"], num_heads)   # pack/cast once
    out = jax.block_until_ready(
        transformer_encoder_forward(x, params, num_heads, packed=packed))
    ref = jax.block_until_ready(ref_forward(x, params, num_heads))

    assert out.shape == (batch, output_dim)
    # bf16 weight matmuls (f32 accumulation, f32 attention scores) vs f32 reference.
    np.testing.assert_allclose(np.asarray(out), np.asarray(ref),
                               rtol=5e-2, atol=5e-2)
    print("KERNEL_OK")
</pallas_src>

<mosaic_0001>
module attributes {stable_mosaic.version = 11 : i64} {
  func.func @_stack_kernel(%arg0: i32, %arg1: memref<18x32xf32, #tpu.memory_space<vmem>>, %arg2: memref<18x18xf32, #tpu.memory_space<vmem>>, %arg3: memref<32x32x32xbf16, #tpu.memory_space<vmem>>, %arg4: memref<2x32x128xbf16, #tpu.memory_space<vmem>>, %arg5: memref<2x128x32xbf16, #tpu.memory_space<vmem>>, %arg6: memref<2x6x32xf32, #tpu.memory_space<vmem>>, %arg7: memref<2x1x128xf32, #tpu.memory_space<vmem>>, %arg8: memref<18x32xf32, #tpu.memory_space<vmem>>) attributes {dimension_semantics = [#tpu.dimension_semantics<parallel>], iteration_bounds = array<i64: 1>, scalar_prefetch = 0 : i64, scratch_operands = 0 : i64, tpu.core_type = #tpu.core_type<tc>, window_params = [{transform_indices = @transform_0, window_bounds = array<i64: 18, 32>}, {pipeline_mode = #tpu.pipeline_mode<synchronous>, transform_indices = @transform_1, window_bounds = array<i64: 18, 18>}, {pipeline_mode = #tpu.pipeline_mode<synchronous>, transform_indices = @transform_2, window_bounds = array<i64: 32, 32, 32>}, {pipeline_mode = #tpu.pipeline_mode<synchronous>, transform_indices = @transform_3, window_bounds = array<i64: 2, 32, 128>}, {pipeline_mode = #tpu.pipeline_mode<synchronous>, transform_indices = @transform_4, window_bounds = array<i64: 2, 128, 32>}, {pipeline_mode = #tpu.pipeline_mode<synchronous>, transform_indices = @transform_5, window_bounds = array<i64: 2, 6, 32>}, {pipeline_mode = #tpu.pipeline_mode<synchronous>, transform_indices = @transform_6, window_bounds = array<i64: 2, 1, 128>}, {transform_indices = @transform_7, window_bounds = array<i64: 18, 32>}]} {
    %c0 = arith.constant 0 : index
    %c0_0 = arith.constant 0 : index
    %0 = vector.load %arg1[%c0, %c0_0] : memref<18x32xf32, #tpu.memory_space<vmem>>, vector<18x32xf32>
    %c0_1 = arith.constant 0 : index
    %c0_2 = arith.constant 0 : index
    %1 = vector.load %arg2[%c0_1, %c0_2] : memref<18x18xf32, #tpu.memory_space<vmem>>, vector<18x18xf32>
    %c0_i32 = arith.constant 0 : i32
    %c16_i32 = arith.constant 16 : i32
    %2 = arith.muli %c0_i32, %c16_i32 : i32
    %3 = arith.index_cast %c0_i32 : i32 to index
    %c0_3 = arith.constant 0 : index
    %c0_4 = arith.constant 0 : index
    %4 = vector.load %arg6[%3, %c0_3, %c0_4] : memref<2x6x32xf32, #tpu.memory_space<vmem>>, vector<1x6x32xf32>
    %5 = vector.shape_cast %4 : vector<1x6x32xf32> to vector<6x32xf32>
    %6 = arith.index_cast %c0_i32 : i32 to index
    %c0_5 = arith.constant 0 : index
    %c0_6 = arith.constant 0 : index
    %7 = vector.load %arg7[%6, %c0_5, %c0_6] : memref<2x1x128xf32, #tpu.memory_space<vmem>>, vector<1x1x128xf32>
    %8 = vector.shape_cast %7 : vector<1x1x128xf32> to vector<1x128xf32>
    %9 = arith.index_cast %c0_i32 : i32 to index
    %c0_7 = arith.constant 0 : index
    %c0_8 = arith.constant 0 : index
    %10 = vector.load %arg4[%9, %c0_7, %c0_8] : memref<2x32x128xbf16, #tpu.memory_space<vmem>>, vector<1x32x128xbf16>
    %11 = vector.shape_cast %10 : vector<1x32x128xbf16> to vector<32x128xbf16>
    %12 = arith.index_cast %c0_i32 : i32 to index
    %c0_9 = arith.constant 0 : index
    %c0_10 = arith.constant 0 : index
    %13 = vector.load %arg5[%12, %c0_9, %c0_10] : memref<2x128x32xbf16, #tpu.memory_space<vmem>>, vector<1x128x32xbf16>
    %14 = vector.shape_cast %13 : vector<1x128x32xbf16> to vector<128x32xbf16>
    %15 = arith.truncf %0 : vector<18x32xf32> to vector<18x32xbf16>
    %cst = arith.constant 0.000000e+00 : f32
    %16 = vector.broadcast %cst : f32 to vector<18x32xf32>
    %c0_i32_11 = arith.constant 0 : i32
    %17 = arith.addi %2, %c0_i32_11 : i32
    %c0_i32_12 = arith.constant 0 : i32
    %18 = arith.addi %17, %c0_i32_12 : i32
    %19 = arith.index_cast %18 : i32 to index
    %c0_13 = arith.constant 0 : index
    %c0_14 = arith.constant 0 : index
    %20 = vector.load %arg3[%19, %c0_13, %c0_14] : memref<32x32x32xbf16, #tpu.memory_space<vmem>>, vector<1x32x32xbf16>
    %21 = vector.shape_cast %20 : vector<1x32x32xbf16> to vector<32x32xbf16>
    %cst_15 = arith.constant dense<0.000000e+00> : vector<18x32xf32>
    %22 = tpu.matmul %15, %21, %cst_15 {dimension_numbers = #tpu.dot_dimension_numbers<[1], [0], [0], [1], [0, 0, 1, 1], [], []>} : vector<18x32xbf16>, vector<32x32xbf16>, vector<18x32xf32> -> vector<18x32xf32>
    %c0_i32_16 = arith.constant 0 : i32
    %23 = arith.addi %2, %c0_i32_16 : i32
    %c1_i32 = arith.constant 1 : i32
    %24 = arith.addi %23, %c1_i32 : i32
    %25 = arith.index_cast %24 : i32 to index
    %c0_17 = arith.constant 0 : index
    %c0_18 = arith.constant 0 : index
    %26 = vector.load %arg3[%25, %c0_17, %c0_18] : memref<32x32x32xbf16, #tpu.memory_space<vmem>>, vector<1x32x32xbf16>
    %27 = vector.shape_cast %26 : vector<1x32x32xbf16> to vector<32x32xbf16>
    %cst_19 = arith.constant dense<0.000000e+00> : vector<18x32xf32>
    %28 = tpu.matmul %15, %27, %cst_19 {dimension_numbers = #tpu.dot_dimension_numbers<[1], [0], [0], [1], [0, 0, 1, 1], [], []>} : vector<18x32xbf16>, vector<32x32xbf16>, vector<18x32xf32> -> vector<18x32xf32>
    %c0_i32_20 = arith.constant 0 : i32
    %29 = arith.addi %2, %c0_i32_20 : i32
    %c2_i32 = arith.constant 2 : i32
    %30 = arith.addi %29, %c2_i32 : i32
    %31 = arith.index_cast %30 : i32 to index
    %c0_21 = arith.constant 0 : index
    %c0_22 = arith.constant 0 : index
    %32 = vector.load %arg3[%31, %c0_21, %c0_22] : memref<32x32x32xbf16, #tpu.memory_space<vmem>>, vector<1x32x32xbf16>
    %33 = vector.shape_cast %32 : vector<1x32x32xbf16> to vector<32x32xbf16>
    %cst_23 = arith.constant dense<0.000000e+00> : vector<18x32xf32>
    %34 = tpu.matmul %15, %33, %cst_23 {dimension_numbers = #tpu.dot_dimension_numbers<[1], [0], [0], [1], [0, 0, 1, 1], [], []>} : vector<18x32xbf16>, vector<32x32xbf16>, vector<18x32xf32> -> vector<18x32xf32>
    %cst_24 = arith.constant dense<0.000000e+00> : vector<18x18xf32>
    %35 = tpu.matmul %22, %28, %cst_24 {dimension_numbers = #tpu.dot_dimension_numbers<[1], [1], [0], [0], [0, 0, 1, 0], [], []>} : vector<18x32xf32>, vector<18x32xf32>, vector<18x18xf32> -> vector<18x18xf32>
    %36 = arith.mulf %35, %1 : vector<18x18xf32>
    %cst_25 = arith.constant dense<0.000000e+00> : vector<18x32xf32>
    %37 = tpu.matmul %36, %34, %cst_25 {dimension_numbers = #tpu.dot_dimension_numbers<[1], [0], [0], [1], [0, 0, 1, 1], [], []>} : vector<18x18xf32>, vector<18x32xf32>, vector<18x32xf32> -> vector<18x32xf32>
    %38 = arith.truncf %37 : vector<18x32xf32> to vector<18x32xbf16>
    %c0_i32_26 = arith.constant 0 : i32
    %39 = arith.addi %2, %c0_i32_26 : i32
    %c3_i32 = arith.constant 3 : i32
    %40 = arith.addi %39, %c3_i32 : i32
    %41 = arith.index_cast %40 : i32 to index
    %c0_27 = arith.constant 0 : index
    %c0_28 = arith.constant 0 : index
    %42 = vector.load %arg3[%41, %c0_27, %c0_28] : memref<32x32x32xbf16, #tpu.memory_space<vmem>>, vector<1x32x32xbf16>
    %43 = vector.shape_cast %42 : vector<1x32x32xbf16> to vector<32x32xbf16>
    %cst_29 = arith.constant dense<0.000000e+00> : vector<18x32xf32>
    %44 = tpu.matmul %38, %43, %cst_29 {dimension_numbers = #tpu.dot_dimension_numbers<[1], [0], [0], [1], [0, 0, 1, 1], [], []>} : vector<18x32xbf16>, vector<32x32xbf16>, vector<18x32xf32> -> vector<18x32xf32>
    %45 = arith.addf %16, %44 : vector<18x32xf32>
    %c4_i32 = arith.constant 4 : i32
    %46 = arith.addi %2, %c4_i32 : i32
    %c0_i32_30 = arith.constant 0 : i32
    %47 = arith.addi %46, %c0_i32_30 : i32
    %48 = arith.index_cast %47 : i32 to index
    %c0_31 = arith.constant 0 : index
    %c0_32 = arith.constant 0 : index
    %49 = vector.load %arg3[%48, %c0_31, %c0_32] : memref<32x32x32xbf16, #tpu.memory_space<vmem>>, vector<1x32x32xbf16>
    %50 = vector.shape_cast %49 : vector<1x32x32xbf16> to vector<32x32xbf16>
    %cst_33 = arith.constant dense<0.000000e+00> : vector<18x32xf32>
    %51 = tpu.matmul %15, %50, %cst_33 {dimension_numbers = #tpu.dot_dimension_numbers<[1], [0], [0], [1], [0, 0, 1, 1], [], []>} : vector<18x32xbf16>, vector<32x32xbf16>, vector<18x32xf32> -> vector<18x32xf32>
    %c4_i32_34 = arith.constant 4 : i32
    %52 = arith.addi %2, %c4_i32_34 : i32
    %c1_i32_35 = arith.constant 1 : i32
    %53 = arith.addi %52, %c1_i32_35 : i32
    %54 = arith.index_cast %53 : i32 to index
    %c0_36 = arith.constant 0 : index
    %c0_37 = arith.constant 0 : index
    %55 = vector.load %arg3[%54, %c0_36, %c0_37] : memref<32x32x32xbf16, #tpu.memory_space<vmem>>, vector<1x32x32xbf16>
    %56 = vector.shape_cast %55 : vector<1x32x32xbf16> to vector<32x32xbf16>
    %cst_38 = arith.constant dense<0.000000e+00> : vector<18x32xf32>
    %57 = tpu.matmul %15, %56, %cst_38 {dimension_numbers = #tpu.dot_dimension_numbers<[1], [0], [0], [1], [0, 0, 1, 1], [], []>} : vector<18x32xbf16>, vector<32x32xbf16>, vector<18x32xf32> -> vector<18x32xf32>
    %c4_i32_39 = arith.constant 4 : i32
    %58 = arith.addi %2, %c4_i32_39 : i32
    %c2_i32_40 = arith.constant 2 : i32
    %59 = arith.addi %58, %c2_i32_40 : i32
    %60 = arith.index_cast %59 : i32 to index
    %c0_41 = arith.constant 0 : index
    %c0_42 = arith.constant 0 : index
    %61 = vector.load %arg3[%60, %c0_41, %c0_42] : memref<32x32x32xbf16, #tpu.memory_space<vmem>>, vector<1x32x32xbf16>
    %62 = vector.shape_cast %61 : vector<1x32x32xbf16> to vector<32x32xbf16>
    %cst_43 = arith.constant dense<0.000000e+00> : vector<18x32xf32>
    %63 = tpu.matmul %15, %62, %cst_43 {dimension_numbers = #tpu.dot_dimension_numbers<[1], [0], [0], [1], [0, 0, 1, 1], [], []>} : vector<18x32xbf16>, vector<32x32xbf16>, vector<18x32xf32> -> vector<18x32xf32>
    %cst_44 = arith.constant dense<0.000000e+00> : vector<18x18xf32>
    %64 = tpu.matmul %51, %57, %cst_44 {dimension_numbers = #tpu.dot_dimension_numbers<[1], [1], [0], [0], [0, 0, 1, 0], [], []>} : vector<18x32xf32>, vector<18x32xf32>, vector<18x18xf32> -> vector<18x18xf32>
    %65 = arith.mulf %64, %1 : vector<18x18xf32>
    %cst_45 = arith.constant dense<0.000000e+00> : vector<18x32xf32>
    %66 = tpu.matmul %65, %63, %cst_45 {dimension_numbers = #tpu.dot_dimension_numbers<[1], [0], [0], [1], [0, 0, 1, 1], [], []>} : vector<18x18xf32>, vector<18x32xf32>, vector<18x32xf32> -> vector<18x32xf32>
    %67 = arith.truncf %66 : vector<18x32xf32> to vector<18x32xbf16>
    %c4_i32_46 = arith.constant 4 : i32
    %68 = arith.addi %2, %c4_i32_46 : i32
    %c3_i32_47 = arith.constant 3 : i32
    %69 = arith.addi %68, %c3_i32_47 : i32
    %70 = arith.index_cast %69 : i32 to index
    %c0_48 = arith.constant 0 : index
    %c0_49 = arith.constant 0 : index
    %71 = vector.load %arg3[%70, %c0_48, %c0_49] : memref<32x32x32xbf16, #tpu.memory_space<vmem>>, vector<1x32x32xbf16>
    %72 = vector.shape_cast %71 : vector<1x32x32xbf16> to vector<32x32xbf16>
    %cst_50 = arith.constant dense<0.000000e+00> : vector<18x32xf32>
    %73 = tpu.matmul %67, %72, %cst_50 {dimension_numbers = #tpu.dot_dimension_numbers<[1], [0], [0], [1], [0, 0, 1, 1], [], []>} : vector<18x32xbf16>, vector<32x32xbf16>, vector<18x32xf32> -> vector<18x32xf32>
    %74 = arith.addf %45, %73 : vector<18x32xf32>
    %c8_i32 = arith.constant 8 : i32
    %75 = arith.addi %2, %c8_i32 : i32
    %c0_i32_51 = arith.constant 0 : i32
    %76 = arith.addi %75, %c0_i32_51 : i32
    %77 = arith.index_cast %76 : i32 to index
    %c0_52 = arith.constant 0 : index
    %c0_53 = arith.constant 0 : index
    %78 = vector.load %arg3[%77, %c0_52, %c0_53] : memref<32x32x32xbf16, #tpu.memory_space<vmem>>, vector<1x32x32xbf16>
    %79 = vector.shape_cast %78 : vector<1x32x32xbf16> to vector<32x32xbf16>
    %cst_54 = arith.constant dense<0.000000e+00> : vector<18x32xf32>
    %80 = tpu.matmul %15, %79, %cst_54 {dimension_numbers = #tpu.dot_dimension_numbers<[1], [0], [0], [1], [0, 0, 1, 1], [], []>} : vector<18x32xbf16>, vector<32x32xbf16>, vector<18x32xf32> -> vector<18x32xf32>
    %c8_i32_55 = arith.constant 8 : i32
    %81 = arith.addi %2, %c8_i32_55 : i32
    %c1_i32_56 = arith.constant 1 : i32
    %82 = arith.addi %81, %c1_i32_56 : i32
    %83 = arith.index_cast %82 : i32 to index
    %c0_57 = arith.constant 0 : index
    %c0_58 = arith.constant 0 : index
    %84 = vector.load %arg3[%83, %c0_57, %c0_58] : memref<32x32x32xbf16, #tpu.memory_space<vmem>>, vector<1x32x32xbf16>
    %85 = vector.shape_cast %84 : vector<1x32x32xbf16> to vector<32x32xbf16>
    %cst_59 = arith.constant dense<0.000000e+00> : vector<18x32xf32>
    %86 = tpu.matmul %15, %85, %cst_59 {dimension_numbers = #tpu.dot_dimension_numbers<[1], [0], [0], [1], [0, 0, 1, 1], [], []>} : vector<18x32xbf16>, vector<32x32xbf16>, vector<18x32xf32> -> vector<18x32xf32>
    %c8_i32_60 = arith.constant 8 : i32
    %87 = arith.addi %2, %c8_i32_60 : i32
    %c2_i32_61 = arith.constant 2 : i32
    %88 = arith.addi %87, %c2_i32_61 : i32
    %89 = arith.index_cast %88 : i32 to index
    %c0_62 = arith.constant 0 : index
    %c0_63 = arith.constant 0 : index
    %90 = vector.load %arg3[%89, %c0_62, %c0_63] : memref<32x32x32xbf16, #tpu.memory_space<vmem>>, vector<1x32x32xbf16>
    %91 = vector.shape_cast %90 : vector<1x32x32xbf16> to vector<32x32xbf16>
    %cst_64 = arith.constant dense<0.000000e+00> : vector<18x32xf32>
    %92 = tpu.matmul %15, %91, %cst_64 {dimension_numbers = #tpu.dot_dimension_numbers<[1], [0], [0], [1], [0, 0, 1, 1], [], []>} : vector<18x32xbf16>, vector<32x32xbf16>, vector<18x32xf32> -> vector<18x32xf32>
    %cst_65 = arith.constant dense<0.000000e+00> : vector<18x18xf32>
    %93 = tpu.matmul %80, %86, %cst_65 {dimension_numbers = #tpu.dot_dimension_numbers<[1], [1], [0], [0], [0, 0, 1, 0], [], []>} : vector<18x32xf32>, vector<18x32xf32>, vector<18x18xf32> -> vector<18x18xf32>
    %94 = arith.mulf %93, %1 : vector<18x18xf32>
    %cst_66 = arith.constant dense<0.000000e+00> : vector<18x32xf32>
    %95 = tpu.matmul %94, %92, %cst_66 {dimension_numbers = #tpu.dot_dimension_numbers<[1], [0], [0], [1], [0, 0, 1, 1], [], []>} : vector<18x18xf32>, vector<18x32xf32>, vector<18x32xf32> -> vector<18x32xf32>
    %96 = arith.truncf %95 : vector<18x32xf32> to vector<18x32xbf16>
    %c8_i32_67 = arith.constant 8 : i32
    %97 = arith.addi %2, %c8_i32_67 : i32
    %c3_i32_68 = arith.constant 3 : i32
    %98 = arith.addi %97, %c3_i32_68 : i32
    %99 = arith.index_cast %98 : i32 to index
    %c0_69 = arith.constant 0 : index
    %c0_70 = arith.constant 0 : index
    %100 = vector.load %arg3[%99, %c0_69, %c0_70] : memref<32x32x32xbf16, #tpu.memory_space<vmem>>, vector<1x32x32xbf16>
    %101 = vector.shape_cast %100 : vector<1x32x32xbf16> to vector<32x32xbf16>
    %cst_71 = arith.constant dense<0.000000e+00> : vector<18x32xf32>
    %102 = tpu.matmul %96, %101, %cst_71 {dimension_numbers = #tpu.dot_dimension_numbers<[1], [0], [0], [1], [0, 0, 1, 1], [], []>} : vector<18x32xbf16>, vector<32x32xbf16>, vector<18x32xf32> -> vector<18x32xf32>
    %103 = arith.addf %74, %102 : vector<18x32xf32>
    %c12_i32 = arith.constant 12 : i32
    %104 = arith.addi %2, %c12_i32 : i32
    %c0_i32_72 = arith.constant 0 : i32
    %105 = arith.addi %104, %c0_i32_72 : i32
    %106 = arith.index_cast %105 : i32 to index
    %c0_73 = arith.constant 0 : index
    %c0_74 = arith.constant 0 : index
    %107 = vector.load %arg3[%106, %c0_73, %c0_74] : memref<32x32x32xbf16, #tpu.memory_space<vmem>>, vector<1x32x32xbf16>
    %108 = vector.shape_cast %107 : vector<1x32x32xbf16> to vector<32x32xbf16>
    %cst_75 = arith.constant dense<0.000000e+00> : vector<18x32xf32>
    %109 = tpu.matmul %15, %108, %cst_75 {dimension_numbers = #tpu.dot_dimension_numbers<[1], [0], [0], [1], [0, 0, 1, 1], [], []>} : vector<18x32xbf16>, vector<32x32xbf16>, vector<18x32xf32> -> vector<18x32xf32>
    %c12_i32_76 = arith.constant 12 : i32
    %110 = arith.addi %2, %c12_i32_76 : i32
    %c1_i32_77 = arith.constant 1 : i32
    %111 = arith.addi %110, %c1_i32_77 : i32
    %112 = arith.index_cast %111 : i32 to index
    %c0_78 = arith.constant 0 : index
    %c0_79 = arith.constant 0 : index
    %113 = vector.load %arg3[%112, %c0_78, %c0_79] : memref<32x32x32xbf16, #tpu.memory_space<vmem>>, vector<1x32x32xbf16>
    %114 = vector.shape_cast %113 : vector<1x32x32xbf16> to vector<32x32xbf16>
    %cst_80 = arith.constant dense<0.000000e+00> : vector<18x32xf32>
    %115 = tpu.matmul %15, %114, %cst_80 {dimension_numbers = #tpu.dot_dimension_numbers<[1], [0], [0], [1], [0, 0, 1, 1], [], []>} : vector<18x32xbf16>, vector<32x32xbf16>, vector<18x32xf32> -> vector<18x32xf32>
    %c12_i32_81 = arith.constant 12 : i32
    %116 = arith.addi %2, %c12_i32_81 : i32
    %c2_i32_82 = arith.constant 2 : i32
    %117 = arith.addi %116, %c2_i32_82 : i32
    %118 = arith.index_cast %117 : i32 to index
    %c0_83 = arith.constant 0 : index
    %c0_84 = arith.constant 0 : index
    %119 = vector.load %arg3[%118, %c0_83, %c0_84] : memref<32x32x32xbf16, #tpu.memory_space<vmem>>, vector<1x32x32xbf16>
    %120 = vector.shape_cast %119 : vector<1x32x32xbf16> to vector<32x32xbf16>
    %cst_85 = arith.constant dense<0.000000e+00> : vector<18x32xf32>
    %121 = tpu.matmul %15, %120, %cst_85 {dimension_numbers = #tpu.dot_dimension_numbers<[1], [0], [0], [1], [0, 0, 1, 1], [], []>} : vector<18x32xbf16>, vector<32x32xbf16>, vector<18x32xf32> -> vector<18x32xf32>
    %cst_86 = arith.constant dense<0.000000e+00> : vector<18x18xf32>
    %122 = tpu.matmul %109, %115, %cst_86 {dimension_numbers = #tpu.dot_dimension_numbers<[1], [1], [0], [0], [0, 0, 1, 0], [], []>} : vector<18x32xf32>, vector<18x32xf32>, vector<18x18xf32> -> vector<18x18xf32>
    %123 = arith.mulf %122, %1 : vector<18x18xf32>
    %cst_87 = arith.constant dense<0.000000e+00> : vector<18x32xf32>
    %124 = tpu.matmul %123, %121, %cst_87 {dimension_numbers = #tpu.dot_dimension_numbers<[1], [0], [0], [1], [0, 0, 1, 1], [], []>} : vector<18x18xf32>, vector<18x32xf32>, vector<18x32xf32> -> vector<18x32xf32>
    %125 = arith.truncf %124 : vector<18x32xf32> to vector<18x32xbf16>
    %c12_i32_88 = arith.constant 12 : i32
    %126 = arith.addi %2, %c12_i32_88 : i32
    %c3_i32_89 = arith.constant 3 : i32
    %127 = arith.addi %126, %c3_i32_89 : i32
    %128 = arith.index_cast %127 : i32 to index
    %c0_90 = arith.constant 0 : index
    %c0_91 = arith.constant 0 : index
    %129 = vector.load %arg3[%128, %c0_90, %c0_91] : memref<32x32x32xbf16, #tpu.memory_space<vmem>>, vector<1x32x32xbf16>
    %130 = vector.shape_cast %129 : vector<1x32x32xbf16> to vector<32x32xbf16>
    %cst_92 = arith.constant dense<0.000000e+00> : vector<18x32xf32>
    %131 = tpu.matmul %125, %130, %cst_92 {dimension_numbers = #tpu.dot_dimension_numbers<[1], [0], [0], [1], [0, 0, 1, 1], [], []>} : vector<18x32xbf16>, vector<32x32xbf16>, vector<18x32xf32> -> vector<18x32xf32>
    %132 = arith.addf %103, %131 : vector<18x32xf32>
    %133 = vector.extract_strided_slice %5 {offsets = [0, 0], sizes = [1, 32], strides = [1, 1]} : vector<6x32xf32> to vector<1x32xf32>
    %134 = vector.broadcast %133 : vector<1x32xf32> to vector<18x32xf32>
    %135 = arith.addf %132, %134 : vector<18x32xf32>
    %136 = arith.addf %135, %0 : vector<18x32xf32>
    %137 = vector.extract_strided_slice %5 {offsets = [1, 0], sizes = [1, 32], strides = [1, 1]} : vector<6x32xf32> to vector<1x32xf32>
    %138 = vector.extract_strided_slice %5 {offsets = [2, 0], sizes = [1, 32], strides = [1, 1]} : vector<6x32xf32> to vector<1x32xf32>
    %cst_93 = arith.constant dense<0.000000e+00> : vector<18xf32>
    %139 = vector.multi_reduction <add>, %136, %cst_93 [1] : vector<18x32xf32> to vector<18xf32>
    %140 = vector.shape_cast %139 : vector<18xf32> to vector<18x1xf32>
    %cst_94 = arith.constant 3.200000e+01 : f32
    %141 = vector.broadcast %cst_94 : f32 to vector<18x1xf32>
    %142 = arith.divf %140, %141 : vector<18x1xf32>
    %143 = vector.broadcast %142 : vector<18x1xf32> to vector<18x32xf32>
    %144 = arith.subf %136, %143 : vector<18x32xf32>
    %145 = arith.mulf %144, %144 : vector<18x32xf32>
    %cst_95 = arith.constant dense<0.000000e+00> : vector<18xf32>
    %146 = vector.multi_reduction <add>, %145, %cst_95 [1] : vector<18x32xf32> to vector<18xf32>
    %147 = vector.shape_cast %146 : vector<18xf32> to vector<18x1xf32>
    %cst_96 = arith.constant 3.200000e+01 : f32
    %148 = vector.broadcast %cst_96 : f32 to vector<18x1xf32>
    %149 = arith.divf %147, %148 : vector<18x1xf32>
    %150 = vector.broadcast %142 : vector<18x1xf32> to vector<18x32xf32>
    %151 = arith.subf %136, %150 : vector<18x32xf32>
    %cst_97 = arith.constant 9.99999974E-6 : f32
    %152 = vector.broadcast %cst_97 : f32 to vector<18x1xf32>
    %153 = arith.addf %149, %152 : vector<18x1xf32>
    %154 = math.rsqrt %153 : vector<18x1xf32>
    %155 = vector.broadcast %154 : vector<18x1xf32> to vector<18x32xf32>
    %156 = arith.mulf %151, %155 : vector<18x32xf32>
    %157 = vector.broadcast %137 : vector<1x32xf32> to vector<18x32xf32>
    %158 = arith.mulf %156, %157 : vector<18x32xf32>
    %159 = vector.broadcast %138 : vector<1x32xf32> to vector<18x32xf32>
    %160 = arith.addf %158, %159 : vector<18x32xf32>
    %161 = arith.truncf %160 : vector<18x32xf32> to vector<18x32xbf16>
    %cst_98 = arith.constant dense<0.000000e+00> : vector<18x128xf32>
    %162 = tpu.matmul %161, %11, %cst_98 {dimension_numbers = #tpu.dot_dimension_numbers<[1], [0], [0], [1], [0, 0, 1, 1], [], []>} : vector<18x32xbf16>, vector<32x128xbf16>, vector<18x128xf32> -> vector<18x128xf32>
    %163 = vector.broadcast %8 : vector<1x128xf32> to vector<18x128xf32>
    %164 = arith.addf %162, %163 : vector<18x128xf32>
    %cst_99 = arith.constant 0.000000e+00 : f32
    %165 = vector.broadcast %cst_99 : f32 to vector<18x128xf32>
    %166 = arith.maximumf %164, %165 : vector<18x128xf32>
    %167 = arith.truncf %166 : vector<18x128xf32> to vector<18x128xbf16>
    %cst_100 = arith.constant dense<0.000000e+00> : vector<18x32xf32>
    %168 = tpu.matmul %167, %14, %cst_100 {dimension_numbers = #tpu.dot_dimension_numbers<[1], [0], [0], [1], [0, 0, 1, 1], [], []>} : vector<18x128xbf16>, vector<128x32xbf16>, vector<18x32xf32> -> vector<18x32xf32>
    %169 = vector.extract_strided_slice %5 {offsets = [3, 0], sizes = [1, 32], strides = [1, 1]} : vector<6x32xf32> to vector<1x32xf32>
    %170 = vector.broadcast %169 : vector<1x32xf32> to vector<18x32xf32>
    %171 = arith.addf %168, %170 : vector<18x32xf32>
    %172 = arith.addf %171, %160 : vector<18x32xf32>
    %173 = vector.extract_strided_slice %5 {offsets = [4, 0], sizes = [1, 32], strides = [1, 1]} : vector<6x32xf32> to vector<1x32xf32>
    %174 = vector.extract_strided_slice %5 {offsets = [5, 0], sizes = [1, 32], strides = [1, 1]} : vector<6x32xf32> to vector<1x32xf32>
    %cst_101 = arith.constant dense<0.000000e+00> : vector<18xf32>
    %175 = vector.multi_reduction <add>, %172, %cst_101 [1] : vector<18x32xf32> to vector<18xf32>
    %176 = vector.shape_cast %175 : vector<18xf32> to vector<18x1xf32>
    %cst_102 = arith.constant 3.200000e+01 : f32
    %177 = vector.broadcast %cst_102 : f32 to vector<18x1xf32>
    %178 = arith.divf %176, %177 : vector<18x1xf32>
    %179 = vector.broadcast %178 : vector<18x1xf32> to vector<18x32xf32>
    %180 = arith.subf %172, %179 : vector<18x32xf32>
    %181 = arith.mulf %180, %180 : vector<18x32xf32>
    %cst_103 = arith.constant dense<0.000000e+00> : vector<18xf32>
    %182 = vector.multi_reduction <add>, %181, %cst_103 [1] : vector<18x32xf32> to vector<18xf32>
    %183 = vector.shape_cast %182 : vector<18xf32> to vector<18x1xf32>
    %cst_104 = arith.constant 3.200000e+01 : f32
    %184 = vector.broadcast %cst_104 : f32 to vector<18x1xf32>
    %185 = arith.divf %183, %184 : vector<18x1xf32>
    %186 = vector.broadcast %178 : vector<18x1xf32> to vector<18x32xf32>
    %187 = arith.subf %172, %186 : vector<18x32xf32>
    %cst_105 = arith.constant 9.99999974E-6 : f32
    %188 = vector.broadcast %cst_105 : f32 to vector<18x1xf32>
    %189 = arith.addf %185, %188 : vector<18x1xf32>
    %190 = math.rsqrt %189 : vector<18x1xf32>
    %191 = vector.broadcast %190 : vector<18x1xf32> to vector<18x32xf32>
    %192 = arith.mulf %187, %191 : vector<18x32xf32>
    %193 = vector.broadcast %173 : vector<1x32xf32> to vector<18x32xf32>
    %194 = arith.mulf %192, %193 : vector<18x32xf32>
    %195 = vector.broadcast %174 : vector<1x32xf32> to vector<18x32xf32>
    %196 = arith.addf %194, %195 : vector<18x32xf32>
    %c1_i32_106 = arith.constant 1 : i32
    %c16_i32_107 = arith.constant 16 : i32
    %197 = arith.muli %c1_i32_106, %c16_i32_107 : i32
    %198 = arith.index_cast %c1_i32_106 : i32 to index
    %c0_108 = arith.constant 0 : index
    %c0_109 = arith.constant 0 : index
    %199 = vector.load %arg6[%198, %c0_108, %c0_109] : memref<2x6x32xf32, #tpu.memory_space<vmem>>, vector<1x6x32xf32>
    %200 = vector.shape_cast %199 : vector<1x6x32xf32> to vector<6x32xf32>
    %201 = arith.index_cast %c1_i32_106 : i32 to index
    %c0_110 = arith.constant 0 : index
    %c0_111 = arith.constant 0 : index
    %202 = vector.load %arg7[%201, %c0_110, %c0_111] : memref<2x1x128xf32, #tpu.memory_space<vmem>>, vector<1x1x128xf32>
    %203 = vector.shape_cast %202 : vector<1x1x128xf32> to vector<1x128xf32>
    %204 = arith.index_cast %c1_i32_106 : i32 to index
    %c0_112 = arith.constant 0 : index
    %c0_113 = arith.constant 0 : index
    %205 = vector.load %arg4[%204, %c0_112, %c0_113] : memref<2x32x128xbf16, #tpu.memory_space<vmem>>, vector<1x32x128xbf16>
    %206 = vector.shape_cast %205 : vector<1x32x128xbf16> to vector<32x128xbf16>
    %207 = arith.index_cast %c1_i32_106 : i32 to index
    %c0_114 = arith.constant 0 : index
    %c0_115 = arith.constant 0 : index
    %208 = vector.load %arg5[%207, %c0_114, %c0_115] : memref<2x128x32xbf16, #tpu.memory_space<vmem>>, vector<1x128x32xbf16>
    %209 = vector.shape_cast %208 : vector<1x128x32xbf16> to vector<128x32xbf16>
    %210 = arith.truncf %196 : vector<18x32xf32> to vector<18x32xbf16>
    %cst_116 = arith.constant 0.000000e+00 : f32
    %211 = vector.broadcast %cst_116 : f32 to vector<18x32xf32>
    %c0_i32_117 = arith.constant 0 : i32
    %212 = arith.addi %197, %c0_i32_117 : i32
    %c0_i32_118 = arith.constant 0 : i32
    %213 = arith.addi %212, %c0_i32_118 : i32
    %214 = arith.index_cast %213 : i32 to index
    %c0_119 = arith.constant 0 : index
    %c0_120 = arith.constant 0 : index
    %215 = vector.load %arg3[%214, %c0_119, %c0_120] : memref<32x32x32xbf16, #tpu.memory_space<vmem>>, vector<1x32x32xbf16>
    %216 = vector.shape_cast %215 : vector<1x32x32xbf16> to vector<32x32xbf16>
    %cst_121 = arith.constant dense<0.000000e+00> : vector<18x32xf32>
    %217 = tpu.matmul %210, %216, %cst_121 {dimension_numbers = #tpu.dot_dimension_numbers<[1], [0], [0], [1], [0, 0, 1, 1], [], []>} : vector<18x32xbf16>, vector<32x32xbf16>, vector<18x32xf32> -> vector<18x32xf32>
    %c0_i32_122 = arith.constant 0 : i32
    %218 = arith.addi %197, %c0_i32_122 : i32
    %c1_i32_123 = arith.constant 1 : i32
    %219 = arith.addi %218, %c1_i32_123 : i32
    %220 = arith.index_cast %219 : i32 to index
    %c0_124 = arith.constant 0 : index
    %c0_125 = arith.constant 0 : index
    %221 = vector.load %arg3[%220, %c0_124, %c0_125] : memref<32x32x32xbf16, #tpu.memory_space<vmem>>, vector<1x32x32xbf16>
    %222 = vector.shape_cast %221 : vector<1x32x32xbf16> to vector<32x32xbf16>
    %cst_126 = arith.constant dense<0.000000e+00> : vector<18x32xf32>
    %223 = tpu.matmul %210, %222, %cst_126 {dimension_numbers = #tpu.dot_dimension_numbers<[1], [0], [0], [1], [0, 0, 1, 1], [], []>} : vector<18x32xbf16>, vector<32x32xbf16>, vector<18x32xf32> -> vector<18x32xf32>
    %c0_i32_127 = arith.constant 0 : i32
    %224 = arith.addi %197, %c0_i32_127 : i32
    %c2_i32_128 = arith.constant 2 : i32
    %225 = arith.addi %224, %c2_i32_128 : i32
    %226 = arith.index_cast %225 : i32 to index
    %c0_129 = arith.constant 0 : index
    %c0_130 = arith.constant 0 : index
    %227 = vector.load %arg3[%226, %c0_129, %c0_130] : memref<32x32x32xbf16, #tpu.memory_space<vmem>>, vector<1x32x32xbf16>
    %228 = vector.shape_cast %227 : vector<1x32x32xbf16> to vector<32x32xbf16>
    %cst_131 = arith.constant dense<0.000000e+00> : vector<18x32xf32>
    %229 = tpu.matmul %210, %228, %cst_131 {dimension_numbers = #tpu.dot_dimension_numbers<[1], [0], [0], [1], [0, 0, 1, 1], [], []>} : vector<18x32xbf16>, vector<32x32xbf16>, vector<18x32xf32> -> vector<18x32xf32>
    %cst_132 = arith.constant dense<0.000000e+00> : vector<18x18xf32>
    %230 = tpu.matmul %217, %223, %cst_132 {dimension_numbers = #tpu.dot_dimension_numbers<[1], [1], [0], [0], [0, 0, 1, 0], [], []>} : vector<18x32xf32>, vector<18x32xf32>, vector<18x18xf32> -> vector<18x18xf32>
    %231 = arith.mulf %230, %1 : vector<18x18xf32>
    %cst_133 = arith.constant dense<0.000000e+00> : vector<18x32xf32>
    %232 = tpu.matmul %231, %229, %cst_133 {dimension_numbers = #tpu.dot_dimension_numbers<[1], [0], [0], [1], [0, 0, 1, 1], [], []>} : vector<18x18xf32>, vector<18x32xf32>, vector<18x32xf32> -> vector<18x32xf32>
    %233 = arith.truncf %232 : vector<18x32xf32> to vector<18x32xbf16>
    %c0_i32_134 = arith.constant 0 : i32
    %234 = arith.addi %197, %c0_i32_134 : i32
    %c3_i32_135 = arith.constant 3 : i32
    %235 = arith.addi %234, %c3_i32_135 : i32
    %236 = arith.index_cast %235 : i32 to index
    %c0_136 = arith.constant 0 : index
    %c0_137 = arith.constant 0 : index
    %237 = vector.load %arg3[%236, %c0_136, %c0_137] : memref<32x32x32xbf16, #tpu.memory_space<vmem>>, vector<1x32x32xbf16>
    %238 = vector.shape_cast %237 : vector<1x32x32xbf16> to vector<32x32xbf16>
    %cst_138 = arith.constant dense<0.000000e+00> : vector<18x32xf32>
    %239 = tpu.matmul %233, %238, %cst_138 {dimension_numbers = #tpu.dot_dimension_numbers<[1], [0], [0], [1], [0, 0, 1, 1], [], []>} : vector<18x32xbf16>, vector<32x32xbf16>, vector<18x32xf32> -> vector<18x32xf32>
    %240 = arith.addf %211, %239 : vector<18x32xf32>
    %c4_i32_139 = arith.constant 4 : i32
    %241 = arith.addi %197, %c4_i32_139 : i32
    %c0_i32_140 = arith.constant 0 : i32
    %242 = arith.addi %241, %c0_i32_140 : i32
    %243 = arith.index_cast %242 : i32 to index
    %c0_141 = arith.constant 0 : index
    %c0_142 = arith.constant 0 : index
    %244 = vector.load %arg3[%243, %c0_141, %c0_142] : memref<32x32x32xbf16, #tpu.memory_space<vmem>>, vector<1x32x32xbf16>
    %245 = vector.shape_cast %244 : vector<1x32x32xbf16> to vector<32x32xbf16>
    %cst_143 = arith.constant dense<0.000000e+00> : vector<18x32xf32>
    %246 = tpu.matmul %210, %245, %cst_143 {dimension_numbers = #tpu.dot_dimension_numbers<[1], [0], [0], [1], [0, 0, 1, 1], [], []>} : vector<18x32xbf16>, vector<32x32xbf16>, vector<18x32xf32> -> vector<18x32xf32>
    %c4_i32_144 = arith.constant 4 : i32
    %247 = arith.addi %197, %c4_i32_144 : i32
    %c1_i32_145 = arith.constant 1 : i32
    %248 = arith.addi %247, %c1_i32_145 : i32
    %249 = arith.index_cast %248 : i32 to index
    %c0_146 = arith.constant 0 : index
    %c0_147 = arith.constant 0 : index
    %250 = vector.load %arg3[%249, %c0_146, %c0_147] : memref<32x32x32xbf16, #tpu.memory_space<vmem>>, vector<1x32x32xbf16>
    %251 = vector.shape_cast %250 : vector<1x32x32xbf16> to vector<32x32xbf16>
    %cst_148 = arith.constant dense<0.000000e+00> : vector<18x32xf32>
    %252 = tpu.matmul %210, %251, %cst_148 {dimension_numbers = #tpu.dot_dimension_numbers<[1], [0], [0], [1], [0, 0, 1, 1], [], []>} : vector<18x32xbf16>, vector<32x32xbf16>, vector<18x32xf32> -> vector<18x32xf32>
    %c4_i32_149 = arith.constant 4 : i32
    %253 = arith.addi %197, %c4_i32_149 : i32
    %c2_i32_150 = arith.constant 2 : i32
    %254 = arith.addi %253, %c2_i32_150 : i32
    %255 = arith.index_cast %254 : i32 to index
    %c0_151 = arith.constant 0 : index
    %c0_152 = arith.constant 0 : index
    %256 = vector.load %arg3[%255, %c0_151, %c0_152] : memref<32x32x32xbf16, #tpu.memory_space<vmem>>, vector<1x32x32xbf16>
    %257 = vector.shape_cast %256 : vector<1x32x32xbf16> to vector<32x32xbf16>
    %cst_153 = arith.constant dense<0.000000e+00> : vector<18x32xf32>
    %258 = tpu.matmul %210, %257, %cst_153 {dimension_numbers = #tpu.dot_dimension_numbers<[1], [0], [0], [1], [0, 0, 1, 1], [], []>} : vector<18x32xbf16>, vector<32x32xbf16>, vector<18x32xf32> -> vector<18x32xf32>
    %cst_154 = arith.constant dense<0.000000e+00> : vector<18x18xf32>
    %259 = tpu.matmul %246, %252, %cst_154 {dimension_numbers = #tpu.dot_dimension_numbers<[1], [1], [0], [0], [0, 0, 1, 0], [], []>} : vector<18x32xf32>, vector<18x32xf32>, vector<18x18xf32> -> vector<18x18xf32>
    %260 = arith.mulf %259, %1 : vector<18x18xf32>
    %cst_155 = arith.constant dense<0.000000e+00> : vector<18x32xf32>
    %261 = tpu.matmul %260, %258, %cst_155 {dimension_numbers = #tpu.dot_dimension_numbers<[1], [0], [0], [1], [0, 0, 1, 1], [], []>} : vector<18x18xf32>, vector<18x32xf32>, vector<18x32xf32> -> vector<18x32xf32>
    %262 = arith.truncf %261 : vector<18x32xf32> to vector<18x32xbf16>
    %c4_i32_156 = arith.constant 4 : i32
    %263 = arith.addi %197, %c4_i32_156 : i32
    %c3_i32_157 = arith.constant 3 : i32
    %264 = arith.addi %263, %c3_i32_157 : i32
    %265 = arith.index_cast %264 : i32 to index
    %c0_158 = arith.constant 0 : index
    %c0_159 = arith.constant 0 : index
    %266 = vector.load %arg3[%265, %c0_158, %c0_159] : memref<32x32x32xbf16, #tpu.memory_space<vmem>>, vector<1x32x32xbf16>
    %267 = vector.shape_cast %266 : vector<1x32x32xbf16> to vector<32x32xbf16>
    %cst_160 = arith.constant dense<0.000000e+00> : vector<18x32xf32>
    %268 = tpu.matmul %262, %267, %cst_160 {dimension_numbers = #tpu.dot_dimension_numbers<[1], [0], [0], [1], [0, 0, 1, 1], [], []>} : vector<18x32xbf16>, vector<32x32xbf16>, vector<18x32xf32> -> vector<18x32xf32>
    %269 = arith.addf %240, %268 : vector<18x32xf32>
    %c8_i32_161 = arith.constant 8 : i32
    %270 = arith.addi %197, %c8_i32_161 : i32
    %c0_i32_162 = arith.constant 0 : i32
    %271 = arith.addi %270, %c0_i32_162 : i32
    %272 = arith.index_cast %271 : i32 to index
    %c0_163 = arith.constant 0 : index
    %c0_164 = arith.constant 0 : index
    %273 = vector.load %arg3[%272, %c0_163, %c0_164] : memref<32x32x32xbf16, #tpu.memory_space<vmem>>, vector<1x32x32xbf16>
    %274 = vector.shape_cast %273 : vector<1x32x32xbf16> to vector<32x32xbf16>
    %cst_165 = arith.constant dense<0.000000e+00> : vector<18x32xf32>
    %275 = tpu.matmul %210, %274, %cst_165 {dimension_numbers = #tpu.dot_dimension_numbers<[1], [0], [0], [1], [0, 0, 1, 1], [], []>} : vector<18x32xbf16>, vector<32x32xbf16>, vector<18x32xf32> -> vector<18x32xf32>
    %c8_i32_166 = arith.constant 8 : i32
    %276 = arith.addi %197, %c8_i32_166 : i32
    %c1_i32_167 = arith.constant 1 : i32
    %277 = arith.addi %276, %c1_i32_167 : i32
    %278 = arith.index_cast %277 : i32 to index
    %c0_168 = arith.constant 0 : index
    %c0_169 = arith.constant 0 : index
    %279 = vector.load %arg3[%278, %c0_168, %c0_169] : memref<32x32x32xbf16, #tpu.memory_space<vmem>>, vector<1x32x32xbf16>
    %280 = vector.shape_cast %279 : vector<1x32x32xbf16> to vector<32x32xbf16>
    %cst_170 = arith.constant dense<0.000000e+00> : vector<18x32xf32>
    %281 = tpu.matmul %210, %280, %cst_170 {dimension_numbers = #tpu.dot_dimension_numbers<[1], [0], [0], [1], [0, 0, 1, 1], [], []>} : vector<18x32xbf16>, vector<32x32xbf16>, vector<18x32xf32> -> vector<18x32xf32>
    %c8_i32_171 = arith.constant 8 : i32
    %282 = arith.addi %197, %c8_i32_171 : i32
    %c2_i32_172 = arith.constant 2 : i32
    %283 = arith.addi %282, %c2_i32_172 : i32
    %284 = arith.index_cast %283 : i32 to index
    %c0_173 = arith.constant 0 : index
    %c0_174 = arith.constant 0 : index
    %285 = vector.load %arg3[%284, %c0_173, %c0_174] : memref<32x32x32xbf16, #tpu.memory_space<vmem>>, vector<1x32x32xbf16>
    %286 = vector.shape_cast %285 : vector<1x32x32xbf16> to vector<32x32xbf16>
    %cst_175 = arith.constant dense<0.000000e+00> : vector<18x32xf32>
    %287 = tpu.matmul %210, %286, %cst_175 {dimension_numbers = #tpu.dot_dimension_numbers<[1], [0], [0], [1], [0, 0, 1, 1], [], []>} : vector<18x32xbf16>, vector<32x32xbf16>, vector<18x32xf32> -> vector<18x32xf32>
    %cst_176 = arith.constant dense<0.000000e+00> : vector<18x18xf32>
    %288 = tpu.matmul %275, %281, %cst_176 {dimension_numbers = #tpu.dot_dimension_numbers<[1], [1], [0], [0], [0, 0, 1, 0], [], []>} : vector<18x32xf32>, vector<18x32xf32>, vector<18x18xf32> -> vector<18x18xf32>
    %289 = arith.mulf %288, %1 : vector<18x18xf32>
    %cst_177 = arith.constant dense<0.000000e+00> : vector<18x32xf32>
    %290 = tpu.matmul %289, %287, %cst_177 {dimension_numbers = #tpu.dot_dimension_numbers<[1], [0], [0], [1], [0, 0, 1, 1], [], []>} : vector<18x18xf32>, vector<18x32xf32>, vector<18x32xf32> -> vector<18x32xf32>
    %291 = arith.truncf %290 : vector<18x32xf32> to vector<18x32xbf16>
    %c8_i32_178 = arith.constant 8 : i32
    %292 = arith.addi %197, %c8_i32_178 : i32
    %c3_i32_179 = arith.constant 3 : i32
    %293 = arith.addi %292, %c3_i32_179 : i32
    %294 = arith.index_cast %293 : i32 to index
    %c0_180 = arith.constant 0 : index
    %c0_181 = arith.constant 0 : index
    %295 = vector.load %arg3[%294, %c0_180, %c0_181] : memref<32x32x32xbf16, #tpu.memory_space<vmem>>, vector<1x32x32xbf16>
    %296 = vector.shape_cast %295 : vector<1x32x32xbf16> to vector<32x32xbf16>
    %cst_182 = arith.constant dense<0.000000e+00> : vector<18x32xf32>
    %297 = tpu.matmul %291, %296, %cst_182 {dimension_numbers = #tpu.dot_dimension_numbers<[1], [0], [0], [1], [0, 0, 1, 1], [], []>} : vector<18x32xbf16>, vector<32x32xbf16>, vector<18x32xf32> -> vector<18x32xf32>
    %298 = arith.addf %269, %297 : vector<18x32xf32>
    %c12_i32_183 = arith.constant 12 : i32
    %299 = arith.addi %197, %c12_i32_183 : i32
    %c0_i32_184 = arith.constant 0 : i32
    %300 = arith.addi %299, %c0_i32_184 : i32
    %301 = arith.index_cast %300 : i32 to index
    %c0_185 = arith.constant 0 : index
    %c0_186 = arith.constant 0 : index
    %302 = vector.load %arg3[%301, %c0_185, %c0_186] : memref<32x32x32xbf16, #tpu.memory_space<vmem>>, vector<1x32x32xbf16>
    %303 = vector.shape_cast %302 : vector<1x32x32xbf16> to vector<32x32xbf16>
    %cst_187 = arith.constant dense<0.000000e+00> : vector<18x32xf32>
    %304 = tpu.matmul %210, %303, %cst_187 {dimension_numbers = #tpu.dot_dimension_numbers<[1], [0], [0], [1], [0, 0, 1, 1], [], []>} : vector<18x32xbf16>, vector<32x32xbf16>, vector<18x32xf32> -> vector<18x32xf32>
    %c12_i32_188 = arith.constant 12 : i32
    %305 = arith.addi %197, %c12_i32_188 : i32
    %c1_i32_189 = arith.constant 1 : i32
    %306 = arith.addi %305, %c1_i32_189 : i32
    %307 = arith.index_cast %306 : i32 to index
    %c0_190 = arith.constant 0 : index
    %c0_191 = arith.constant 0 : index
    %308 = vector.load %arg3[%307, %c0_190, %c0_191] : memref<32x32x32xbf16, #tpu.memory_space<vmem>>, vector<1x32x32xbf16>
    %309 = vector.shape_cast %308 : vector<1x32x32xbf16> to vector<32x32xbf16>
    %cst_192 = arith.constant dense<0.000000e+00> : vector<18x32xf32>
    %310 = tpu.matmul %210, %309, %cst_192 {dimension_numbers = #tpu.dot_dimension_numbers<[1], [0], [0], [1], [0, 0, 1, 1], [], []>} : vector<18x32xbf16>, vector<32x32xbf16>, vector<18x32xf32> -> vector<18x32xf32>
    %c12_i32_193 = arith.constant 12 : i32
    %311 = arith.addi %197, %c12_i32_193 : i32
    %c2_i32_194 = arith.constant 2 : i32
    %312 = arith.addi %311, %c2_i32_194 : i32
    %313 = arith.index_cast %312 : i32 to index
    %c0_195 = arith.constant 0 : index
    %c0_196 = arith.constant 0 : index
    %314 = vector.load %arg3[%313, %c0_195, %c0_196] : memref<32x32x32xbf16, #tpu.memory_space<vmem>>, vector<1x32x32xbf16>
    %315 = vector.shape_cast %314 : vector<1x32x32xbf16> to vector<32x32xbf16>
    %cst_197 = arith.constant dense<0.000000e+00> : vector<18x32xf32>
    %316 = tpu.matmul %210, %315, %cst_197 {dimension_numbers = #tpu.dot_dimension_numbers<[1], [0], [0], [1], [0, 0, 1, 1], [], []>} : vector<18x32xbf16>, vector<32x32xbf16>, vector<18x32xf32> -> vector<18x32xf32>
    %cst_198 = arith.constant dense<0.000000e+00> : vector<18x18xf32>
    %317 = tpu.matmul %304, %310, %cst_198 {dimension_numbers = #tpu.dot_dimension_numbers<[1], [1], [0], [0], [0, 0, 1, 0], [], []>} : vector<18x32xf32>, vector<18x32xf32>, vector<18x18xf32> -> vector<18x18xf32>
    %318 = arith.mulf %317, %1 : vector<18x18xf32>
    %cst_199 = arith.constant dense<0.000000e+00> : vector<18x32xf32>
    %319 = tpu.matmul %318, %316, %cst_199 {dimension_numbers = #tpu.dot_dimension_numbers<[1], [0], [0], [1], [0, 0, 1, 1], [], []>} : vector<18x18xf32>, vector<18x32xf32>, vector<18x32xf32> -> vector<18x32xf32>
    %320 = arith.truncf %319 : vector<18x32xf32> to vector<18x32xbf16>
    %c12_i32_200 = arith.constant 12 : i32
    %321 = arith.addi %197, %c12_i32_200 : i32
    %c3_i32_201 = arith.constant 3 : i32
    %322 = arith.addi %321, %c3_i32_201 : i32
    %323 = arith.index_cast %322 : i32 to index
    %c0_202 = arith.constant 0 : index
    %c0_203 = arith.constant 0 : index
    %324 = vector.load %arg3[%323, %c0_202, %c0_203] : memref<32x32x32xbf16, #tpu.memory_space<vmem>>, vector<1x32x32xbf16>
    %325 = vector.shape_cast %324 : vector<1x32x32xbf16> to vector<32x32xbf16>
    %cst_204 = arith.constant dense<0.000000e+00> : vector<18x32xf32>
    %326 = tpu.matmul %320, %325, %cst_204 {dimension_numbers = #tpu.dot_dimension_numbers<[1], [0], [0], [1], [0, 0, 1, 1], [], []>} : vector<18x32xbf16>, vector<32x32xbf16>, vector<18x32xf32> -> vector<18x32xf32>
    %327 = arith.addf %298, %326 : vector<18x32xf32>
    %328 = vector.extract_strided_slice %200 {offsets = [0, 0], sizes = [1, 32], strides = [1, 1]} : vector<6x32xf32> to vector<1x32xf32>
    %329 = vector.broadcast %328 : vector<1x32xf32> to vector<18x32xf32>
    %330 = arith.addf %327, %329 : vector<18x32xf32>
    %331 = arith.addf %330, %196 : vector<18x32xf32>
    %332 = vector.extract_strided_slice %200 {offsets = [1, 0], sizes = [1, 32], strides = [1, 1]} : vector<6x32xf32> to vector<1x32xf32>
    %333 = vector.extract_strided_slice %200 {offsets = [2, 0], sizes = [1, 32], strides = [1, 1]} : vector<6x32xf32> to vector<1x32xf32>
    %cst_205 = arith.constant dense<0.000000e+00> : vector<18xf32>
    %334 = vector.multi_reduction <add>, %331, %cst_205 [1] : vector<18x32xf32> to vector<18xf32>
    %335 = vector.shape_cast %334 : vector<18xf32> to vector<18x1xf32>
    %cst_206 = arith.constant 3.200000e+01 : f32
    %336 = vector.broadcast %cst_206 : f32 to vector<18x1xf32>
    %337 = arith.divf %335, %336 : vector<18x1xf32>
    %338 = vector.broadcast %337 : vector<18x1xf32> to vector<18x32xf32>
    %339 = arith.subf %331, %338 : vector<18x32xf32>
    %340 = arith.mulf %339, %339 : vector<18x32xf32>
    %cst_207 = arith.constant dense<0.000000e+00> : vector<18xf32>
    %341 = vector.multi_reduction <add>, %340, %cst_207 [1] : vector<18x32xf32> to vector<18xf32>
    %342 = vector.shape_cast %341 : vector<18xf32> to vector<18x1xf32>
    %cst_208 = arith.constant 3.200000e+01 : f32
    %343 = vector.broadcast %cst_208 : f32 to vector<18x1xf32>
    %344 = arith.divf %342, %343 : vector<18x1xf32>
    %345 = vector.broadcast %337 : vector<18x1xf32> to vector<18x32xf32>
    %346 = arith.subf %331, %345 : vector<18x32xf32>
    %cst_209 = arith.constant 9.99999974E-6 : f32
    %347 = vector.broadcast %cst_209 : f32 to vector<18x1xf32>
    %348 = arith.addf %344, %347 : vector<18x1xf32>
    %349 = math.rsqrt %348 : vector<18x1xf32>
    %350 = vector.broadcast %349 : vector<18x1xf32> to vector<18x32xf32>
    %351 = arith.mulf %346, %350 : vector<18x32xf32>
    %352 = vector.broadcast %332 : vector<1x32xf32> to vector<18x32xf32>
    %353 = arith.mulf %351, %352 : vector<18x32xf32>
    %354 = vector.broadcast %333 : vector<1x32xf32> to vector<18x32xf32>
    %355 = arith.addf %353, %354 : vector<18x32xf32>
    %356 = arith.truncf %355 : vector<18x32xf32> to vector<18x32xbf16>
    %cst_210 = arith.constant dense<0.000000e+00> : vector<18x128xf32>
    %357 = tpu.matmul %356, %206, %cst_210 {dimension_numbers = #tpu.dot_dimension_numbers<[1], [0], [0], [1], [0, 0, 1, 1], [], []>} : vector<18x32xbf16>, vector<32x128xbf16>, vector<18x128xf32> -> vector<18x128xf32>
    %358 = vector.broadcast %203 : vector<1x128xf32> to vector<18x128xf32>
    %359 = arith.addf %357, %358 : vector<18x128xf32>
    %cst_211 = arith.constant 0.000000e+00 : f32
    %360 = vector.broadcast %cst_211 : f32 to vector<18x128xf32>
    %361 = arith.maximumf %359, %360 : vector<18x128xf32>
    %362 = arith.truncf %361 : vector<18x128xf32> to vector<18x128xbf16>
    %cst_212 = arith.constant dense<0.000000e+00> : vector<18x32xf32>
    %363 = tpu.matmul %362, %209, %cst_212 {dimension_numbers = #tpu.dot_dimension_numbers<[1], [0], [0], [1], [0, 0, 1, 1], [], []>} : vector<18x128xbf16>, vector<128x32xbf16>, vector<18x32xf32> -> vector<18x32xf32>
    %364 = vector.extract_strided_slice %200 {offsets = [3, 0], sizes = [1, 32], strides = [1, 1]} : vector<6x32xf32> to vector<1x32xf32>
    %365 = vector.broadcast %364 : vector<1x32xf32> to vector<18x32xf32>
    %366 = arith.addf %363, %365 : vector<18x32xf32>
    %367 = arith.addf %366, %355 : vector<18x32xf32>
    %368 = vector.extract_strided_slice %200 {offsets = [4, 0], sizes = [1, 32], strides = [1, 1]} : vector<6x32xf32> to vector<1x32xf32>
    %369 = vector.extract_strided_slice %200 {offsets = [5, 0], sizes = [1, 32], strides = [1, 1]} : vector<6x32xf32> to vector<1x32xf32>
    %cst_213 = arith.constant dense<0.000000e+00> : vector<18xf32>
    %370 = vector.multi_reduction <add>, %367, %cst_213 [1] : vector<18x32xf32> to vector<18xf32>
    %371 = vector.shape_cast %370 : vector<18xf32> to vector<18x1xf32>
    %cst_214 = arith.constant 3.200000e+01 : f32
    %372 = vector.broadcast %cst_214 : f32 to vector<18x1xf32>
    %373 = arith.divf %371, %372 : vector<18x1xf32>
    %374 = vector.broadcast %373 : vector<18x1xf32> to vector<18x32xf32>
    %375 = arith.subf %367, %374 : vector<18x32xf32>
    %376 = arith.mulf %375, %375 : vector<18x32xf32>
    %cst_215 = arith.constant dense<0.000000e+00> : vector<18xf32>
    %377 = vector.multi_reduction <add>, %376, %cst_215 [1] : vector<18x32xf32> to vector<18xf32>
    %378 = vector.shape_cast %377 : vector<18xf32> to vector<18x1xf32>
    %cst_216 = arith.constant 3.200000e+01 : f32
    %379 = vector.broadcast %cst_216 : f32 to vector<18x1xf32>
    %380 = arith.divf %378, %379 : vector<18x1xf32>
    %381 = vector.broadcast %373 : vector<18x1xf32> to vector<18x32xf32>
    %382 = arith.subf %367, %381 : vector<18x32xf32>
    %cst_217 = arith.constant 9.99999974E-6 : f32
    %383 = vector.broadcast %cst_217 : f32 to vector<18x1xf32>
    %384 = arith.addf %380, %383 : vector<18x1xf32>
    %385 = math.rsqrt %384 : vector<18x1xf32>
    %386 = vector.broadcast %385 : vector<18x1xf32> to vector<18x32xf32>
    %387 = arith.mulf %382, %386 : vector<18x32xf32>
    %388 = vector.broadcast %368 : vector<1x32xf32> to vector<18x32xf32>
    %389 = arith.mulf %387, %388 : vector<18x32xf32>
    %390 = vector.broadcast %369 : vector<1x32xf32> to vector<18x32xf32>
    %391 = arith.addf %389, %390 : vector<18x32xf32>
    %c2_i32_218 = arith.constant 2 : i32
    %c0_219 = arith.constant 0 : index
    %c0_220 = arith.constant 0 : index
    %392 = vector.load %arg8[%c0_219, %c0_220] : memref<18x32xf32, #tpu.memory_space<vmem>>, vector<18x32xf32>
    tpu.vector_store %arg8[%c0_219, %c0_220], %391 {strides = array<i32>} : memref<18x32xf32, #tpu.memory_space<vmem>>, vector<18x32xf32>,
    return
  }
  func.func @transform_0(%arg0: i32) -> (i32, i32) {
    %c0_i32 = arith.constant 0 : i32
    %c0_i32_0 = arith.constant 0 : i32
    return %arg0, %c0_i32 : i32, i32
  }
  func.func @transform_1(%arg0: i32) -> (i32, i32) {
    %c0_i32 = arith.constant 0 : i32
    %c0_i32_0 = arith.constant 0 : i32
    %c0_i32_1 = arith.constant 0 : i32
    return %c0_i32, %c0_i32_0 : i32, i32
  }
  func.func @transform_2(%arg0: i32) -> (i32, i32, i32) {
    %c0_i32 = arith.constant 0 : i32
    %c0_i32_0 = arith.constant 0 : i32
    %c0_i32_1 = arith.constant 0 : i32
    %c0_i32_2 = arith.constant 0 : i32
    return %c0_i32, %c0_i32_0, %c0_i32_1 : i32, i32, i32
  }
  func.func @transform_3(%arg0: i32) -> (i32, i32, i32) {
    %c0_i32 = arith.constant 0 : i32
    %c0_i32_0 = arith.constant 0 : i32
    %c0_i32_1 = arith.constant 0 : i32
    %c0_i32_2 = arith.constant 0 : i32
    return %c0_i32, %c0_i32_0, %c0_i32_1 : i32, i32, i32
  }
  func.func @transform_4(%arg0: i32) -> (i32, i32, i32) {
    %c0_i32 = arith.constant 0 : i32
    %c0_i32_0 = arith.constant 0 : i32
    %c0_i32_1 = arith.constant 0 : i32
    %c0_i32_2 = arith.constant 0 : i32
    return %c0_i32, %c0_i32_0, %c0_i32_1 : i32, i32, i32
  }
  func.func @transform_5(%arg0: i32) -> (i32, i32, i32) {
    %c0_i32 = arith.constant 0 : i32
    %c0_i32_0 = arith.constant 0 : i32
    %c0_i32_1 = arith.constant 0 : i32
    %c0_i32_2 = arith.constant 0 : i32
    return %c0_i32, %c0_i32_0, %c0_i32_1 : i32, i32, i32
  }
  func.func @transform_6(%arg0: i32) -> (i32, i32, i32) {
    %c0_i32 = arith.constant 0 : i32
    %c0_i32_0 = arith.constant 0 : i32
    %c0_i32_1 = arith.constant 0 : i32
    %c0_i32_2 = arith.constant 0 : i32
    return %c0_i32, %c0_i32_0, %c0_i32_1 : i32, i32, i32
  }
  func.func @transform_7(%arg0: i32) -> (i32, i32) {
    %c0_i32 = arith.constant 0 : i32
    %c0_i32_0 = arith.constant 0 : i32
    return %arg0, %c0_i32 : i32, i32
  }
}

</mosaic_0001>

<llo_original>
// kernel: tpu_custom_call.1
$region0: #{tpu_custom_call.1}
  #allocation0 [shape = 'u32[]', space=smem, size = 0x4, offset = 0x4, fixed_abs, tag = 'smem constant byte address 0x4 - core index']
  #allocation1 [shape = 'u32[144,128]{1,0:T(1,128)}', space=vmem, size = 0x12000, scoped, tag = 'internal scratch']
  %s0 = inlined_call_operand.vmem [shape: f32[18,32], index: 0, kind: input, shape index: {}]
  %s1 = inlined_call_operand.vmem [shape: f32[18,18], index: 1, kind: input, shape index: {}]
  %s2 = inlined_call_operand.hbm [shape: bf16[32,32,32], index: 2, kind: input, shape index: {}]
  %s3 = inlined_call_operand.vmem [shape: bf16[2,32,128], index: 3, kind: input, shape index: {}]
  %s4 = inlined_call_operand.vmem [shape: bf16[2,128,32], index: 4, kind: input, shape index: {}]
  %s5 = inlined_call_operand.vmem [shape: f32[2,6,32], index: 5, kind: input, shape index: {}]
  %s6 = inlined_call_operand.vmem [shape: f32[2,1,128], index: 6, kind: input, shape index: {}]
  %s7 = inlined_call_operand.hbm [shape: f32[18,32], index: 7, kind: output, shape index: {}]
  %s8 = sld [smem:[#allocation0]]
  $region42: #{tpu_custom_call.1} parent=0
    _
  %s10 = ssub.s32 1, %s8
  %s11 = scalar_select 0, %s10, %s8
  $region1: #{tpu_custom_call.1} parent=0
    #allocation2 [shape = 'u8[262144]{0}', space=vmem, size = 0x40000, scoped, tag = 'input window, operand 2, single buffered']
    #allocation3 [shape = 's32[1]{0}', space=sflag, size = 0x4, scoped, tag = 'scoped memory for tpu_custom_call.1']
    #allocation4 [shape = 's32[1]{0}', space=sflag, size = 0x4, scoped, tag = 'scoped memory for tpu_custom_call.1']
    #allocation5 [shape = 'u8[12288]{0}', space=vmem, size = 0x3000, scoped, tag = 'output window, operand 0, single buffered']
    %12 = vsyncpa [#allocation3], 0
    %13 = vsyncpa [#allocation4], 0
    // Predicated region
    $region2: #{tpu_custom_call.1} parent=1 // pred_check
      _
    $region3: #{tpu_custom_call.1} parent=1 // pred_check_branch
      %15 = sbr.rel (0) target = $region5
    $region4: #{tpu_custom_call.1} parent=1 // pred_region
      _
    $region5: #{tpu_custom_call.1} parent=1 // pred_fallthru
      _
    // Predicated region
    $region6: #{tpu_custom_call.1} parent=1 // pred_check
      _
    $region7: #{tpu_custom_call.1} parent=1 // pred_check_branch
      %17 = sbr.rel (0) target = $region9
    $region8: #{tpu_custom_call.1} parent=1 // pred_region
      _
    $region9: #{tpu_custom_call.1} parent=1 // pred_fallthru
      _
    // Predicated region
    $region10: #{tpu_custom_call.1} parent=1 // pred_check
      _
    $region11: #{tpu_custom_call.1} parent=1 // pred_check_branch
      %19 = sbr.rel (0) target = $region13
    $region12: #{tpu_custom_call.1} parent=1 // pred_region
      %s21 = ssub.s32 8192, 8192
      %22 = vsyncadd [#allocation3], %s21
      %s23 = sshll.u32 [#allocation2], 4
      %s24 = int_to_ptr.vmem [resolvable:$true] %s23
      %29 = dma.hbm_to_vmem [thread:$0]  %s2, 8192, %s24, [#allocation3], 64, 64, 4
    $region13: #{tpu_custom_call.1} parent=1 // pred_fallthru
      _
    // Predicated region
    $region14: #{tpu_custom_call.1} parent=1 // pred_check
      _
    $region15: #{tpu_custom_call.1} parent=1 // pred_check_branch
      %31 = sbr.rel (0) target = $region17
    $region16: #{tpu_custom_call.1} parent=1 // pred_region
      _
    $region17: #{tpu_custom_call.1} parent=1 // pred_fallthru
      _
    // Predicated region
    $region18: #{tpu_custom_call.1} parent=1 // pred_check
      _
    $region19: #{tpu_custom_call.1} parent=1 // pred_check_branch
      %33 = sbr.rel (0) target = $region21
    $region20: #{tpu_custom_call.1} parent=1 // pred_region
      _
    $region21: #{tpu_custom_call.1} parent=1 // pred_fallthru
      _
    // Predicated region
    $region22: #{tpu_custom_call.1} parent=1 // pred_check
      _
    $region23: #{tpu_custom_call.1} parent=1 // pred_check_branch
      %35 = sbr.rel (0) target = $region25
    $region24: #{tpu_custom_call.1} parent=1 // pred_region
      _
    $region25: #{tpu_custom_call.1} parent=1 // pred_fallthru
      _
    // Predicated region
    $region26: #{tpu_custom_call.1} parent=1 // pred_check
      _
    $region27: #{tpu_custom_call.1} parent=1 // pred_check_branch
      %37 = sbr.rel (0) target = $region29
    $region28: #{tpu_custom_call.1} parent=1 // pred_region
      _
    $region29: #{tpu_custom_call.1} parent=1 // pred_fallthru
      _
    // Predicated region
    $region30: #{tpu_custom_call.1} parent=1 // pred_check
      _
    $region31: #{tpu_custom_call.1} parent=1 // pred_check_branch
      %39 = sbr.rel (0) target = $region33
    $region32: #{tpu_custom_call.1} parent=1 // pred_region
      %40 = dma.done [#allocation3], 8192
    $region33: #{tpu_custom_call.1} parent=1 // pred_fallthru
      _
    %v42 = vld [vmem:[%s0] sm:$0xff]
    %v43 = vld [vmem:[%s0 + $0x8] sm:$0xff]
    %v44 = vld [vmem:[%s0 + $0x10] sm:$0x3]
    %v45 = vld [vmem:[%s1] sm:$0xff]
    %v46 = vld [vmem:[%s1 + $0x8] sm:$0xff]
    %v47 = vld [vmem:[%s1 + $0x10] sm:$0x3]
    %v48 = vld [vmem:[%s5] sm:$0x3f]
    %v49 = vld [vmem:[%s6] sm:$0x1]
    %v50 = vld [vmem:[%s3] sm:$0xf]
    %v51 = vld [vmem:[%s3 + $0x4] sm:$0xf]
    %v52 = vld [vmem:[%s3 + $0x8] sm:$0xf]
    %v53 = vld [vmem:[%s3 + $0xc] sm:$0xf]
    %v54 = vld [vmem:[%s4] sm:$0xf]
    %v55 = vld [vmem:[%s4 + $0x4] sm:$0xf]
    %v56 = vld [vmem:[%s4 + $0x8] sm:$0xf]
    %v57 = vld [vmem:[%s4 + $0xc] sm:$0xf]
    %v58 = vld [vmem:[%s4 + $0x10] sm:$0xf]
    %v59 = vld [vmem:[%s4 + $0x14] sm:$0xf]
    %v60 = vld [vmem:[%s4 + $0x18] sm:$0xf]
    %v61 = vld [vmem:[%s4 + $0x1c] sm:$0xf]
    %v62 = vld [vmem:[%s4 + $0x20] sm:$0xf]
    %v63 = vld [vmem:[%s4 + $0x24] sm:$0xf]
    %v64 = vld [vmem:[%s4 + $0x28] sm:$0xf]
    %v65 = vld [vmem:[%s4 + $0x2c] sm:$0xf]
    %v66 = vld [vmem:[%s4 + $0x30] sm:$0xf]
    %v67 = vld [vmem:[%s4 + $0x34] sm:$0xf]
    %v68 = vld [vmem:[%s4 + $0x38] sm:$0xf]
    %v69 = vld [vmem:[%s4 + $0x3c] sm:$0xf]
    %v70 = vpack.c.bf16 %v43, %v42
    %v71 = vpack.c.bf16 %v44, %v44
    %v72 = vld [vmem:[#allocation2] sm:$0xf]
    %v73 = vld [vmem:[#allocation2 + $0x4] sm:$0xf]
    %v74 = vld [vmem:[#allocation2 + $0x8] sm:$0xf]
    %v75 = vld [vmem:[#allocation2 + $0xc] sm:$0xf]
    %v80 = vunpack.c.l.b16 %v72
    %v81 = vunpack.c.l.b16 %v73
    %v82 = vunpack.c.l.b16 %v74
    %v83 = vunpack.c.l.b16 %v75
    %v84 = vpack.c.b16 %v81, %v80
    %v85 = vpack.c.b16 %v83, %v82
    %vm88 = vcmask 261120
    %v90 = vsel %vm88, %v70, 0
    %v93 = vsel %vm88, %v71, 0
    %95 = vmatprep.subr.bf16.mxu0 0
    %96 = vmatpush1.bf16.msra.mxu0 0
    %97 = vmatprep.subr.bf16.mxu0 0
    %98 = vmatpush1.bf16.msra.mxu0 0
    %99 = vmatprep.subr.bf16.mxu0 0
    %100 = vmatpush1.bf16.msra.mxu0 0
    %101 = vmatprep.subr.bf16.mxu0 0
    %102 = vmatpush1.bf16.msra.mxu0 0
    %103 = vmatprep.subr.bf16.mxu0 0
    %104 = vmatpush1.bf16.msra.mxu0 0
    %105 = vmatprep.subr.bf16.mxu0 0
    %106 = vmatpush1.bf16.msra.mxu0 0
    %107 = vmatprep.subr.bf16.mxu0 0
    %108 = vmatpush1.bf16.msra.mxu0 %v85
    %109 = vmatprep.subr.bf16.mxu0 0
    %110 = vmatpush1.bf16.msra.mxu0 %v84
    %111 = vmatprep.subr.bf16.mxu0 0
    %112 = vmatpush2.bf16.msra.mxu0 0
    %113 = vmatprep.subr.bf16.mxu0 0
    %114 = vmatpush2.bf16.msra.mxu0 0
    %115 = vmatprep.subr.bf16.mxu0 0
    %116 = vmatpush2.bf16.msra.mxu0 0
    %117 = vmatprep.subr.bf16.mxu0 0
    %118 = vmatpush2.bf16.msra.mxu0 0
    %119 = vmatprep.subr.bf16.mxu0 0
    %120 = vmatpush2.bf16.msra.mxu0 0
    %121 = vmatprep.subr.bf16.mxu0 0
    %122 = vmatpush2.bf16.msra.mxu0 0
    %123 = vmatprep.subr.bf16.mxu0 0
    %124 = vmatpush2.bf16.msra.mxu0 0
    %125 = vmatprep.subr.bf16.mxu0 0
    %126 = vmatpush2.bf16.msra.mxu0 0
    %127 = vmatprep.mubr.bf16.mxu0 0
    %128 = vmatmul.mubr.bf16.gmra.mxu0 %v90
    %v129 = vpop.f32.mrf.mxu0
    %v130 = vadd.f32 0.0, %v129
    %v131 = vpop.f32.mrf.mxu0
    %v132 = vpop.f32.mrf.mxu0
    %v133 = vadd.f32 0.0, %v132
    %v134 = vpop.f32.mrf.mxu0
    %135 = vmatprep.mubr.bf16.mxu0 0
    %136 = vmatmul.mubr.bf16.gmra.mxu0 %v93
    %v137 = vpop.f32.mrf.mxu0
    %v138 = vadd.f32 0.0, %v137
    %v139 = vpop.f32.mrf.mxu0
    %v140 = vpop.f32.mrf.mxu0
    %v141 = vpop.f32.mrf.mxu0
    %142 = vdwg.mxu0
    %s143 = scalar_lea.vmem [#allocation2], 16
    %v144 = vld [vmem:[%s143] sm:$0xf]
    %v145 = vld [vmem:[%s143 + $0x4] sm:$0xf]
    %v146 = vld [vmem:[%s143 + $0x8] sm:$0xf]
    %v147 = vld [vmem:[%s143 + $0xc] sm:$0xf]
    %v152 = vunpack.c.l.b16 %v144
    %v153 = vunpack.c.l.b16 %v145
    %v154 = vunpack.c.l.b16 %v146
    %v155 = vunpack.c.l.b16 %v147
    %v156 = vpack.c.b16 %v153, %v152
    %v157 = vpack.c.b16 %v155, %v154
    %160 = vmatprep.subr.bf16.mxu0 0
    %161 = vmatpush1.bf16.msra.mxu0 0
    %162 = vmatprep.subr.bf16.mxu0 0
    %163 = vmatpush1.bf16.msra.mxu0 0
    %164 = vmatprep.subr.bf16.mxu0 0
    %165 = vmatpush1.bf16.msra.mxu0 0
    %166 = vmatprep.subr.bf16.mxu0 0
    %167 = vmatpush1.bf16.msra.mxu0 0
    %168 = vmatprep.subr.bf16.mxu0 0
    %169 = vmatpush1.bf16.msra.mxu0 0
    %170 = vmatprep.subr.bf16.mxu0 0
    %171 = vmatpush1.bf16.msra.mxu0 0
    %172 = vmatprep.subr.bf16.mxu0 0
    %173 = vmatpush1.bf16.msra.mxu0 %v157
    %174 = vmatprep.subr.bf16.mxu0 0
    %175 = vmatpush1.bf16.msra.mxu0 %v156
    %176 = vmatprep.subr.bf16.mxu0 0
    %177 = vmatpush2.bf16.msra.mxu0 0
    %178 = vmatprep.subr.bf16.mxu0 0
    %179 = vmatpush2.bf16.msra.mxu0 0
    %180 = vmatprep.subr.bf16.mxu0 0
    %181 = vmatpush2.bf16.msra.mxu0 0
    %182 = vmatprep.subr.bf16.mxu0 0
    %183 = vmatpush2.bf16.msra.mxu0 0
    %184 = vmatprep.subr.bf16.mxu0 0
    %185 = vmatpush2.bf16.msra.mxu0 0
    %186 = vmatprep.subr.bf16.mxu0 0
    %187 = vmatpush2.bf16.msra.mxu0 0
    %188 = vmatprep.subr.bf16.mxu0 0
    %189 = vmatpush2.bf16.msra.mxu0 0
    %190 = vmatprep.subr.bf16.mxu0 0
    %191 = vmatpush2.bf16.msra.mxu0 0
    %192 = vmatprep.mubr.bf16.mxu0 0
    %193 = vmatmul.mubr.bf16.gmra.mxu0 %v90
    %v194 = vpop.f32.mrf.mxu0
    %v195 = vadd.f32 0.0, %v194
    %v196 = vpop.f32.mrf.mxu0
    %v197 = vpop.f32.mrf.mxu0
    %v198 = vadd.f32 0.0, %v197
    %v199 = vpop.f32.mrf.mxu0
    %200 = vmatprep.mubr.bf16.mxu0 0
    %201 = vmatmul.mubr.bf16.gmra.mxu0 %v93
    %v202 = vpop.f32.mrf.mxu0
    %v203 = vadd.f32 0.0, %v202
    %v204 = vpop.f32.mrf.mxu0
    %v205 = vpop.f32.mrf.mxu0
    %v206 = vpop.f32.mrf.mxu0
    %207 = vdwg.mxu0
    %s208 = scalar_lea.vmem [#allocation2], 32
    %v209 = vld [vmem:[%s208] sm:$0xf]
    %v210 = vld [vmem:[%s208 + $0x4] sm:$0xf]
    %v211 = vld [vmem:[%s208 + $0x8] sm:$0xf]
    %v212 = vld [vmem:[%s208 + $0xc] sm:$0xf]
    %v217 = vunpack.c.l.b16 %v209
    %v218 = vunpack.c.l.b16 %v210
    %v219 = vunpack.c.l.b16 %v211
    %v220 = vunpack.c.l.b16 %v212
    %v221 = vpack.c.b16 %v218, %v217
    %v222 = vpack.c.b16 %v220, %v219
    %225 = vmatprep.subr.bf16.mxu0 0
    %226 = vmatpush1.bf16.msra.mxu0 0
    %227 = vmatprep.subr.bf16.mxu0 0
    %228 = vmatpush1.bf16.msra.mxu0 0
    %229 = vmatprep.subr.bf16.mxu0 0
    %230 = vmatpush1.bf16.msra.mxu0 0
    %231 = vmatprep.subr.bf16.mxu0 0
    %232 = vmatpush1.bf16.msra.mxu0 0
    %233 = vmatprep.subr.bf16.mxu0 0
    %234 = vmatpush1.bf16.msra.mxu0 0
    %235 = vmatprep.subr.bf16.mxu0 0
    %236 = vmatpush1.bf16.msra.mxu0 0
    %237 = vmatprep.subr.bf16.mxu0 0
    %238 = vmatpush1.bf16.msra.mxu0 %v222
    %239 = vmatprep.subr.bf16.mxu0 0
    %240 = vmatpush1.bf16.msra.mxu0 %v221
    %241 = vmatprep.subr.bf16.mxu0 0
    %242 = vmatpush2.bf16.msra.mxu0 0
    %243 = vmatprep.subr.bf16.mxu0 0
    %244 = vmatpush2.bf16.msra.mxu0 0
    %245 = vmatprep.subr.bf16.mxu0 0
    %246 = vmatpush2.bf16.msra.mxu0 0
    %247 = vmatprep.subr.bf16.mxu0 0
    %248 = vmatpush2.bf16.msra.mxu0 0
    %249 = vmatprep.subr.bf16.mxu0 0
    %250 = vmatpush2.bf16.msra.mxu0 0
    %251 = vmatprep.subr.bf16.mxu0 0
    %252 = vmatpush2.bf16.msra.mxu0 0
    %253 = vmatprep.subr.bf16.mxu0 0
    %254 = vmatpush2.bf16.msra.mxu0 0
    %255 = vmatprep.subr.bf16.mxu0 0
    %256 = vmatpush2.bf16.msra.mxu0 0
    %257 = vmatprep.mubr.bf16.mxu0 0
    %258 = vmatmul.mubr.bf16.gmra.mxu0 %v90
    %v259 = vpop.f32.mrf.mxu0
    %v260 = vadd.f32 0.0, %v259
    %v261 = vpop.f32.mrf.mxu0
    %v262 = vpop.f32.mrf.mxu0
    %v263 = vadd.f32 0.0, %v262
    %v264 = vpop.f32.mrf.mxu0
    %265 = vmatprep.mubr.bf16.mxu0 0
    %266 = vmatmul.mubr.bf16.gmra.mxu0 %v93
    %v267 = vpop.f32.mrf.mxu0
    %v268 = vadd.f32 0.0, %v267
    %v269 = vpop.f32.mrf.mxu0
    %v270 = vpop.f32.mrf.mxu0
    %v271 = vpop.f32.mrf.mxu0
    %272 = vdwg.mxu0
    %v274 = vsel %vm88, %v130, 0
    %v277 = vsel %vm88, %v133, 0
    %v280 = vsel %vm88, %v138, 0
    %v283 = vsel %vm88, %v195, 0
    %v286 = vsel %vm88, %v198, 0
    %v289 = vsel %vm88, %v203, 0
    %291 = vmatprep.subr.mxu0 0.0
    %292 = vmatpush1.xpose.msra.mxu0 0.0
    %293 = vmatprep.subr.mxu0 0.0
    %294 = vmatpush1.xpose.msra.mxu0 0.0
    %295 = vmatprep.subr.mxu0 0.0
    %296 = vmatpush1.xpose.msra.mxu0 0.0
    %297 = vmatprep.subr.mxu0 0.0
    %298 = vmatpush1.xpose.msra.mxu0 0.0
    %299 = vmatprep.subr.mxu0 0.0
    %300 = vmatpush1.xpose.msra.mxu0 0.0
    %301 = vmatprep.subr.mxu0 0.0
    %302 = vmatpush1.xpose.msra.mxu0 0.0
    %303 = vmatprep.subr.mxu0 0.0
    %304 = vmatpush1.xpose.msra.mxu0 0.0
    %305 = vmatprep.subr.mxu0 0.0
    %306 = vmatpush1.xpose.msra.mxu0 0.0
    %307 = vmatprep.subr.mxu0 0.0
    %308 = vmatpush1.xpose.msra.mxu0 0.0
    %309 = vmatprep.subr.mxu0 0.0
    %310 = vmatpush1.xpose.msra.mxu0 0.0
    %311 = vmatprep.subr.mxu0 0.0
    %312 = vmatpush1.xpose.msra.mxu0 0.0
    %313 = vmatprep.subr.mxu0 0.0
    %314 = vmatpush1.xpose.msra.mxu0 0.0
    %315 = vmatprep.subr.mxu0 0.0
    %316 = vmatpush1.xpose.msra.mxu0 0.0
    %317 = vmatprep.subr.mxu0 0.0
    %318 = vmatpush1.xpose.msra.mxu0 %v289
    %319 = vmatprep.subr.mxu0 0.0
    %320 = vmatpush1.xpose.msra.mxu0 %v286
    %321 = vmatprep.subr.mxu0 0.0
    %322 = vmatpush1.xpose.msra.mxu0 %v283
    %323 = vmatprep.subr.mxu0 0.0
    %324 = vmatpush2.xpose.msra.mxu0 0.0
    %325 = vmatprep.subr.mxu0 0.0
    %326 = vmatpush2.xpose.msra.mxu0 0.0
    %327 = vmatprep.subr.mxu0 0.0
    %328 = vmatpush2.xpose.msra.mxu0 0.0
    %329 = vmatprep.subr.mxu0 0.0
    %330 = vmatpush2.xpose.msra.mxu0 0.0
    %331 = vmatprep.subr.mxu0 0.0
    %332 = vmatpush2.xpose.msra.mxu0 0.0
    %333 = vmatprep.subr.mxu0 0.0
    %334 = vmatpush2.xpose.msra.mxu0 0.0
    %335 = vmatprep.subr.mxu0 0.0
    %336 = vmatpush2.xpose.msra.mxu0 0.0
    %337 = vmatprep.subr.mxu0 0.0
    %338 = vmatpush2.xpose.msra.mxu0 0.0
    %339 = vmatprep.subr.mxu0 0.0
    %340 = vmatpush2.xpose.msra.mxu0 0.0
    %341 = vmatprep.subr.mxu0 0.0
    %342 = vmatpush2.xpose.msra.mxu0 0.0
    %343 = vmatprep.subr.mxu0 0.0
    %344 = vmatpush2.xpose.msra.mxu0 0.0
    %345 = vmatprep.subr.mxu0 0.0
    %346 = vmatpush2.xpose.msra.mxu0 0.0
    %347 = vmatprep.subr.mxu0 0.0
    %348 = vmatpush2.xpose.msra.mxu0 0.0
    %349 = vmatprep.subr.mxu0 0.0
    %350 = vmatpush2.xpose.msra.mxu0 0.0
    %351 = vmatprep.subr.mxu0 0.0
    %352 = vmatpush2.xpose.msra.mxu0 0.0
    %353 = vmatprep.subr.mxu0 0.0
    %354 = vmatpush2.xpose.msra.mxu0 0.0
    %355 = vmatprep.mubr.f32.mxu0 0.0
    %356 = vmatmul.mubr.f32.gmra.mxu0 %v274
    %v357 = vpop.f32.mrf.mxu0
    %v358 = vadd.f32 0.0, %v357
    %v359 = vpop.f32.mrf.mxu0
    %360 = vmatprep.mubr.f32.mxu0 0.0
    %361 = vmatmul.mubr.f32.gmra.mxu0 %v277
    %v362 = vpop.f32.mrf.mxu0
    %v363 = vadd.f32 0.0, %v362
    %v364 = vpop.f32.mrf.mxu0
    %365 = vmatprep.mubr.f32.mxu0 0.0
    %366 = vmatmul.mubr.f32.gmra.mxu0 %v280
    %v367 = vpop.f32.mrf.mxu0
    %v368 = vadd.f32 0.0, %v367
    %v369 = vpop.f32.mrf.mxu0
    %370 = vdwg.mxu0
    %v371 = vmul.f32 %v358, %v45
    %v372 = vmul.f32 %v363, %v46
    %v373 = vmul.f32 %v368, %v47
    %vm374 = vcmask 146432
    %v376 = vsel %vm374, %v371, 0
    %v379 = vsel %vm374, %v372, 0
    %v382 = vsel %vm374, %v373, 0
    %vm384 = vcmask 1041408
    %v386 = vsel %vm384, %v268, 0
    %388 = vmatprep.subr.mxu0 0.0
    %389 = vmatpush1.msra.mxu0 0.0
    %390 = vmatprep.subr.mxu0 0.0
    %391 = vmatpush1.msra.mxu0 0.0
    %392 = vmatprep.subr.mxu0 0.0
    %393 = vmatpush1.msra.mxu0 0.0
    %394 = vmatprep.subr.mxu0 0.0
    %395 = vmatpush1.msra.mxu0 0.0
    %396 = vmatprep.subr.mxu0 0.0
    %397 = vmatpush1.msra.mxu0 0.0
    %398 = vmatprep.subr.mxu0 0.0
    %399 = vmatpush1.msra.mxu0 0.0
    %400 = vmatprep.subr.mxu0 0.0
    %401 = vmatpush1.msra.mxu0 0.0
    %402 = vmatprep.subr.mxu0 0.0
    %403 = vmatpush1.msra.mxu0 0.0
    %404 = vmatprep.subr.mxu0 0.0
    %405 = vmatpush1.msra.mxu0 0.0
    %406 = vmatprep.subr.mxu0 0.0
    %407 = vmatpush1.msra.mxu0 0.0
    %408 = vmatprep.subr.mxu0 0.0
    %409 = vmatpush1.msra.mxu0 0.0
    %410 = vmatprep.subr.mxu0 0.0
    %411 = vmatpush1.msra.mxu0 0.0
    %412 = vmatprep.subr.mxu0 0.0
    %413 = vmatpush1.msra.mxu0 0.0
    %414 = vmatprep.subr.mxu0 0.0
    %415 = vmatpush1.msra.mxu0 %v386
    %416 = vmatprep.subr.mxu0 0.0
    %417 = vmatpush1.msra.mxu0 %v263
    %418 = vmatprep.subr.mxu0 0.0
    %419 = vmatpush1.msra.mxu0 %v260
    %420 = vmatprep.subr.mxu0 0.0
    %421 = vmatpush2.msra.mxu0 0.0
    %422 = vmatprep.subr.mxu0 0.0
    %423 = vmatpush2.msra.mxu0 0.0
    %424 = vmatprep.subr.mxu0 0.0
    %425 = vmatpush2.msra.mxu0 0.0
    %426 = vmatprep.subr.mxu0 0.0
    %427 = vmatpush2.msra.mxu0 0.0
    %428 = vmatprep.subr.mxu0 0.0
    %429 = vmatpush2.msra.mxu0 0.0
    %430 = vmatprep.subr.mxu0 0.0
    %431 = vmatpush2.msra.mxu0 0.0
    %432 = vmatprep.subr.mxu0 0.0
    %433 = vmatpush2.msra.mxu0 0.0
    %434 = vmatprep.subr.mxu0 0.0
    %435 = vmatpush2.msra.mxu0 0.0
    %436 = vmatprep.subr.mxu0 0.0
    %437 = vmatpush2.msra.mxu0 0.0
    %438 = vmatprep.subr.mxu0 0.0
    %439 = vmatpush2.msra.mxu0 0.0
    %440 = vmatprep.subr.mxu0 0.0
    %441 = vmatpush2.msra.mxu0 0.0
    %442 = vmatprep.subr.mxu0 0.0
    %443 = vmatpush2.msra.mxu0 0.0
    %444 = vmatprep.subr.mxu0 0.0
    %445 = vmatpush2.msra.mxu0 0.0
    %446 = vmatprep.subr.mxu0 0.0
    %447 = vmatpush2.msra.mxu0 0.0
    %448 = vmatprep.subr.mxu0 0.0
    %449 = vmatpush2.msra.mxu0 0.0
    %450 = vmatprep.subr.mxu0 0.0
    %451 = vmatpush2.msra.mxu0 0.0
    %452 = vmatprep.mubr.f32.mxu0 0.0
    %453 = vmatmul.mubr.f32.gmra.mxu0 %v376
    %v454 = vpop.f32.mrf.mxu0
    %v455 = vadd.f32 0.0, %v454
    %v456 = vpop.f32.mrf.mxu0
    %457 = vmatprep.mubr.f32.mxu0 0.0
    %458 = vmatmul.mubr.f32.gmra.mxu0 %v379
    %v459 = vpop.f32.mrf.mxu0
    %v460 = vadd.f32 0.0, %v459
    %v461 = vpop.f32.mrf.mxu0
    %462 = vmatprep.mubr.f32.mxu0 0.0
    %463 = vmatmul.mubr.f32.gmra.mxu0 %v382
    %v464 = vpop.f32.mrf.mxu0
    %v465 = vadd.f32 0.0, %v464
    %v466 = vpop.f32.mrf.mxu0
    %467 = vdwg.mxu0
    %v468 = vpack.c.bf16 %v460, %v455
    %v469 = vpack.c.bf16 %v465, %v465
    %s470 = scalar_lea.vmem [#allocation2], 48
    %v471 = vld [vmem:[%s470] sm:$0xf]
    %v472 = vld [vmem:[%s470 + $0x4] sm:$0xf]
    %v473 = vld [vmem:[%s470 + $0x8] sm:$0xf]
    %v474 = vld [vmem:[%s470 + $0xc] sm:$0xf]
    %s475 = scalar_lea.vmem [#allocation2], 64
    %v476 = vld [vmem:[%s475] sm:$0xf]
    %v477 = vld [vmem:[%s475 + $0x4] sm:$0xf]
    %v478 = vld [vmem:[%s475 + $0x8] sm:$0xf]
    %v479 = vld [vmem:[%s475 + $0xc] sm:$0xf]
    %v484 = vunpack.c.l.b16 %v476
    %v485 = vunpack.c.l.b16 %v477
    %v486 = vunpack.c.l.b16 %v478
    %v487 = vunpack.c.l.b16 %v479
    %v488 = vpack.c.b16 %v485, %v484
    %v489 = vpack.c.b16 %v487, %v486
    %492 = vmatprep.subr.bf16.mxu0 0
    %493 = vmatpush1.bf16.msra.mxu0 0
    %494 = vmatprep.subr.bf16.mxu0 0
    %495 = vmatpush1.bf16.msra.mxu0 0
    %496 = vmatprep.subr.bf16.mxu0 0
    %497 = vmatpush1.bf16.msra.mxu0 0
    %498 = vmatprep.subr.bf16.mxu0 0
    %499 = vmatpush1.bf16.msra.mxu0 0
    %500 = vmatprep.subr.bf16.mxu0 0
    %501 = vmatpush1.bf16.msra.mxu0 0
    %502 = vmatprep.subr.bf16.mxu0 0
    %503 = vmatpush1.bf16.msra.mxu0 0
    %504 = vmatprep.subr.bf16.mxu0 0
    %505 = vmatpush1.bf16.msra.mxu0 %v489
    %506 = vmatprep.subr.bf16.mxu0 0
    %507 = vmatpush1.bf16.msra.mxu0 %v488
    %508 = vmatprep.subr.bf16.mxu0 0
    %509 = vmatpush2.bf16.msra.mxu0 0
    %510 = vmatprep.subr.bf16.mxu0 0
    %511 = vmatpush2.bf16.msra.mxu0 0
    %512 = vmatprep.subr.bf16.mxu0 0
    %513 = vmatpush2.bf16.msra.mxu0 0
    %514 = vmatprep.subr.bf16.mxu0 0
    %515 = vmatpush2.bf16.msra.mxu0 0
    %516 = vmatprep.subr.bf16.mxu0 0
    %517 = vmatpush2.bf16.msra.mxu0 0
    %518 = vmatprep.subr.bf16.mxu0 0
    %519 = vmatpush2.bf16.msra.mxu0 0
    %520 = vmatprep.subr.bf16.mxu0 0
    %521 = vmatpush2.bf16.msra.mxu0 0
    %522 = vmatprep.subr.bf16.mxu0 0
    %523 = vmatpush2.bf16.msra.mxu0 0
    %524 = vmatprep.mubr.bf16.mxu0 0
    %525 = vmatmul.mubr.bf16.gmra.mxu0 %v90
    %v526 = vpop.f32.mrf.mxu0
    %v527 = vadd.f32 0.0, %v526
    %v528 = vpop.f32.mrf.mxu0
    %v529 = vpop.f32.mrf.mxu0
    %v530 = vadd.f32 0.0, %v529
    %v531 = vpop.f32.mrf.mxu0
    %532 = vmatprep.mubr.bf16.mxu0 0
    %533 = vmatmul.mubr.bf16.gmra.mxu0 %v93
    %v534 = vpop.f32.mrf.mxu0
    %v535 = vadd.f32 0.0, %v534
    %v536 = vpop.f32.mrf.mxu0
    %v537 = vpop.f32.mrf.mxu0
    %v538 = vpop.f32.mrf.mxu0
    %539 = vdwg.mxu0
    %s540 = scalar_lea.vmem [#allocation2], 80
    %v541 = vld [vmem:[%s540] sm:$0xf]
    %v542 = vld [vmem:[%s540 + $0x4] sm:$0xf]
    %v543 = vld [vmem:[%s540 + $0x8] sm:$0xf]
    %v544 = vld [vmem:[%s540 + $0xc] sm:$0xf]
    %v549 = vunpack.c.l.b16 %v541
    %v550 = vunpack.c.l.b16 %v542
    %v551 = vunpack.c.l.b16 %v543
    %v552 = vunpack.c.l.b16 %v544
    %v553 = vpack.c.b16 %v550, %v549
    %v554 = vpack.c.b16 %v552, %v551
    %557 = vmatprep.subr.bf16.mxu0 0
    %558 = vmatpush1.bf16.msra.mxu0 0
    %559 = vmatprep.subr.bf16.mxu0 0
    %560 = vmatpush1.bf16.msra.mxu0 0
    %561 = vmatprep.subr.bf16.mxu0 0
    %562 = vmatpush1.bf16.msra.mxu0 0
    %563 = vmatprep.subr.bf16.mxu0 0
    %564 = vmatpush1.bf16.msra.mxu0 0
    %565 = vmatprep.subr.bf16.mxu0 0
    %566 = vmatpush1.bf16.msra.mxu0 0
    %567 = vmatprep.subr.bf16.mxu0 0
    %568 = vmatpush1.bf16.msra.mxu0 0
    %569 = vmatprep.subr.bf16.mxu0 0
    %570 = vmatpush1.bf16.msra.mxu0 %v554
    %571 = vmatprep.subr.bf16.mxu0 0
    %572 = vmatpush1.bf16.msra.mxu0 %v553
    %573 = vmatprep.subr.bf16.mxu0 0
    %574 = vmatpush2.bf16.msra.mxu0 0
    %575 = vmatprep.subr.bf16.mxu0 0
    %576 = vmatpush2.bf16.msra.mxu0 0
    %577 = vmatprep.subr.bf16.mxu0 0
    %578 = vmatpush2.bf16.msra.mxu0 0
    %579 = vmatprep.subr.bf16.mxu0 0
    %580 = vmatpush2.bf16.msra.mxu0 0
    %581 = vmatprep.subr.bf16.mxu0 0
    %582 = vmatpush2.bf16.msra.mxu0 0
    %583 = vmatprep.subr.bf16.mxu0 0
    %584 = vmatpush2.bf16.msra.mxu0 0
    %585 = vmatprep.subr.bf16.mxu0 0
    %586 = vmatpush2.bf16.msra.mxu0 0
    %587 = vmatprep.subr.bf16.mxu0 0
    %588 = vmatpush2.bf16.msra.mxu0 0
    %589 = vmatprep.mubr.bf16.mxu0 0
    %590 = vmatmul.mubr.bf16.gmra.mxu0 %v90
    %v591 = vpop.f32.mrf.mxu0
    %v592 = vadd.f32 0.0, %v591
    %v593 = vpop.f32.mrf.mxu0
    %v594 = vpop.f32.mrf.mxu0
    %v595 = vadd.f32 0.0, %v594
    %v596 = vpop.f32.mrf.mxu0
    %597 = vmatprep.mubr.bf16.mxu0 0
    %598 = vmatmul.mubr.bf16.gmra.mxu0 %v93
    %v599 = vpop.f32.mrf.mxu0
    %v600 = vadd.f32 0.0, %v599
    %v601 = vpop.f32.mrf.mxu0
    %v602 = vpop.f32.mrf.mxu0
    %v603 = vpop.f32.mrf.mxu0
    %604 = vdwg.mxu0
    %s605 = scalar_lea.vmem [#allocation2], 96
    %v606 = vld [vmem:[%s605] sm:$0xf]
    %v607 = vld [vmem:[%s605 + $0x4] sm:$0xf]
    %v608 = vld [vmem:[%s605 + $0x8] sm:$0xf]
    %v609 = vld [vmem:[%s605 + $0xc] sm:$0xf]
    %v614 = vunpack.c.l.b16 %v606
    %v615 = vunpack.c.l.b16 %v607
    %v616 = vunpack.c.l.b16 %v608
    %v617 = vunpack.c.l.b16 %v609
    %v618 = vpack.c.b16 %v615, %v614
    %v619 = vpack.c.b16 %v617, %v616
    %622 = vmatprep.subr.bf16.mxu0 0
    %623 = vmatpush1.bf16.msra.mxu0 0
    %624 = vmatprep.subr.bf16.mxu0 0
    %625 = vmatpush1.bf16.msra.mxu0 0
    %626 = vmatprep.subr.bf16.mxu0 0
    %627 = vmatpush1.bf16.msra.mxu0 0
    %628 = vmatprep.subr.bf16.mxu0 0
    %629 = vmatpush1.bf16.msra.mxu0 0
    %630 = vmatprep.subr.bf16.mxu0 0
    %631 = vmatpush1.bf16.msra.mxu0 0
    %632 = vmatprep.subr.bf16.mxu0 0
    %633 = vmatpush1.bf16.msra.mxu0 0
    %634 = vmatprep.subr.bf16.mxu0 0
    %635 = vmatpush1.bf16.msra.mxu0 %v619
    %636 = vmatprep.subr.bf16.mxu0 0
    %637 = vmatpush1.bf16.msra.mxu0 %v618
    %638 = vmatprep.subr.bf16.mxu0 0
    %639 = vmatpush2.bf16.msra.mxu0 0
    %640 = vmatprep.subr.bf16.mxu0 0
    %641 = vmatpush2.bf16.msra.mxu0 0
    %642 = vmatprep.subr.bf16.mxu0 0
    %643 = vmatpush2.bf16.msra.mxu0 0
    %644 = vmatprep.subr.bf16.mxu0 0
    %645 = vmatpush2.bf16.msra.mxu0 0
    %646 = vmatprep.subr.bf16.mxu0 0
    %647 = vmatpush2.bf16.msra.mxu0 0
    %648 = vmatprep.subr.bf16.mxu0 0
    %649 = vmatpush2.bf16.msra.mxu0 0
    %650 = vmatprep.subr.bf16.mxu0 0
    %651 = vmatpush2.bf16.msra.mxu0 0
    %652 = vmatprep.subr.bf16.mxu0 0
    %653 = vmatpush2.bf16.msra.mxu0 0
    %654 = vmatprep.mubr.bf16.mxu0 0
    %655 = vmatmul.mubr.bf16.gmra.mxu0 %v90
    %v656 = vpop.f32.mrf.mxu0
    %v657 = vadd.f32 0.0, %v656
    %v658 = vpop.f32.mrf.mxu0
    %v659 = vpop.f32.mrf.mxu0
    %v660 = vadd.f32 0.0, %v659
    %v661 = vpop.f32.mrf.mxu0
    %662 = vmatprep.mubr.bf16.mxu0 0
    %663 = vmatmul.mubr.bf16.gmra.mxu0 %v93
    %v664 = vpop.f32.mrf.mxu0
    %v665 = vadd.f32 0.0, %v664
    %v666 = vpop.f32.mrf.mxu0
    %v667 = vpop.f32.mrf.mxu0
    %v668 = vpop.f32.mrf.mxu0
    %669 = vdwg.mxu0
    %v671 = vsel %vm88, %v527, 0
    %v674 = vsel %vm88, %v530, 0
    %v677 = vsel %vm88, %v535, 0
    %v680 = vsel %vm88, %v592, 0
    %v683 = vsel %vm88, %v595, 0
    %v686 = vsel %vm88, %v600, 0
    %688 = vmatprep.subr.mxu0 0.0
    %689 = vmatpush1.xpose.msra.mxu0 0.0
    %690 = vmatprep.subr.mxu0 0.0
    %691 = vmatpush1.xpose.msra.mxu0 0.0
    %692 = vmatprep.subr.mxu0 0.0
    %693 = vmatpush1.xpose.msra.mxu0 0.0
    %694 = vmatprep.subr.mxu0 0.0
    %695 = vmatpush1.xpose.msra.mxu0 0.0
    %696 = vmatprep.subr.mxu0 0.0
    %697 = vmatpush1.xpose.msra.mxu0 0.0
    %698 = vmatprep.subr.mxu0 0.0
    %699 = vmatpush1.xpose.msra.mxu0 0.0
    %700 = vmatprep.subr.mxu0 0.0
    %701 = vmatpush1.xpose.msra.mxu0 0.0
    %702 = vmatprep.subr.mxu0 0.0
    %703 = vmatpush1.xpose.msra.mxu0 0.0
    %704 = vmatprep.subr.mxu0 0.0
    %705 = vmatpush1.xpose.msra.mxu0 0.0
    %706 = vmatprep.subr.mxu0 0.0
    %707 = vmatpush1.xpose.msra.mxu0 0.0
    %708 = vmatprep.subr.mxu0 0.0
    %709 = vmatpush1.xpose.msra.mxu0 0.0
    %710 = vmatprep.subr.mxu0 0.0
    %711 = vmatpush1.xpose.msra.mxu0 0.0
    %712 = vmatprep.subr.mxu0 0.0
    %713 = vmatpush1.xpose.msra.mxu0 0.0
    %714 = vmatprep.subr.mxu0 0.0
    %715 = vmatpush1.xpose.msra.mxu0 %v686
    %716 = vmatprep.subr.mxu0 0.0
    %717 = vmatpush1.xpose.msra.mxu0 %v683
    %718 = vmatprep.subr.mxu0 0.0
    %719 = vmatpush1.xpose.msra.mxu0 %v680
    %720 = vmatprep.subr.mxu0 0.0
    %721 = vmatpush2.xpose.msra.mxu0 0.0
    %722 = vmatprep.subr.mxu0 0.0
    %723 = vmatpush2.xpose.msra.mxu0 0.0
    %724 = vmatprep.subr.mxu0 0.0
    %725 = vmatpush2.xpose.msra.mxu0 0.0
    %726 = vmatprep.subr.mxu0 0.0
    %727 = vmatpush2.xpose.msra.mxu0 0.0
    %728 = vmatprep.subr.mxu0 0.0
    %729 = vmatpush2.xpose.msra.mxu0 0.0
    %730 = vmatprep.subr.mxu0 0.0
    %731 = vmatpush2.xpose.msra.mxu0 0.0
    %732 = vmatprep.subr.mxu0 0.0
    %733 = vmatpush2.xpose.msra.mxu0 0.0
    %734 = vmatprep.subr.mxu0 0.0
    %735 = vmatpush2.xpose.msra.mxu0 0.0
    %736 = vmatprep.subr.mxu0 0.0
    %737 = vmatpush2.xpose.msra.mxu0 0.0
    %738 = vmatprep.subr.mxu0 0.0
    %739 = vmatpush2.xpose.msra.mxu0 0.0
    %740 = vmatprep.subr.mxu0 0.0
    %741 = vmatpush2.xpose.msra.mxu0 0.0
    %742 = vmatprep.subr.mxu0 0.0
    %743 = vmatpush2.xpose.msra.mxu0 0.0
    %744 = vmatprep.subr.mxu0 0.0
    %745 = vmatpush2.xpose.msra.mxu0 0.0
    %746 = vmatprep.subr.mxu0 0.0
    %747 = vmatpush2.xpose.msra.mxu0 0.0
    %748 = vmatprep.subr.mxu0 0.0
    %749 = vmatpush2.xpose.msra.mxu0 0.0
    %750 = vmatprep.subr.mxu0 0.0
    %751 = vmatpush2.xpose.msra.mxu0 0.0
    %752 = vmatprep.mubr.f32.mxu0 0.0
    %753 = vmatmul.mubr.f32.gmra.mxu0 %v671
    %v754 = vpop.f32.mrf.mxu0
    %v755 = vadd.f32 0.0, %v754
    %v756 = vpop.f32.mrf.mxu0
    %757 = vmatprep.mubr.f32.mxu0 0.0
    %758 = vmatmul.mubr.f32.gmra.mxu0 %v674
    %v759 = vpop.f32.mrf.mxu0
    %v760 = vadd.f32 0.0, %v759
    %v761 = vpop.f32.mrf.mxu0
    %762 = vmatprep.mubr.f32.mxu0 0.0
    %763 = vmatmul.mubr.f32.gmra.mxu0 %v677
    %v764 = vpop.f32.mrf.mxu0
    %v765 = vadd.f32 0.0, %v764
    %v766 = vpop.f32.mrf.mxu0
    %767 = vdwg.mxu0
    %v768 = vmul.f32 %v755, %v45
    %v769 = vmul.f32 %v760, %v46
    %v770 = vmul.f32 %v765, %v47
    %v772 = vsel %vm374, %v768, 0
    %v775 = vsel %vm374, %v769, 0
    %v778 = vsel %vm374, %v770, 0
    %v781 = vsel %vm384, %v665, 0
    %783 = vmatprep.subr.mxu0 0.0
    %784 = vmatpush1.msra.mxu0 0.0
    %785 = vmatprep.subr.mxu0 0.0
    %786 = vmatpush1.msra.mxu0 0.0
    %787 = vmatprep.subr.mxu0 0.0
    %788 = vmatpush1.msra.mxu0 0.0
    %789 = vmatprep.subr.mxu0 0.0
    %790 = vmatpush1.msra.mxu0 0.0
    %791 = vmatprep.subr.mxu0 0.0
    %792 = vmatpush1.msra.mxu0 0.0
    %793 = vmatprep.subr.mxu0 0.0
    %794 = vmatpush1.msra.mxu0 0.0
    %795 = vmatprep.subr.mxu0 0.0
    %796 = vmatpush1.msra.mxu0 0.0
    %797 = vmatprep.subr.mxu0 0.0
    %798 = vmatpush1.msra.mxu0 0.0
    %799 = vmatprep.subr.mxu0 0.0
    %800 = vmatpush1.msra.mxu0 0.0
    %801 = vmatprep.subr.mxu0 0.0
    %802 = vmatpush1.msra.mxu0 0.0
    %803 = vmatprep.subr.mxu0 0.0
    %804 = vmatpush1.msra.mxu0 0.0
    %805 = vmatprep.subr.mxu0 0.0
    %806 = vmatpush1.msra.mxu0 0.0
    %807 = vmatprep.subr.mxu0 0.0
    %808 = vmatpush1.msra.mxu0 0.0
    %809 = vmatprep.subr.mxu0 0.0
    %810 = vmatpush1.msra.mxu0 %v781
    %811 = vmatprep.subr.mxu0 0.0
    %812 = vmatpush1.msra.mxu0 %v660
    %813 = vmatprep.subr.mxu0 0.0
    %814 = vmatpush1.msra.mxu0 %v657
    %815 = vmatprep.subr.mxu0 0.0
    %816 = vmatpush2.msra.mxu0 0.0
    %817 = vmatprep.subr.mxu0 0.0
    %818 = vmatpush2.msra.mxu0 0.0
    %819 = vmatprep.subr.mxu0 0.0
    %820 = vmatpush2.msra.mxu0 0.0
    %821 = vmatprep.subr.mxu0 0.0
    %822 = vmatpush2.msra.mxu0 0.0
    %823 = vmatprep.subr.mxu0 0.0
    %824 = vmatpush2.msra.mxu0 0.0
    %825 = vmatprep.subr.mxu0 0.0
    %826 = vmatpush2.msra.mxu0 0.0
    %827 = vmatprep.subr.mxu0 0.0
    %828 = vmatpush2.msra.mxu0 0.0
    %829 = vmatprep.subr.mxu0 0.0
    %830 = vmatpush2.msra.mxu0 0.0
    %831 = vmatprep.subr.mxu0 0.0
    %832 = vmatpush2.msra.mxu0 0.0
    %833 = vmatprep.subr.mxu0 0.0
    %834 = vmatpush2.msra.mxu0 0.0
    %835 = vmatprep.subr.mxu0 0.0
    %836 = vmatpush2.msra.mxu0 0.0
    %837 = vmatprep.subr.mxu0 0.0
    %838 = vmatpush2.msra.mxu0 0.0
    %839 = vmatprep.subr.mxu0 0.0
    %840 = vmatpush2.msra.mxu0 0.0
    %841 = vmatprep.subr.mxu0 0.0
    %842 = vmatpush2.msra.mxu0 0.0
    %843 = vmatprep.subr.mxu0 0.0
    %844 = vmatpush2.msra.mxu0 0.0
    %845 = vmatprep.subr.mxu0 0.0
    %846 = vmatpush2.msra.mxu0 0.0
    %847 = vmatprep.mubr.f32.mxu0 0.0
    %848 = vmatmul.mubr.f32.gmra.mxu0 %v772
    %v849 = vpop.f32.mrf.mxu0
    %v850 = vadd.f32 0.0, %v849
    %v851 = vpop.f32.mrf.mxu0
    %852 = vmatprep.mubr.f32.mxu0 0.0
    %853 = vmatmul.mubr.f32.gmra.mxu0 %v775
    %v854 = vpop.f32.mrf.mxu0
    %v855 = vadd.f32 0.0, %v854
    %v856 = vpop.f32.mrf.mxu0
    %857 = vmatprep.mubr.f32.mxu0 0.0
    %858 = vmatmul.mubr.f32.gmra.mxu0 %v778
    %v859 = vpop.f32.mrf.mxu0
    %v860 = vadd.f32 0.0, %v859
    %v861 = vpop.f32.mrf.mxu0
    %862 = vdwg.mxu0
    %v863 = vpack.c.bf16 %v855, %v850
    %v864 = vpack.c.bf16 %v860, %v860
    %s865 = scalar_lea.vmem [#allocation2], 112
    %v866 = vld [vmem:[%s865] sm:$0xf]
    %v867 = vld [vmem:[%s865 + $0x4] sm:$0xf]
    %v868 = vld [vmem:[%s865 + $0x8] sm:$0xf]
    %v869 = vld [vmem:[%s865 + $0xc] sm:$0xf]
    %v874 = vunpack.c.l.b16 %v866
    %v875 = vunpack.c.l.b16 %v867
    %v876 = vunpack.c.l.b16 %v868
    %v877 = vunpack.c.l.b16 %v869
    %v878 = vpack.c.b16 %v875, %v874
    %v879 = vpack.c.b16 %v877, %v876
    %v883 = vsel %vm88, %v863, 0
    %v886 = vsel %vm88, %v864, 0
    %888 = vmatprep.subr.bf16.mxu0 0
    %889 = vmatpush1.bf16.msra.mxu0 0
    %890 = vmatprep.subr.bf16.mxu0 0
    %891 = vmatpush1.bf16.msra.mxu0 0
    %892 = vmatprep.subr.bf16.mxu0 0
    %893 = vmatpush1.bf16.msra.mxu0 0
    %894 = vmatprep.subr.bf16.mxu0 0
    %895 = vmatpush1.bf16.msra.mxu0 0
    %896 = vmatprep.subr.bf16.mxu0 0
    %897 = vmatpush1.bf16.msra.mxu0 0
    %898 = vmatprep.subr.bf16.mxu0 0
    %899 = vmatpush1.bf16.msra.mxu0 0
    %900 = vmatprep.subr.bf16.mxu0 0
    %901 = vmatpush1.bf16.msra.mxu0 %v879
    %902 = vmatprep.subr.bf16.mxu0 0
    %903 = vmatpush1.bf16.msra.mxu0 %v878
    %904 = vmatprep.subr.bf16.mxu0 0
    %905 = vmatpush2.bf16.msra.mxu0 0
    %906 = vmatprep.subr.bf16.mxu0 0
    %907 = vmatpush2.bf16.msra.mxu0 0
    %908 = vmatprep.subr.bf16.mxu0 0
    %909 = vmatpush2.bf16.msra.mxu0 0
    %910 = vmatprep.subr.bf16.mxu0 0
    %911 = vmatpush2.bf16.msra.mxu0 0
    %912 = vmatprep.subr.bf16.mxu0 0
    %913 = vmatpush2.bf16.msra.mxu0 0
    %914 = vmatprep.subr.bf16.mxu0 0
    %915 = vmatpush2.bf16.msra.mxu0 0
    %916 = vmatprep.subr.bf16.mxu0 0
    %917 = vmatpush2.bf16.msra.mxu0 0
    %918 = vmatprep.subr.bf16.mxu0 0
    %919 = vmatpush2.bf16.msra.mxu0 0
    %920 = vmatprep.mubr.bf16.mxu0 0
    %921 = vmatmul.mubr.bf16.gmra.mxu0 %v883
    %v922 = vpop.f32.mrf.mxu0
    %v923 = vadd.f32 0.0, %v922
    %v924 = vpop.f32.mrf.mxu0
    %v925 = vpop.f32.mrf.mxu0
    %v926 = vadd.f32 0.0, %v925
    %v927 = vpop.f32.mrf.mxu0
    %928 = vmatprep.mubr.bf16.mxu0 0
    %929 = vmatmul.mubr.bf16.gmra.mxu0 %v886
    %v930 = vpop.f32.mrf.mxu0
    %v931 = vadd.f32 0.0, %v930
    %v932 = vpop.f32.mrf.mxu0
    %v933 = vpop.f32.mrf.mxu0
    %v934 = vpop.f32.mrf.mxu0
    %935 = vdwg.mxu0
    %v940 = vunpack.c.l.b16 %v471
    %v941 = vunpack.c.l.b16 %v472
    %v942 = vunpack.c.l.b16 %v473
    %v943 = vunpack.c.l.b16 %v474
    %v944 = vpack.c.b16 %v941, %v940
    %v945 = vpack.c.b16 %v943, %v942
    %v949 = vsel %vm88, %v468, 0
    %v952 = vsel %vm88, %v469, 0
    %954 = vmatprep.subr.bf16.mxu0 0
    %955 = vmatpush1.bf16.msra.mxu0 0
    %956 = vmatprep.subr.bf16.mxu0 0
    %957 = vmatpush1.bf16.msra.mxu0 0
    %958 = vmatprep.subr.bf16.mxu0 0
    %959 = vmatpush1.bf16.msra.mxu0 0
    %960 = vmatprep.subr.bf16.mxu0 0
    %961 = vmatpush1.bf16.msra.mxu0 0
    %962 = vmatprep.subr.bf16.mxu0 0
    %963 = vmatpush1.bf16.msra.mxu0 0
    %964 = vmatprep.subr.bf16.mxu0 0
    %965 = vmatpush1.bf16.msra.mxu0 0
    %966 = vmatprep.subr.bf16.mxu0 0
    %967 = vmatpush1.bf16.msra.mxu0 %v945
    %968 = vmatprep.subr.bf16.mxu0 0
    %969 = vmatpush1.bf16.msra.mxu0 %v944
    %970 = vmatprep.subr.bf16.mxu0 0
    %971 = vmatpush2.bf16.msra.mxu0 0
    %972 = vmatprep.subr.bf16.mxu0 0
    %973 = vmatpush2.bf16.msra.mxu0 0
    %974 = vmatprep.subr.bf16.mxu0 0
    %975 = vmatpush2.bf16.msra.mxu0 0
    %976 = vmatprep.subr.bf16.mxu0 0
    %977 = vmatpush2.bf16.msra.mxu0 0
    %978 = vmatprep.subr.bf16.mxu0 0
    %979 = vmatpush2.bf16.msra.mxu0 0
    %980 = vmatprep.subr.bf16.mxu0 0
    %981 = vmatpush2.bf16.msra.mxu0 0
    %982 = vmatprep.subr.bf16.mxu0 0
    %983 = vmatpush2.bf16.msra.mxu0 0
    %984 = vmatprep.subr.bf16.mxu0 0
    %985 = vmatpush2.bf16.msra.mxu0 0
    %986 = vmatprep.mubr.bf16.mxu0 0
    %987 = vmatmul.mubr.bf16.gmra.mxu0 %v949
    %v988 = vpop.f32.mrf.mxu0
    %v989 = vadd.f32 %v923, %v988
    %v990 = vpop.f32.mrf.mxu0
    %v991 = vpop.f32.mrf.mxu0
    %v992 = vadd.f32 %v926, %v991
    %v993 = vpop.f32.mrf.mxu0
    %994 = vmatprep.mubr.bf16.mxu0 0
    %995 = vmatmul.mubr.bf16.gmra.mxu0 %v952
    %v996 = vpop.f32.mrf.mxu0
    %v997 = vadd.f32 %v931, %v996
    %v998 = vpop.f32.mrf.mxu0
    %v999 = vpop.f32.mrf.mxu0
    %v1000 = vpop.f32.mrf.mxu0
    %1001 = vdwg.mxu0
    %s1002 = scalar_lea.vmem [#allocation2], 128
    %v1003 = vld [vmem:[%s1002] sm:$0xf]
    %v1004 = vld [vmem:[%s1002 + $0x4] sm:$0xf]
    %v1005 = vld [vmem:[%s1002 + $0x8] sm:$0xf]
    %v1006 = vld [vmem:[%s1002 + $0xc] sm:$0xf]
    %v1011 = vunpack.c.l.b16 %v1003
    %v1012 = vunpack.c.l.b16 %v1004
    %v1013 = vunpack.c.l.b16 %v1005
    %v1014 = vunpack.c.l.b16 %v1006
    %v1015 = vpack.c.b16 %v1012, %v1011
    %v1016 = vpack.c.b16 %v1014, %v1013
    %1019 = vmatprep.subr.bf16.mxu0 0
    %1020 = vmatpush1.bf16.msra.mxu0 0
    %1021 = vmatprep.subr.bf16.mxu0 0
    %1022 = vmatpush1.bf16.msra.mxu0 0
    %1023 = vmatprep.subr.bf16.mxu0 0
    %1024 = vmatpush1.bf16.msra.mxu0 0
    %1025 = vmatprep.subr.bf16.mxu0 0
    %1026 = vmatpush1.bf16.msra.mxu0 0
    %1027 = vmatprep.subr.bf16.mxu0 0
    %1028 = vmatpush1.bf16.msra.mxu0 0
    %1029 = vmatprep.subr.bf16.mxu0 0
    %1030 = vmatpush1.bf16.msra.mxu0 0
    %1031 = vmatprep.subr.bf16.mxu0 0
    %1032 = vmatpush1.bf16.msra.mxu0 %v1016
    %1033 = vmatprep.subr.bf16.mxu0 0
    %1034 = vmatpush1.bf16.msra.mxu0 %v1015
    %1035 = vmatprep.subr.bf16.mxu0 0
    %1036 = vmatpush2.bf16.msra.mxu0 0
    %1037 = vmatprep.subr.bf16.mxu0 0
    %1038 = vmatpush2.bf16.msra.mxu0 0
    %1039 = vmatprep.subr.bf16.mxu0 0
    %1040 = vmatpush2.bf16.msra.mxu0 0
    %1041 = vmatprep.subr.bf16.mxu0 0
    %1042 = vmatpush2.bf16.msra.mxu0 0
    %1043 = vmatprep.subr.bf16.mxu0 0
    %1044 = vmatpush2.bf16.msra.mxu0 0
    %1045 = vmatprep.subr.bf16.mxu0 0
    %1046 = vmatpush2.bf16.msra.mxu0 0
    %1047 = vmatprep.subr.bf16.mxu0 0
    %1048 = vmatpush2.bf16.msra.mxu0 0
    %1049 = vmatprep.subr.bf16.mxu0 0
    %1050 = vmatpush2.bf16.msra.mxu0 0
    %1051 = vmatprep.mubr.bf16.mxu0 0
    %1052 = vmatmul.mubr.bf16.gmra.mxu0 %v90
    %v1053 = vpop.f32.mrf.mxu0
    %v1054 = vadd.f32 0.0, %v1053
    %v1055 = vpop.f32.mrf.mxu0
    %v1056 = vpop.f32.mrf.mxu0
    %v1057 = vadd.f32 0.0, %v1056
    %v1058 = vpop.f32.mrf.mxu0
    %1059 = vmatprep.mubr.bf16.mxu0 0
    %1060 = vmatmul.mubr.bf16.gmra.mxu0 %v93
    %v1061 = vpop.f32.mrf.mxu0
    %v1062 = vadd.f32 0.0, %v1061
    %v1063 = vpop.f32.mrf.mxu0
    %v1064 = vpop.f32.mrf.mxu0
    %v1065 = vpop.f32.mrf.mxu0
    %1066 = vdwg.mxu0
    %s1067 = scalar_lea.vmem [#allocation2], 144
    %v1068 = vld [vmem:[%s1067] sm:$0xf]
    %v1069 = vld [vmem:[%s1067 + $0x4] sm:$0xf]
    %v1070 = vld [vmem:[%s1067 + $0x8] sm:$0xf]
    %v1071 = vld [vmem:[%s1067 + $0xc] sm:$0xf]
    %v1076 = vunpack.c.l.b16 %v1068
    %v1077 = vunpack.c.l.b16 %v1069
    %v1078 = vunpack.c.l.b16 %v1070
    %v1079 = vunpack.c.l.b16 %v1071
    %v1080 = vpack.c.b16 %v1077, %v1076
    %v1081 = vpack.c.b16 %v1079, %v1078
    %1084 = vmatprep.subr.bf16.mxu0 0
    %1085 = vmatpush1.bf16.msra.mxu0 0
    %1086 = vmatprep.subr.bf16.mxu0 0
    %1087 = vmatpush1.bf16.msra.mxu0 0
    %1088 = vmatprep.subr.bf16.mxu0 0
    %1089 = vmatpush1.bf16.msra.mxu0 0
    %1090 = vmatprep.subr.bf16.mxu0 0
    %1091 = vmatpush1.bf16.msra.mxu0 0
    %1092 = vmatprep.subr.bf16.mxu0 0
    %1093 = vmatpush1.bf16.msra.mxu0 0
    %1094 = vmatprep.subr.bf16.mxu0 0
    %1095 = vmatpush1.bf16.msra.mxu0 0
    %1096 = vmatprep.subr.bf16.mxu0 0
    %1097 = vmatpush1.bf16.msra.mxu0 %v1081
    %1098 = vmatprep.subr.bf16.mxu0 0
    %1099 = vmatpush1.bf16.msra.mxu0 %v1080
    %1100 = vmatprep.subr.bf16.mxu0 0
    %1101 = vmatpush2.bf16.msra.mxu0 0
    %1102 = vmatprep.subr.bf16.mxu0 0
    %1103 = vmatpush2.bf16.msra.mxu0 0
    %1104 = vmatprep.subr.bf16.mxu0 0
    %1105 = vmatpush2.bf16.msra.mxu0 0
    %1106 = vmatprep.subr.bf16.mxu0 0
    %1107 = vmatpush2.bf16.msra.mxu0 0
    %1108 = vmatprep.subr.bf16.mxu0 0
    %1109 = vmatpush2.bf16.msra.mxu0 0
    %1110 = vmatprep.subr.bf16.mxu0 0
    %1111 = vmatpush2.bf16.msra.mxu0 0
    %1112 = vmatprep.subr.bf16.mxu0 0
    %1113 = vmatpush2.bf16.msra.mxu0 0
    %1114 = vmatprep.subr.bf16.mxu0 0
    %1115 = vmatpush2.bf16.msra.mxu0 0
    %1116 = vmatprep.mubr.bf16.mxu0 0
    %1117 = vmatmul.mubr.bf16.gmra.mxu0 %v90
    %v1118 = vpop.f32.mrf.mxu0
    %v1119 = vadd.f32 0.0, %v1118
    %v1120 = vpop.f32.mrf.mxu0
    %v1121 = vpop.f32.mrf.mxu0
    %v1122 = vadd.f32 0.0, %v1121
    %v1123 = vpop.f32.mrf.mxu0
    %1124 = vmatprep.mubr.bf16.mxu0 0
    %1125 = vmatmul.mubr.bf16.gmra.mxu0 %v93
    %v1126 = vpop.f32.mrf.mxu0
    %v1127 = vadd.f32 0.0, %v1126
    %v1128 = vpop.f32.mrf.mxu0
    %v1129 = vpop.f32.mrf.mxu0
    %v1130 = vpop.f32.mrf.mxu0
    %1131 = vdwg.mxu0
    %s1132 = scalar_lea.vmem [#allocation2], 160
    %v1133 = vld [vmem:[%s1132] sm:$0xf]
    %v1134 = vld [vmem:[%s1132 + $0x4] sm:$0xf]
    %v1135 = vld [vmem:[%s1132 + $0x8] sm:$0xf]
    %v1136 = vld [vmem:[%s1132 + $0xc] sm:$0xf]
    %v1141 = vunpack.c.l.b16 %v1133
    %v1142 = vunpack.c.l.b16 %v1134
    %v1143 = vunpack.c.l.b16 %v1135
    %v1144 = vunpack.c.l.b16 %v1136
    %v1145 = vpack.c.b16 %v1142, %v1141
    %v1146 = vpack.c.b16 %v1144, %v1143
    %1149 = vmatprep.subr.bf16.mxu0 0
    %1150 = vmatpush1.bf16.msra.mxu0 0
    %1151 = vmatprep.subr.bf16.mxu0 0
    %1152 = vmatpush1.bf16.msra.mxu0 0
    %1153 = vmatprep.subr.bf16.mxu0 0
    %1154 = vmatpush1.bf16.msra.mxu0 0
    %1155 = vmatprep.subr.bf16.mxu0 0
    %1156 = vmatpush1.bf16.msra.mxu0 0
    %1157 = vmatprep.subr.bf16.mxu0 0
    %1158 = vmatpush1.bf16.msra.mxu0 0
    %1159 = vmatprep.subr.bf16.mxu0 0
    %1160 = vmatpush1.bf16.msra.mxu0 0
    %1161 = vmatprep.subr.bf16.mxu0 0
    %1162 = vmatpush1.bf16.msra.mxu0 %v1146
    %1163 = vmatprep.subr.bf16.mxu0 0
    %1164 = vmatpush1.bf16.msra.mxu0 %v1145
    %1165 = vmatprep.subr.bf16.mxu0 0
    %1166 = vmatpush2.bf16.msra.mxu0 0
    %1167 = vmatprep.subr.bf16.mxu0 0
    %1168 = vmatpush2.bf16.msra.mxu0 0
    %1169 = vmatprep.subr.bf16.mxu0 0
    %1170 = vmatpush2.bf16.msra.mxu0 0
    %1171 = vmatprep.subr.bf16.mxu0 0
    %1172 = vmatpush2.bf16.msra.mxu0 0
    %1173 = vmatprep.subr.bf16.mxu0 0
    %1174 = vmatpush2.bf16.msra.mxu0 0
    %1175 = vmatprep.subr.bf16.mxu0 0
    %1176 = vmatpush2.bf16.msra.mxu0 0
    %1177 = vmatprep.subr.bf16.mxu0 0
    %1178 = vmatpush2.bf16.msra.mxu0 0
    %1179 = vmatprep.subr.bf16.mxu0 0
    %1180 = vmatpush2.bf16.msra.mxu0 0
    %1181 = vmatprep.mubr.bf16.mxu0 0
    %1182 = vmatmul.mubr.bf16.gmra.mxu0 %v90
    %v1183 = vpop.f32.mrf.mxu0
    %v1184 = vadd.f32 0.0, %v1183
    %v1185 = vpop.f32.mrf.mxu0
    %v1186 = vpop.f32.mrf.mxu0
    %v1187 = vadd.f32 0.0, %v1186
    %v1188 = vpop.f32.mrf.mxu0
    %1189 = vmatprep.mubr.bf16.mxu0 0
    %1190 = vmatmul.mubr.bf16.gmra.mxu0 %v93
    %v1191 = vpop.f32.mrf.mxu0
    %v1192 = vadd.f32 0.0, %v1191
    %v1193 = vpop.f32.mrf.mxu0
    %v1194 = vpop.f32.mrf.mxu0
    %v1195 = vpop.f32.mrf.mxu0
    %1196 = vdwg.mxu0
    %v1198 = vsel %vm88, %v1054, 0
    %v1201 = vsel %vm88, %v1057, 0
    %v1204 = vsel %vm88, %v1062, 0
    %v1207 = vsel %vm88, %v1119, 0
    %v1210 = vsel %vm88, %v1122, 0
    %v1213 = vsel %vm88, %v1127, 0
    %1215 = vmatprep.subr.mxu0 0.0
    %1216 = vmatpush1.xpose.msra.mxu0 0.0
    %1217 = vmatprep.subr.mxu0 0.0
    %1218 = vmatpush1.xpose.msra.mxu0 0.0
    %1219 = vmatprep.subr.mxu0 0.0
    %1220 = vmatpush1.xpose.msra.mxu0 0.0
    %1221 = vmatprep.subr.mxu0 0.0
    %1222 = vmatpush1.xpose.msra.mxu0 0.0
    %1223 = vmatprep.subr.mxu0 0.0
    %1224 = vmatpush1.xpose.msra.mxu0 0.0
    %1225 = vmatprep.subr.mxu0 0.0
    %1226 = vmatpush1.xpose.msra.mxu0 0.0
    %1227 = vmatprep.subr.mxu0 0.0
    %1228 = vmatpush1.xpose.msra.mxu0 0.0
    %1229 = vmatprep.subr.mxu0 0.0
    %1230 = vmatpush1.xpose.msra.mxu0 0.0
    %1231 = vmatprep.subr.mxu0 0.0
    %1232 = vmatpush1.xpose.msra.mxu0 0.0
    %1233 = vmatprep.subr.mxu0 0.0
    %1234 = vmatpush1.xpose.msra.mxu0 0.0
    %1235 = vmatprep.subr.mxu0 0.0
    %1236 = vmatpush1.xpose.msra.mxu0 0.0
    %1237 = vmatprep.subr.mxu0 0.0
    %1238 = vmatpush1.xpose.msra.mxu0 0.0
    %1239 = vmatprep.subr.mxu0 0.0
    %1240 = vmatpush1.xpose.msra.mxu0 0.0
    %1241 = vmatprep.subr.mxu0 0.0
    %1242 = vmatpush1.xpose.msra.mxu0 %v1213
    %1243 = vmatprep.subr.mxu0 0.0
    %1244 = vmatpush1.xpose.msra.mxu0 %v1210
    %1245 = vmatprep.subr.mxu0 0.0
    %1246 = vmatpush1.xpose.msra.mxu0 %v1207
    %1247 = vmatprep.subr.mxu0 0.0
    %1248 = vmatpush2.xpose.msra.mxu0 0.0
    %1249 = vmatprep.subr.mxu0 0.0
    %1250 = vmatpush2.xpose.msra.mxu0 0.0
    %1251 = vmatprep.subr.mxu0 0.0
    %1252 = vmatpush2.xpose.msra.mxu0 0.0
    %1253 = vmatprep.subr.mxu0 0.0
    %1254 = vmatpush2.xpose.msra.mxu0 0.0
    %1255 = vmatprep.subr.mxu0 0.0
    %1256 = vmatpush2.xpose.msra.mxu0 0.0
    %1257 = vmatprep.subr.mxu0 0.0
    %1258 = vmatpush2.xpose.msra.mxu0 0.0
    %1259 = vmatprep.subr.mxu0 0.0
    %1260 = vmatpush2.xpose.msra.mxu0 0.0
    %1261 = vmatprep.subr.mxu0 0.0
    %1262 = vmatpush2.xpose.msra.mxu0 0.0
    %1263 = vmatprep.subr.mxu0 0.0
    %1264 = vmatpush2.xpose.msra.mxu0 0.0
    %1265 = vmatprep.subr.mxu0 0.0
    %1266 = vmatpush2.xpose.msra.mxu0 0.0
    %1267 = vmatprep.subr.mxu0 0.0
    %1268 = vmatpush2.xpose.msra.mxu0 0.0
    %1269 = vmatprep.subr.mxu0 0.0
    %1270 = vmatpush2.xpose.msra.mxu0 0.0
    %1271 = vmatprep.subr.mxu0 0.0
    %1272 = vmatpush2.xpose.msra.mxu0 0.0
    %1273 = vmatprep.subr.mxu0 0.0
    %1274 = vmatpush2.xpose.msra.mxu0 0.0
    %1275 = vmatprep.subr.mxu0 0.0
    %1276 = vmatpush2.xpose.msra.mxu0 0.0
    %1277 = vmatprep.subr.mxu0 0.0
    %1278 = vmatpush2.xpose.msra.mxu0 0.0
    %1279 = vmatprep.mubr.f32.mxu0 0.0
    %1280 = vmatmul.mubr.f32.gmra.mxu0 %v1198
    %v1281 = vpop.f32.mrf.mxu0
    %v1282 = vadd.f32 0.0, %v1281
    %v1283 = vpop.f32.mrf.mxu0
    %1284 = vmatprep.mubr.f32.mxu0 0.0
    %1285 = vmatmul.mubr.f32.gmra.mxu0 %v1201
    %v1286 = vpop.f32.mrf.mxu0
    %v1287 = vadd.f32 0.0, %v1286
    %v1288 = vpop.f32.mrf.mxu0
    %1289 = vmatprep.mubr.f32.mxu0 0.0
    %1290 = vmatmul.mubr.f32.gmra.mxu0 %v1204
    %v1291 = vpop.f32.mrf.mxu0
    %v1292 = vadd.f32 0.0, %v1291
    %v1293 = vpop.f32.mrf.mxu0
    %1294 = vdwg.mxu0
    %v1295 = vmul.f32 %v1282, %v45
    %v1296 = vmul.f32 %v1287, %v46
    %v1297 = vmul.f32 %v1292, %v47
    %v1299 = vsel %vm374, %v1295, 0
    %v1302 = vsel %vm374, %v1296, 0
    %v1305 = vsel %vm374, %v1297, 0
    %v1308 = vsel %vm384, %v1192, 0
    %1310 = vmatprep.subr.mxu0 0.0
    %1311 = vmatpush1.msra.mxu0 0.0
    %1312 = vmatprep.subr.mxu0 0.0
    %1313 = vmatpush1.msra.mxu0 0.0
    %1314 = vmatprep.subr.mxu0 0.0
    %1315 = vmatpush1.msra.mxu0 0.0
    %1316 = vmatprep.subr.mxu0 0.0
    %1317 = vmatpush1.msra.mxu0 0.0
    %1318 = vmatprep.subr.mxu0 0.0
    %1319 = vmatpush1.msra.mxu0 0.0
    %1320 = vmatprep.subr.mxu0 0.0
    %1321 = vmatpush1.msra.mxu0 0.0
    %1322 = vmatprep.subr.mxu0 0.0
    %1323 = vmatpush1.msra.mxu0 0.0
    %1324 = vmatprep.subr.mxu0 0.0
    %1325 = vmatpush1.msra.mxu0 0.0
    %1326 = vmatprep.subr.mxu0 0.0
    %1327 = vmatpush1.msra.mxu0 0.0
    %1328 = vmatprep.subr.mxu0 0.0
    %1329 = vmatpush1.msra.mxu0 0.0
    %1330 = vmatprep.subr.mxu0 0.0
    %1331 = vmatpush1.msra.mxu0 0.0
    %1332 = vmatprep.subr.mxu0 0.0
    %1333 = vmatpush1.msra.mxu0 0.0
    %1334 = vmatprep.subr.mxu0 0.0
    %1335 = vmatpush1.msra.mxu0 0.0
    %1336 = vmatprep.subr.mxu0 0.0
    %1337 = vmatpush1.msra.mxu0 %v1308
    %1338 = vmatprep.subr.mxu0 0.0
    %1339 = vmatpush1.msra.mxu0 %v1187
    %1340 = vmatprep.subr.mxu0 0.0
    %1341 = vmatpush1.msra.mxu0 %v1184
    %1342 = vmatprep.subr.mxu0 0.0
    %1343 = vmatpush2.msra.mxu0 0.0
    %1344 = vmatprep.subr.mxu0 0.0
    %1345 = vmatpush2.msra.mxu0 0.0
    %1346 = vmatprep.subr.mxu0 0.0
    %1347 = vmatpush2.msra.mxu0 0.0
    %1348 = vmatprep.subr.mxu0 0.0
    %1349 = vmatpush2.msra.mxu0 0.0
    %1350 = vmatprep.subr.mxu0 0.0
    %1351 = vmatpush2.msra.mxu0 0.0
    %1352 = vmatprep.subr.mxu0 0.0
    %1353 = vmatpush2.msra.mxu0 0.0
    %1354 = vmatprep.subr.mxu0 0.0
    %1355 = vmatpush2.msra.mxu0 0.0
    %1356 = vmatprep.subr.mxu0 0.0
    %1357 = vmatpush2.msra.mxu0 0.0
    %1358 = vmatprep.subr.mxu0 0.0
    %1359 = vmatpush2.msra.mxu0 0.0
    %1360 = vmatprep.subr.mxu0 0.0
    %1361 = vmatpush2.msra.mxu0 0.0
    %1362 = vmatprep.subr.mxu0 0.0
    %1363 = vmatpush2.msra.mxu0 0.0
    %1364 = vmatprep.subr.mxu0 0.0
    %1365 = vmatpush2.msra.mxu0 0.0
    %1366 = vmatprep.subr.mxu0 0.0
    %1367 = vmatpush2.msra.mxu0 0.0
    %1368 = vmatprep.subr.mxu0 0.0
    %1369 = vmatpush2.msra.mxu0 0.0
    %1370 = vmatprep.subr.mxu0 0.0
    %1371 = vmatpush2.msra.mxu0 0.0
    %1372 = vmatprep.subr.mxu0 0.0
    %1373 = vmatpush2.msra.mxu0 0.0
    %1374 = vmatprep.mubr.f32.mxu0 0.0
    %1375 = vmatmul.mubr.f32.gmra.mxu0 %v1299
    %v1376 = vpop.f32.mrf.mxu0
    %v1377 = vadd.f32 0.0, %v1376
    %v1378 = vpop.f32.mrf.mxu0
    %1379 = vmatprep.mubr.f32.mxu0 0.0
    %1380 = vmatmul.mubr.f32.gmra.mxu0 %v1302
    %v1381 = vpop.f32.mrf.mxu0
    %v1382 = vadd.f32 0.0, %v1381
    %v1383 = vpop.f32.mrf.mxu0
    %1384 = vmatprep.mubr.f32.mxu0 0.0
    %1385 = vmatmul.mubr.f32.gmra.mxu0 %v1305
    %v1386 = vpop.f32.mrf.mxu0
    %v1387 = vadd.f32 0.0, %v1386
    %v1388 = vpop.f32.mrf.mxu0
    %1389 = vdwg.mxu0
    %v1390 = vpack.c.bf16 %v1382, %v1377
    %v1391 = vpack.c.bf16 %v1387, %v1387
    %s1392 = scalar_lea.vmem [#allocation2], 176
    %v1393 = vld [vmem:[%s1392] sm:$0xf]
    %v1394 = vld [vmem:[%s1392 + $0x4] sm:$0xf]
    %v1395 = vld [vmem:[%s1392 + $0x8] sm:$0xf]
    %v1396 = vld [vmem:[%s1392 + $0xc] sm:$0xf]
    %v1401 = vunpack.c.l.b16 %v1393
    %v1402 = vunpack.c.l.b16 %v1394
    %v1403 = vunpack.c.l.b16 %v1395
    %v1404 = vunpack.c.l.b16 %v1396
    %v1405 = vpack.c.b16 %v1402, %v1401
    %v1406 = vpack.c.b16 %v1404, %v1403
    %v1410 = vsel %vm88, %v1390, 0
    %v1413 = vsel %vm88, %v1391, 0
    %1415 = vmatprep.subr.bf16.mxu0 0
    %1416 = vmatpush1.bf16.msra.mxu0 0
    %1417 = vmatprep.subr.bf16.mxu0 0
    %1418 = vmatpush1.bf16.msra.mxu0 0
    %1419 = vmatprep.subr.bf16.mxu0 0
    %1420 = vmatpush1.bf16.msra.mxu0 0
    %1421 = vmatprep.subr.bf16.mxu0 0
    %1422 = vmatpush1.bf16.msra.mxu0 0
    %1423 = vmatprep.subr.bf16.mxu0 0
    %1424 = vmatpush1.bf16.msra.mxu0 0
    %1425 = vmatprep.subr.bf16.mxu0 0
    %1426 = vmatpush1.bf16.msra.mxu0 0
    %1427 = vmatprep.subr.bf16.mxu0 0
    %1428 = vmatpush1.bf16.msra.mxu0 %v1406
    %1429 = vmatprep.subr.bf16.mxu0 0
    %1430 = vmatpush1.bf16.msra.mxu0 %v1405
    %1431 = vmatprep.subr.bf16.mxu0 0
    %1432 = vmatpush2.bf16.msra.mxu0 0
    %1433 = vmatprep.subr.bf16.mxu0 0
    %1434 = vmatpush2.bf16.msra.mxu0 0
    %1435 = vmatprep.subr.bf16.mxu0 0
    %1436 = vmatpush2.bf16.msra.mxu0 0
    %1437 = vmatprep.subr.bf16.mxu0 0
    %1438 = vmatpush2.bf16.msra.mxu0 0
    %1439 = vmatprep.subr.bf16.mxu0 0
    %1440 = vmatpush2.bf16.msra.mxu0 0
    %1441 = vmatprep.subr.bf16.mxu0 0
    %1442 = vmatpush2.bf16.msra.mxu0 0
    %1443 = vmatprep.subr.bf16.mxu0 0
    %1444 = vmatpush2.bf16.msra.mxu0 0
    %1445 = vmatprep.subr.bf16.mxu0 0
    %1446 = vmatpush2.bf16.msra.mxu0 0
    %1447 = vmatprep.mubr.bf16.mxu0 0
    %1448 = vmatmul.mubr.bf16.gmra.mxu0 %v1410
    %v1449 = vpop.f32.mrf.mxu0
    %v1450 = vadd.f32 0.0, %v1449
    %v1451 = vpop.f32.mrf.mxu0
    %v1452 = vpop.f32.mrf.mxu0
    %v1453 = vadd.f32 0.0, %v1452
    %v1454 = vpop.f32.mrf.mxu0
    %1455 = vmatprep.mubr.bf16.mxu0 0
    %1456 = vmatmul.mubr.bf16.gmra.mxu0 %v1413
    %v1457 = vpop.f32.mrf.mxu0
    %v1458 = vadd.f32 0.0, %v1457
    %v1459 = vpop.f32.mrf.mxu0
    %v1460 = vpop.f32.mrf.mxu0
    %v1461 = vpop.f32.mrf.mxu0
    %1462 = vdwg.mxu0
    %v1463 = vadd.f32 %v989, %v1450
    %v1464 = vadd.f32 %v992, %v1453
    %v1465 = vadd.f32 %v997, %v1458
    %s1466 = scalar_lea.vmem [#allocation2], 192
    %v1467 = vld [vmem:[%s1466] sm:$0xf]
    %v1468 = vld [vmem:[%s1466 + $0x4] sm:$0xf]
    %v1469 = vld [vmem:[%s1466 + $0x8] sm:$0xf]
    %v1470 = vld [vmem:[%s1466 + $0xc] sm:$0xf]
    %v1475 = vunpack.c.l.b16 %v1467
    %v1476 = vunpack.c.l.b16 %v1468
    %v1477 = vunpack.c.l.b16 %v1469
    %v1478 = vunpack.c.l.b16 %v1470
    %v1479 = vpack.c.b16 %v1476, %v1475
    %v1480 = vpack.c.b16 %v1478, %v1477
    %1483 = vmatprep.subr.bf16.mxu0 0
    %1484 = vmatpush1.bf16.msra.mxu0 0
    %1485 = vmatprep.subr.bf16.mxu0 0
    %1486 = vmatpush1.bf16.msra.mxu0 0
    %1487 = vmatprep.subr.bf16.mxu0 0
    %1488 = vmatpush1.bf16.msra.mxu0 0
    %1489 = vmatprep.subr.bf16.mxu0 0
    %1490 = vmatpush1.bf16.msra.mxu0 0
    %1491 = vmatprep.subr.bf16.mxu0 0
    %1492 = vmatpush1.bf16.msra.mxu0 0
    %1493 = vmatprep.subr.bf16.mxu0 0
    %1494 = vmatpush1.bf16.msra.mxu0 0
    %1495 = vmatprep.subr.bf16.mxu0 0
    %1496 = vmatpush1.bf16.msra.mxu0 %v1480
    %1497 = vmatprep.subr.bf16.mxu0 0
    %1498 = vmatpush1.bf16.msra.mxu0 %v1479
    %1499 = vmatprep.subr.bf16.mxu0 0
    %1500 = vmatpush2.bf16.msra.mxu0 0
    %1501 = vmatprep.subr.bf16.mxu0 0
    %1502 = vmatpush2.bf16.msra.mxu0 0
    %1503 = vmatprep.subr.bf16.mxu0 0
    %1504 = vmatpush2.bf16.msra.mxu0 0
    %1505 = vmatprep.subr.bf16.mxu0 0
    %1506 = vmatpush2.bf16.msra.mxu0 0
    %1507 = vmatprep.subr.bf16.mxu0 0
    %1508 = vmatpush2.bf16.msra.mxu0 0
    %1509 = vmatprep.subr.bf16.mxu0 0
    %1510 = vmatpush2.bf16.msra.mxu0 0
    %1511 = vmatprep.subr.bf16.mxu0 0
    %1512 = vmatpush2.bf16.msra.mxu0 0
    %1513 = vmatprep.subr.bf16.mxu0 0
    %1514 = vmatpush2.bf16.msra.mxu0 0
    %1515 = vmatprep.mubr.bf16.mxu0 0
    %1516 = vmatmul.mubr.bf16.gmra.mxu0 %v90
    %v1517 = vpop.f32.mrf.mxu0
    %v1518 = vadd.f32 0.0, %v1517
    %v1519 = vpop.f32.mrf.mxu0
    %v1520 = vpop.f32.mrf.mxu0
    %v1521 = vadd.f32 0.0, %v1520
    %v1522 = vpop.f32.mrf.mxu0
    %1523 = vmatprep.mubr.bf16.mxu0 0
    %1524 = vmatmul.mubr.bf16.gmra.mxu0 %v93
    %v1525 = vpop.f32.mrf.mxu0
    %v1526 = vadd.f32 0.0, %v1525
    %v1527 = vpop.f32.mrf.mxu0
    %v1528 = vpop.f32.mrf.mxu0
    %v1529 = vpop.f32.mrf.mxu0
    %1530 = vdwg.mxu0
    %s1531 = scalar_lea.vmem [#allocation2], 208
    %v1532 = vld [vmem:[%s1531] sm:$0xf]
    %v1533 = vld [vmem:[%s1531 + $0x4] sm:$0xf]
    %v1534 = vld [vmem:[%s1531 + $0x8] sm:$0xf]
    %v1535 = vld [vmem:[%s1531 + $0xc] sm:$0xf]
    %v1540 = vunpack.c.l.b16 %v1532
    %v1541 = vunpack.c.l.b16 %v1533
    %v1542 = vunpack.c.l.b16 %v1534
    %v1543 = vunpack.c.l.b16 %v1535
    %v1544 = vpack.c.b16 %v1541, %v1540
    %v1545 = vpack.c.b16 %v1543, %v1542
    %1548 = vmatprep.subr.bf16.mxu0 0
    %1549 = vmatpush1.bf16.msra.mxu0 0
    %1550 = vmatprep.subr.bf16.mxu0 0
    %1551 = vmatpush1.bf16.msra.mxu0 0
    %1552 = vmatprep.subr.bf16.mxu0 0
    %1553 = vmatpush1.bf16.msra.mxu0 0
    %1554 = vmatprep.subr.bf16.mxu0 0
    %1555 = vmatpush1.bf16.msra.mxu0 0
    %1556 = vmatprep.subr.bf16.mxu0 0
    %1557 = vmatpush1.bf16.msra.mxu0 0
    %1558 = vmatprep.subr.bf16.mxu0 0
    %1559 = vmatpush1.bf16.msra.mxu0 0
    %1560 = vmatprep.subr.bf16.mxu0 0
    %1561 = vmatpush1.bf16.msra.mxu0 %v1545
    %1562 = vmatprep.subr.bf16.mxu0 0
    %1563 = vmatpush1.bf16.msra.mxu0 %v1544
    %1564 = vmatprep.subr.bf16.mxu0 0
    %1565 = vmatpush2.bf16.msra.mxu0 0
    %1566 = vmatprep.subr.bf16.mxu0 0
    %1567 = vmatpush2.bf16.msra.mxu0 0
    %1568 = vmatprep.subr.bf16.mxu0 0
    %1569 = vmatpush2.bf16.msra.mxu0 0
    %1570 = vmatprep.subr.bf16.mxu0 0
    %1571 = vmatpush2.bf16.msra.mxu0 0
    %1572 = vmatprep.subr.bf16.mxu0 0
    %1573 = vmatpush2.bf16.msra.mxu0 0
    %1574 = vmatprep.subr.bf16.mxu0 0
    %1575 = vmatpush2.bf16.msra.mxu0 0
    %1576 = vmatprep.subr.bf16.mxu0 0
    %1577 = vmatpush2.bf16.msra.mxu0 0
    %1578 = vmatprep.subr.bf16.mxu0 0
    %1579 = vmatpush2.bf16.msra.mxu0 0
    %1580 = vmatprep.mubr.bf16.mxu0 0
    %1581 = vmatmul.mubr.bf16.gmra.mxu0 %v90
    %v1582 = vpop.f32.mrf.mxu0
    %v1583 = vadd.f32 0.0, %v1582
    %v1584 = vpop.f32.mrf.mxu0
    %v1585 = vpop.f32.mrf.mxu0
    %v1586 = vadd.f32 0.0, %v1585
    %v1587 = vpop.f32.mrf.mxu0
    %1588 = vmatprep.mubr.bf16.mxu0 0
    %1589 = vmatmul.mubr.bf16.gmra.mxu0 %v93
    %v1590 = vpop.f32.mrf.mxu0
    %v1591 = vadd.f32 0.0, %v1590
    %v1592 = vpop.f32.mrf.mxu0
    %v1593 = vpop.f32.mrf.mxu0
    %v1594 = vpop.f32.mrf.mxu0
    %1595 = vdwg.mxu0
    %s1596 = scalar_lea.vmem [#allocation2], 224
    %v1597 = vld [vmem:[%s1596] sm:$0xf]
    %v1598 = vld [vmem:[%s1596 + $0x4] sm:$0xf]
    %v1599 = vld [vmem:[%s1596 + $0x8] sm:$0xf]
    %v1600 = vld [vmem:[%s1596 + $0xc] sm:$0xf]
    %v1605 = vunpack.c.l.b16 %v1597
    %v1606 = vunpack.c.l.b16 %v1598
    %v1607 = vunpack.c.l.b16 %v1599
    %v1608 = vunpack.c.l.b16 %v1600
    %v1609 = vpack.c.b16 %v1606, %v1605
    %v1610 = vpack.c.b16 %v1608, %v1607
    %1613 = vmatprep.subr.bf16.mxu0 0
    %1614 = vmatpush1.bf16.msra.mxu0 0
    %1615 = vmatprep.subr.bf16.mxu0 0
    %1616 = vmatpush1.bf16.msra.mxu0 0
    %1617 = vmatprep.subr.bf16.mxu0 0
    %1618 = vmatpush1.bf16.msra.mxu0 0
    %1619 = vmatprep.subr.bf16.mxu0 0
    %1620 = vmatpush1.bf16.msra.mxu0 0
    %1621 = vmatprep.subr.bf16.mxu0 0
    %1622 = vmatpush1.bf16.msra.mxu0 0
    %1623 = vmatprep.subr.bf16.mxu0 0
    %1624 = vmatpush1.bf16.msra.mxu0 0
    %1625 = vmatprep.subr.bf16.mxu0 0
    %1626 = vmatpush1.bf16.msra.mxu0 %v1610
    %1627 = vmatprep.subr.bf16.mxu0 0
    %1628 = vmatpush1.bf16.msra.mxu0 %v1609
    %1629 = vmatprep.subr.bf16.mxu0 0
    %1630 = vmatpush2.bf16.msra.mxu0 0
    %1631 = vmatprep.subr.bf16.mxu0 0
    %1632 = vmatpush2.bf16.msra.mxu0 0
    %1633 = vmatprep.subr.bf16.mxu0 0
    %1634 = vmatpush2.bf16.msra.mxu0 0
    %1635 = vmatprep.subr.bf16.mxu0 0
    %1636 = vmatpush2.bf16.msra.mxu0 0
    %1637 = vmatprep.subr.bf16.mxu0 0
    %1638 = vmatpush2.bf16.msra.mxu0 0
    %1639 = vmatprep.subr.bf16.mxu0 0
    %1640 = vmatpush2.bf16.msra.mxu0 0
    %1641 = vmatprep.subr.bf16.mxu0 0
    %1642 = vmatpush2.bf16.msra.mxu0 0
    %1643 = vmatprep.subr.bf16.mxu0 0
    %1644 = vmatpush2.bf16.msra.mxu0 0
    %1645 = vmatprep.mubr.bf16.mxu0 0
    %1646 = vmatmul.mubr.bf16.gmra.mxu0 %v90
    %v1647 = vpop.f32.mrf.mxu0
    %v1648 = vadd.f32 0.0, %v1647
    %v1649 = vpop.f32.mrf.mxu0
    %v1650 = vpop.f32.mrf.mxu0
    %v1651 = vadd.f32 0.0, %v1650
    %v1652 = vpop.f32.mrf.mxu0
    %1653 = vmatprep.mubr.bf16.mxu0 0
    %1654 = vmatmul.mubr.bf16.gmra.mxu0 %v93
    %v1655 = vpop.f32.mrf.mxu0
    %v1656 = vadd.f32 0.0, %v1655
    %v1657 = vpop.f32.mrf.mxu0
    %v1658 = vpop.f32.mrf.mxu0
    %v1659 = vpop.f32.mrf.mxu0
    %1660 = vdwg.mxu0
    %v1662 = vsel %vm88, %v1518, 0
    %v1665 = vsel %vm88, %v1521, 0
    %v1668 = vsel %vm88, %v1526, 0
    %v1671 = vsel %vm88, %v1583, 0
    %v1674 = vsel %vm88, %v1586, 0
    %v1677 = vsel %vm88, %v1591, 0
    %1679 = vmatprep.subr.mxu0 0.0
    %1680 = vmatpush1.xpose.msra.mxu0 0.0
    %1681 = vmatprep.subr.mxu0 0.0
    %1682 = vmatpush1.xpose.msra.mxu0 0.0
    %1683 = vmatprep.subr.mxu0 0.0
    %1684 = vmatpush1.xpose.msra.mxu0 0.0
    %1685 = vmatprep.subr.mxu0 0.0
    %1686 = vmatpush1.xpose.msra.mxu0 0.0
    %1687 = vmatprep.subr.mxu0 0.0
    %1688 = vmatpush1.xpose.msra.mxu0 0.0
    %1689 = vmatprep.subr.mxu0 0.0
    %1690 = vmatpush1.xpose.msra.mxu0 0.0
    %1691 = vmatprep.subr.mxu0 0.0
    %1692 = vmatpush1.xpose.msra.mxu0 0.0
    %1693 = vmatprep.subr.mxu0 0.0
    %1694 = vmatpush1.xpose.msra.mxu0 0.0
    %1695 = vmatprep.subr.mxu0 0.0
    %1696 = vmatpush1.xpose.msra.mxu0 0.0
    %1697 = vmatprep.subr.mxu0 0.0
    %1698 = vmatpush1.xpose.msra.mxu0 0.0
    %1699 = vmatprep.subr.mxu0 0.0
    %1700 = vmatpush1.xpose.msra.mxu0 0.0
    %1701 = vmatprep.subr.mxu0 0.0
    %1702 = vmatpush1.xpose.msra.mxu0 0.0
    %1703 = vmatprep.subr.mxu0 0.0
    %1704 = vmatpush1.xpose.msra.mxu0 0.0
    %1705 = vmatprep.subr.mxu0 0.0
    %1706 = vmatpush1.xpose.msra.mxu0 %v1677
    %1707 = vmatprep.subr.mxu0 0.0
    %1708 = vmatpush1.xpose.msra.mxu0 %v1674
    %1709 = vmatprep.subr.mxu0 0.0
    %1710 = vmatpush1.xpose.msra.mxu0 %v1671
    %1711 = vmatprep.subr.mxu0 0.0
    %1712 = vmatpush2.xpose.msra.mxu0 0.0
    %1713 = vmatprep.subr.mxu0 0.0
    %1714 = vmatpush2.xpose.msra.mxu0 0.0
    %1715 = vmatprep.subr.mxu0 0.0
    %1716 = vmatpush2.xpose.msra.mxu0 0.0
    %1717 = vmatprep.subr.mxu0 0.0
    %1718 = vmatpush2.xpose.msra.mxu0 0.0
    %1719 = vmatprep.subr.mxu0 0.0
    %1720 = vmatpush2.xpose.msra.mxu0 0.0
    %1721 = vmatprep.subr.mxu0 0.0
    %1722 = vmatpush2.xpose.msra.mxu0 0.0
    %1723 = vmatprep.subr.mxu0 0.0
    %1724 = vmatpush2.xpose.msra.mxu0 0.0
    %1725 = vmatprep.subr.mxu0 0.0
    %1726 = vmatpush2.xpose.msra.mxu0 0.0
    %1727 = vmatprep.subr.mxu0 0.0
    %1728 = vmatpush2.xpose.msra.mxu0 0.0
    %1729 = vmatprep.subr.mxu0 0.0
    %1730 = vmatpush2.xpose.msra.mxu0 0.0
    %1731 = vmatprep.subr.mxu0 0.0
    %1732 = vmatpush2.xpose.msra.mxu0 0.0
    %1733 = vmatprep.subr.mxu0 0.0
    %1734 = vmatpush2.xpose.msra.mxu0 0.0
    %1735 = vmatprep.subr.mxu0 0.0
    %1736 = vmatpush2.xpose.msra.mxu0 0.0
    %1737 = vmatprep.subr.mxu0 0.0
    %1738 = vmatpush2.xpose.msra.mxu0 0.0
    %1739 = vmatprep.subr.mxu0 0.0
    %1740 = vmatpush2.xpose.msra.mxu0 0.0
    %1741 = vmatprep.subr.mxu0 0.0
    %1742 = vmatpush2.xpose.msra.mxu0 0.0
    %1743 = vmatprep.mubr.f32.mxu0 0.0
    %1744 = vmatmul.mubr.f32.gmra.mxu0 %v1662
    %v1745 = vpop.f32.mrf.mxu0
    %v1746 = vadd.f32 0.0, %v1745
    %v1747 = vpop.f32.mrf.mxu0
    %1748 = vmatprep.mubr.f32.mxu0 0.0
    %1749 = vmatmul.mubr.f32.gmra.mxu0 %v1665
    %v1750 = vpop.f32.mrf.mxu0
    %v1751 = vadd.f32 0.0, %v1750
    %v1752 = vpop.f32.mrf.mxu0
    %1753 = vmatprep.mubr.f32.mxu0 0.0
    %1754 = vmatmul.mubr.f32.gmra.mxu0 %v1668
    %v1755 = vpop.f32.mrf.mxu0
    %v1756 = vadd.f32 0.0, %v1755
    %v1757 = vpop.f32.mrf.mxu0
    %1758 = vdwg.mxu0
    %v1759 = vmul.f32 %v1746, %v45
    %v1760 = vmul.f32 %v1751, %v46
    %v1761 = vmul.f32 %v1756, %v47
    %v1763 = vsel %vm374, %v1759, 0
    %v1766 = vsel %vm374, %v1760, 0
    %v1769 = vsel %vm374, %v1761, 0
    %v1772 = vsel %vm384, %v1656, 0
    %1774 = vmatprep.subr.mxu0 0.0
    %1775 = vmatpush1.msra.mxu0 0.0
    %1776 = vmatprep.subr.mxu0 0.0
    %1777 = vmatpush1.msra.mxu0 0.0
    %1778 = vmatprep.subr.mxu0 0.0
    %1779 = vmatpush1.msra.mxu0 0.0
    %1780 = vmatprep.subr.mxu0 0.0
    %1781 = vmatpush1.msra.mxu0 0.0
    %1782 = vmatprep.subr.mxu0 0.0
    %1783 = vmatpush1.msra.mxu0 0.0
    %1784 = vmatprep.subr.mxu0 0.0
    %1785 = vmatpush1.msra.mxu0 0.0
    %1786 = vmatprep.subr.mxu0 0.0
    %1787 = vmatpush1.msra.mxu0 0.0
    %1788 = vmatprep.subr.mxu0 0.0
    %1789 = vmatpush1.msra.mxu0 0.0
    %1790 = vmatprep.subr.mxu0 0.0
    %1791 = vmatpush1.msra.mxu0 0.0
    %1792 = vmatprep.subr.mxu0 0.0
    %1793 = vmatpush1.msra.mxu0 0.0
    %1794 = vmatprep.subr.mxu0 0.0
    %1795 = vmatpush1.msra.mxu0 0.0
    %1796 = vmatprep.subr.mxu0 0.0
    %1797 = vmatpush1.msra.mxu0 0.0
    %1798 = vmatprep.subr.mxu0 0.0
    %1799 = vmatpush1.msra.mxu0 0.0
    %1800 = vmatprep.subr.mxu0 0.0
    %1801 = vmatpush1.msra.mxu0 %v1772
    %1802 = vmatprep.subr.mxu0 0.0
    %1803 = vmatpush1.msra.mxu0 %v1651
    %1804 = vmatprep.subr.mxu0 0.0
    %1805 = vmatpush1.msra.mxu0 %v1648
    %1806 = vmatprep.subr.mxu0 0.0
    %1807 = vmatpush2.msra.mxu0 0.0
    %1808 = vmatprep.subr.mxu0 0.0
    %1809 = vmatpush2.msra.mxu0 0.0
    %1810 = vmatprep.subr.mxu0 0.0
    %1811 = vmatpush2.msra.mxu0 0.0
    %1812 = vmatprep.subr.mxu0 0.0
    %1813 = vmatpush2.msra.mxu0 0.0
    %1814 = vmatprep.subr.mxu0 0.0
    %1815 = vmatpush2.msra.mxu0 0.0
    %1816 = vmatprep.subr.mxu0 0.0
    %1817 = vmatpush2.msra.mxu0 0.0
    %1818 = vmatprep.subr.mxu0 0.0
    %1819 = vmatpush2.msra.mxu0 0.0
    %1820 = vmatprep.subr.mxu0 0.0
    %1821 = vmatpush2.msra.mxu0 0.0
    %1822 = vmatprep.subr.mxu0 0.0
    %1823 = vmatpush2.msra.mxu0 0.0
    %1824 = vmatprep.subr.mxu0 0.0
    %1825 = vmatpush2.msra.mxu0 0.0
    %1826 = vmatprep.subr.mxu0 0.0
    %1827 = vmatpush2.msra.mxu0 0.0
    %1828 = vmatprep.subr.mxu0 0.0
    %1829 = vmatpush2.msra.mxu0 0.0
    %1830 = vmatprep.subr.mxu0 0.0
    %1831 = vmatpush2.msra.mxu0 0.0
    %1832 = vmatprep.subr.mxu0 0.0
    %1833 = vmatpush2.msra.mxu0 0.0
    %1834 = vmatprep.subr.mxu0 0.0
    %1835 = vmatpush2.msra.mxu0 0.0
    %1836 = vmatprep.subr.mxu0 0.0
    %1837 = vmatpush2.msra.mxu0 0.0
    %1838 = vmatprep.mubr.f32.mxu0 0.0
    %1839 = vmatmul.mubr.f32.gmra.mxu0 %v1763
    %v1840 = vpop.f32.mrf.mxu0
    %v1841 = vadd.f32 0.0, %v1840
    %v1842 = vpop.f32.mrf.mxu0
    %1843 = vmatprep.mubr.f32.mxu0 0.0
    %1844 = vmatmul.mubr.f32.gmra.mxu0 %v1766
    %v1845 = vpop.f32.mrf.mxu0
    %v1846 = vadd.f32 0.0, %v1845
    %v1847 = vpop.f32.mrf.mxu0
    %1848 = vmatprep.mubr.f32.mxu0 0.0
    %1849 = vmatmul.mubr.f32.gmra.mxu0 %v1769
    %v1850 = vpop.f32.mrf.mxu0
    %v1851 = vadd.f32 0.0, %v1850
    %v1852 = vpop.f32.mrf.mxu0
    %1853 = vdwg.mxu0
    %v1854 = vpack.c.bf16 %v1846, %v1841
    %v1855 = vpack.c.bf16 %v1851, %v1851
    %s1856 = scalar_lea.vmem [#allocation2], 240
    %v1857 = vld [vmem:[%s1856] sm:$0xf]
    %v1858 = vld [vmem:[%s1856 + $0x4] sm:$0xf]
    %v1859 = vld [vmem:[%s1856 + $0x8] sm:$0xf]
    %v1860 = vld [vmem:[%s1856 + $0xc] sm:$0xf]
    %v1865 = vunpack.c.l.b16 %v1857
    %v1866 = vunpack.c.l.b16 %v1858
    %v1867 = vunpack.c.l.b16 %v1859
    %v1868 = vunpack.c.l.b16 %v1860
    %v1869 = vpack.c.b16 %v1866, %v1865
    %v1870 = vpack.c.b16 %v1868, %v1867
    %v1874 = vsel %vm88, %v1854, 0
    %v1877 = vsel %vm88, %v1855, 0
    %1879 = vmatprep.subr.bf16.mxu0 0
    %1880 = vmatpush1.bf16.msra.mxu0 0
    %1881 = vmatprep.subr.bf16.mxu0 0
    %1882 = vmatpush1.bf16.msra.mxu0 0
    %1883 = vmatprep.subr.bf16.mxu0 0
    %1884 = vmatpush1.bf16.msra.mxu0 0
    %1885 = vmatprep.subr.bf16.mxu0 0
    %1886 = vmatpush1.bf16.msra.mxu0 0
    %1887 = vmatprep.subr.bf16.mxu0 0
    %1888 = vmatpush1.bf16.msra.mxu0 0
    %1889 = vmatprep.subr.bf16.mxu0 0
    %1890 = vmatpush1.bf16.msra.mxu0 0
    %1891 = vmatprep.subr.bf16.mxu0 0
    %1892 = vmatpush1.bf16.msra.mxu0 %v1870
    %1893 = vmatprep.subr.bf16.mxu0 0
    %1894 = vmatpush1.bf16.msra.mxu0 %v1869
    %1895 = vmatprep.subr.bf16.mxu0 0
    %1896 = vmatpush2.bf16.msra.mxu0 0
    %1897 = vmatprep.subr.bf16.mxu0 0
    %1898 = vmatpush2.bf16.msra.mxu0 0
    %1899 = vmatprep.subr.bf16.mxu0 0
    %1900 = vmatpush2.bf16.msra.mxu0 0
    %1901 = vmatprep.subr.bf16.mxu0 0
    %1902 = vmatpush2.bf16.msra.mxu0 0
    %1903 = vmatprep.subr.bf16.mxu0 0
    %1904 = vmatpush2.bf16.msra.mxu0 0
    %1905 = vmatprep.subr.bf16.mxu0 0
    %1906 = vmatpush2.bf16.msra.mxu0 0
    %1907 = vmatprep.subr.bf16.mxu0 0
    %1908 = vmatpush2.bf16.msra.mxu0 0
    %1909 = vmatprep.subr.bf16.mxu0 0
    %1910 = vmatpush2.bf16.msra.mxu0 0
    %1911 = vmatprep.mubr.bf16.mxu0 0
    %1912 = vmatmul.mubr.bf16.gmra.mxu0 %v1874
    %v1913 = vpop.f32.mrf.mxu0
    %v1914 = vadd.f32 0.0, %v1913
    %v1915 = vpop.f32.mrf.mxu0
    %v1916 = vpop.f32.mrf.mxu0
    %v1917 = vadd.f32 0.0, %v1916
    %v1918 = vpop.f32.mrf.mxu0
    %1919 = vmatprep.mubr.bf16.mxu0 0
    %1920 = vmatmul.mubr.bf16.gmra.mxu0 %v1877
    %v1921 = vpop.f32.mrf.mxu0
    %v1922 = vadd.f32 0.0, %v1921
    %v1923 = vpop.f32.mrf.mxu0
    %v1924 = vpop.f32.mrf.mxu0
    %v1925 = vpop.f32.mrf.mxu0
    %1926 = vdwg.mxu0
    %v1927 = vadd.f32 %v1463, %v1914
    %v1928 = vadd.f32 %v1464, %v1917
    %v1929 = vadd.f32 %v1465, %v1922
    %v1930 = vlaneseq
    %v1931 = vshrl.u32 %v1930, 7
    %v1932 = vsub.s32 0, %v1931
    %v1933 = vrot.slane %v48, %v1932
    %v1934 = vadd.f32 %v1927, %v1933
    %v1935 = vadd.f32 %v1928, %v1933
    %v1936 = vadd.f32 %v1929, %v1933
    %v1937 = vadd.f32 %v1934, %v42
    %v1938 = vadd.f32 %v1935, %v43
    %v1939 = vadd.f32 %v1936, %v44
    %v1940 = vsel %vm88, %v1937, 0.0
    %1941 = vadd.xlane.f32.xlu0 %v1940
    %v1942 = vpop.xlane.xlu0 %1941
    %v1943 = vsel %vm88, %v1938, 0.0
    %1944 = vadd.xlane.f32.xlu0 %v1943
    %v1945 = vpop.xlane.xlu0 %1944
    %vm1946 = vcmask 254976
    %v1947 = vsel %vm1946, %v1939, 0.0
    %1948 = vadd.xlane.f32.xlu0 %v1947
    %v1949 = vpop.xlane.xlu0 %1948
    %v1950 = vrcp.pop 32.0
    %v1951 = vmul.f32 %v1942, %v1950
    %v1952 = vmul.f32 %v1945, %v1950
    %v1953 = vmul.f32 %v1949, %v1950
    %v1954 = vsub.f32 %v1937, %v1951
    %v1955 = vsub.f32 %v1938, %v1952
    %v1956 = vsub.f32 %v1939, %v1953
    %v1957 = vmul.f32 %v1954, %v1954
    %v1958 = vmul.f32 %v1955, %v1955
    %v1959 = vmul.f32 %v1956, %v1956
    %v1960 = vsel %vm88, %v1957, 0.0
    %1961 = vadd.xlane.f32.xlu0 %v1960
    %v1962 = vpop.xlane.xlu0 %1961
    %v1963 = vsel %vm88, %v1958, 0.0
    %1964 = vadd.xlane.f32.xlu0 %v1963
    %v1965 = vpop.xlane.xlu0 %1964
    %v1966 = vsel %vm1946, %v1959, 0.0
    %1967 = vadd.xlane.f32.xlu0 %v1966
    %v1968 = vpop.xlane.xlu0 %1967
    %v1969 = vmul.f32 %v1962, %v1950
    %v1970 = vmul.f32 %v1965, %v1950
    %v1971 = vmul.f32 %v1968, %v1950
    %v1972 = vadd.f32 %v1969, 1e-05
    %v1973 = vadd.f32 %v1970, 1e-05
    %v1974 = vadd.f32 %v1971, 1e-05
    %v1975 = vrsqrt.pop %v1972
    %v1976 = vrsqrt.pop %v1973
    %v1977 = vrsqrt.pop %v1974
    %v1978 = vmul.f32 %v1954, %v1975
    %v1979 = vmul.f32 %v1955, %v1976
    %v1980 = vmul.f32 %v1956, %v1977
    %v1981 = vlaneseq
    %v1982 = vshrl.u32 %v1981, 7
    %v1983 = vsub.s32 1, %v1982
    %v1984 = vrot.slane %v48, %v1983
    %v1985 = vmul.f32 %v1978, %v1984
    %v1986 = vmul.f32 %v1979, %v1984
    %v1987 = vmul.f32 %v1980, %v1984
    %v1988 = vlaneseq
    %v1989 = vshrl.u32 %v1988, 7
    %v1990 = vsub.s32 2, %v1989
    %v1991 = vrot.slane %v48, %v1990
    %v1992 = vadd.f32 %v1985, %v1991
    %v1993 = vadd.f32 %v1986, %v1991
    %v1994 = vadd.f32 %v1987, %v1991
    %v1995 = vpack.c.bf16 %v1993, %v1992
    %v1996 = vpack.c.bf16 %v1994, %v1994
    %v1998 = vlaneseq
    %v1999 = vshrl.u32 %v1998, 7
    %v2000 = vsub.s32 0, %v1999
    %v2001 = vrot.slane %v49, %v2000
    %v2007 = vunpack.c.l.b16 %v50
    %v2008 = vunpack.c.l.b16 %v51
    %v2009 = vunpack.c.l.b16 %v52
    %v2010 = vunpack.c.l.b16 %v53
    %v2011 = vpack.c.b16 %v2008, %v2007
    %v2012 = vpack.c.b16 %v2010, %v2009
    %v2016 = vsel %vm88, %v1995, 0
    %v2019 = vsel %vm88, %v1996, 0
    %2021 = vmatprep.subr.bf16.mxu0 0
    %2022 = vmatpush1.bf16.msra.mxu0 0
    %2023 = vmatprep.subr.bf16.mxu0 0
    %2024 = vmatpush1.bf16.msra.mxu0 0
    %2025 = vmatprep.subr.bf16.mxu0 0
    %2026 = vmatpush1.bf16.msra.mxu0 0
    %2027 = vmatprep.subr.bf16.mxu0 0
    %2028 = vmatpush1.bf16.msra.mxu0 0
    %2029 = vmatprep.subr.bf16.mxu0 0
    %2030 = vmatpush1.bf16.msra.mxu0 0
    %2031 = vmatprep.subr.bf16.mxu0 0
    %2032 = vmatpush1.bf16.msra.mxu0 0
    %2033 = vmatprep.subr.bf16.mxu0 0
    %2034 = vmatpush1.bf16.msra.mxu0 %v2012
    %2035 = vmatprep.subr.bf16.mxu0 0
    %2036 = vmatpush1.bf16.msra.mxu0 %v2011
    %2037 = vmatprep.subr.bf16.mxu0 0
    %2038 = vmatpush2.bf16.msra.mxu0 0
    %2039 = vmatprep.subr.bf16.mxu0 0
    %2040 = vmatpush2.bf16.msra.mxu0 0
    %2041 = vmatprep.subr.bf16.mxu0 0
    %2042 = vmatpush2.bf16.msra.mxu0 0
    %2043 = vmatprep.subr.bf16.mxu0 0
    %2044 = vmatpush2.bf16.msra.mxu0 0
    %2045 = vmatprep.subr.bf16.mxu0 0
    %2046 = vmatpush2.bf16.msra.mxu0 0
    %2047 = vmatprep.subr.bf16.mxu0 0
    %2048 = vmatpush2.bf16.msra.mxu0 0
    %2049 = vmatprep.subr.bf16.mxu0 0
    %2050 = vmatpush2.bf16.msra.mxu0 0
    %2051 = vmatprep.subr.bf16.mxu0 0
    %2052 = vmatpush2.bf16.msra.mxu0 0
    %2053 = vmatprep.mubr.bf16.mxu0 0
    %2054 = vmatmul.mubr.bf16.gmra.mxu0 %v2016
    %v2055 = vpop.f32.mrf.mxu0
    %v2056 = vadd.f32 %v2001, %v2055
    %v2057 = vpop.f32.mrf.mxu0
    %v2058 = vpop.f32.mrf.mxu0
    %v2059 = vadd.f32 %v2001, %v2058
    %v2060 = vpop.f32.mrf.mxu0
    %2061 = vmatprep.mubr.bf16.mxu0 0
    %2062 = vmatmul.mubr.bf16.gmra.mxu0 %v2019
    %v2063 = vpop.f32.mrf.mxu0
    %v2064 = vadd.f32 %v2001, %v2063
    %v2065 = vpop.f32.mrf.mxu0
    %v2066 = vpop.f32.mrf.mxu0
    %v2067 = vpop.f32.mrf.mxu0
    %2068 = vdwg.mxu0
    %v2069 = vmax.f32 %v2056, 0.0
    %v2070 = vmax.f32 %v2059, 0.0
    %v2071 = vmax.f32 %v2064, 0.0
    %v2072 = vpack.c.bf16 %v2070, %v2069
    %v2073 = vpack.c.bf16 %v2071, %v2071
    %v2074 = vlaneseq
    %v2075 = vshrl.u32 %v2074, 7
    %v2076 = vsub.s32 3, %v2075
    %v2077 = vrot.slane %v48, %v2076
    %v2094 = vunpack.c.l.b16 %v54
    %v2095 = vunpack.c.l.b16 %v55
    %v2096 = vunpack.c.l.b16 %v56
    %v2097 = vunpack.c.l.b16 %v57
    %v2098 = vunpack.c.l.b16 %v58
    %v2099 = vunpack.c.l.b16 %v59
    %v2100 = vunpack.c.l.b16 %v60
    %v2101 = vunpack.c.l.b16 %v61
    %v2102 = vunpack.c.l.b16 %v62
    %v2103 = vunpack.c.l.b16 %v63
    %v2104 = vunpack.c.l.b16 %v64
    %v2105 = vunpack.c.l.b16 %v65
    %v2106 = vunpack.c.l.b16 %v66
    %v2107 = vunpack.c.l.b16 %v67
    %v2108 = vunpack.c.l.b16 %v68
    %v2109 = vunpack.c.l.b16 %v69
    %v2110 = vpack.c.b16 %v2095, %v2094
    %v2111 = vpack.c.b16 %v2097, %v2096
    %v2112 = vpack.c.b16 %v2099, %v2098
    %v2113 = vpack.c.b16 %v2101, %v2100
    %v2114 = vpack.c.b16 %v2103, %v2102
    %v2115 = vpack.c.b16 %v2105, %v2104
    %v2116 = vpack.c.b16 %v2107, %v2106
    %v2117 = vpack.c.b16 %v2109, %v2108
    %2126 = vmatprep.subr.bf16.mxu0 0
    %2127 = vmatpush1.bf16.msra.mxu0 %v2117
    %2128 = vmatprep.subr.bf16.mxu0 0
    %2129 = vmatpush1.bf16.msra.mxu0 %v2116
    %2130 = vmatprep.subr.bf16.mxu0 0
    %2131 = vmatpush1.bf16.msra.mxu0 %v2115
    %2132 = vmatprep.subr.bf16.mxu0 0
    %2133 = vmatpush1.bf16.msra.mxu0 %v2114
    %2134 = vmatprep.subr.bf16.mxu0 0
    %2135 = vmatpush1.bf16.msra.mxu0 %v2113
    %2136 = vmatprep.subr.bf16.mxu0 0
    %2137 = vmatpush1.bf16.msra.mxu0 %v2112
    %2138 = vmatprep.subr.bf16.mxu0 0
    %2139 = vmatpush1.bf16.msra.mxu0 %v2111
    %2140 = vmatprep.subr.bf16.mxu0 0
    %2141 = vmatpush1.bf16.msra.mxu0 %v2110
    %2142 = vmatprep.subr.bf16.mxu0 0
    %2143 = vmatpush2.bf16.msra.mxu0 0
    %2144 = vmatprep.subr.bf16.mxu0 0
    %2145 = vmatpush2.bf16.msra.mxu0 0
    %2146 = vmatprep.subr.bf16.mxu0 0
    %2147 = vmatpush2.bf16.msra.mxu0 0
    %2148 = vmatprep.subr.bf16.mxu0 0
    %2149 = vmatpush2.bf16.msra.mxu0 0
    %2150 = vmatprep.subr.bf16.mxu0 0
    %2151 = vmatpush2.bf16.msra.mxu0 0
    %2152 = vmatprep.subr.bf16.mxu0 0
    %2153 = vmatpush2.bf16.msra.mxu0 0
    %2154 = vmatprep.subr.bf16.mxu0 0
    %2155 = vmatpush2.bf16.msra.mxu0 0
    %2156 = vmatprep.subr.bf16.mxu0 0
    %2157 = vmatpush2.bf16.msra.mxu0 0
    %2158 = vmatprep.mubr.bf16.mxu0 0
    %2159 = vmatmul.mubr.bf16.gmra.mxu0 %v2072
    %v2160 = vpop.f32.mrf.mxu0
    %v2161 = vadd.f32 %v2077, %v2160
    %v2162 = vpop.f32.mrf.mxu0
    %v2163 = vpop.f32.mrf.mxu0
    %v2164 = vadd.f32 %v2077, %v2163
    %v2165 = vpop.f32.mrf.mxu0
    %2166 = vmatprep.mubr.bf16.mxu0 0
    %2167 = vmatmul.mubr.bf16.gmra.mxu0 %v2073
    %v2168 = vpop.f32.mrf.mxu0
    %v2169 = vadd.f32 %v2077, %v2168
    %v2170 = vpop.f32.mrf.mxu0
    %v2171 = vpop.f32.mrf.mxu0
    %v2172 = vpop.f32.mrf.mxu0
    %2173 = vdwg.mxu0
    %v2174 = vadd.f32 %v2161, %v1992
    %v2175 = vadd.f32 %v2164, %v1993
    %v2176 = vadd.f32 %v2169, %v1994
    %v2177 = vsel %vm88, %v2174, 0.0
    %2178 = vadd.xlane.f32.xlu0 %v2177
    %v2179 = vpop.xlane.xlu0 %2178
    %v2180 = vsel %vm88, %v2175, 0.0
    %2181 = vadd.xlane.f32.xlu0 %v2180
    %v2182 = vpop.xlane.xlu0 %2181
    %v2183 = vsel %vm1946, %v2176, 0.0
    %2184 = vadd.xlane.f32.xlu0 %v2183
    %v2185 = vpop.xlane.xlu0 %2184
    %v2186 = vmul.f32 %v2179, %v1950
    %v2187 = vmul.f32 %v2182, %v1950
    %v2188 = vmul.f32 %v2185, %v1950
    %v2189 = vsub.f32 %v2174, %v2186
    %v2190 = vsub.f32 %v2175, %v2187
    %v2191 = vsub.f32 %v2176, %v2188
    %v2192 = vmul.f32 %v2189, %v2189
    %v2193 = vmul.f32 %v2190, %v2190
    %v2194 = vmul.f32 %v2191, %v2191
    %v2195 = vsel %vm88, %v2192, 0.0
    %2196 = vadd.xlane.f32.xlu0 %v2195
    %v2197 = vpop.xlane.xlu0 %2196
    %v2198 = vsel %vm88, %v2193, 0.0
    %2199 = vadd.xlane.f32.xlu0 %v2198
    %v2200 = vpop.xlane.xlu0 %2199
    %v2201 = vsel %vm1946, %v2194, 0.0
    %2202 = vadd.xlane.f32.xlu0 %v2201
    %v2203 = vpop.xlane.xlu0 %2202
    %v2204 = vmul.f32 %v2197, %v1950
    %v2205 = vmul.f32 %v2200, %v1950
    %v2206 = vmul.f32 %v2203, %v1950
    %v2207 = vadd.f32 %v2204, 1e-05
    %v2208 = vadd.f32 %v2205, 1e-05
    %v2209 = vadd.f32 %v2206, 1e-05
    %v2210 = vrsqrt.pop %v2207
    %v2211 = vrsqrt.pop %v2208
    %v2212 = vrsqrt.pop %v2209
    %v2213 = vmul.f32 %v2189, %v2210
    %v2214 = vmul.f32 %v2190, %v2211
    %v2215 = vmul.f32 %v2191, %v2212
    %v2216 = vlaneseq
    %v2217 = vshrl.u32 %v2216, 7
    %v2218 = vsub.s32 4, %v2217
    %v2219 = vrot.slane %v48, %v2218
    %v2220 = vmul.f32 %v2213, %v2219
    %v2221 = vmul.f32 %v2214, %v2219
    %v2222 = vmul.f32 %v2215, %v2219
    %v2223 = vlaneseq
    %v2224 = vshrl.u32 %v2223, 7
    %v2225 = vsub.s32 5, %v2224
    %v2226 = vrot.slane %v48, %v2225
    %v2227 = vadd.f32 %v2220, %v2226
    %v2228 = vadd.f32 %v2221, %v2226
    %v2229 = vadd.f32 %v2222, %v2226
    %s2230 = scalar_lea.vmem %s5, 8
    %v2231 = vld [vmem:[%s2230] sm:$0x3f]
    %s2232 = scalar_lea.vmem %s6, 1
    %v2233 = vld [vmem:[%s2232] sm:$0x1]
    %s2234 = scalar_lea.vmem %s3, 16
    %v2235 = vld [vmem:[%s2234] sm:$0xf]
    %v2236 = vld [vmem:[%s2234 + $0x4] sm:$0xf]
    %v2237 = vld [vmem:[%s2234 + $0x8] sm:$0xf]
    %v2238 = vld [vmem:[%s2234 + $0xc] sm:$0xf]
    %s2239 = scalar_lea.vmem %s4, 64
    %v2240 = vld [vmem:[%s2239] sm:$0xf]
    %v2241 = vld [vmem:[%s2239 + $0x4] sm:$0xf]
    %v2242 = vld [vmem:[%s2239 + $0x8] sm:$0xf]
    %v2243 = vld [vmem:[%s2239 + $0xc] sm:$0xf]
    %v2244 = vld [vmem:[%s2239 + $0x10] sm:$0xf]
    %v2245 = vld [vmem:[%s2239 + $0x14] sm:$0xf]
    %v2246 = vld [vmem:[%s2239 + $0x18] sm:$0xf]
    %v2247 = vld [vmem:[%s2239 + $0x1c] sm:$0xf]
    %v2248 = vld [vmem:[%s2239 + $0x20] sm:$0xf]
    %v2249 = vld [vmem:[%s2239 + $0x24] sm:$0xf]
    %v2250 = vld [vmem:[%s2239 + $0x28] sm:$0xf]
    %v2251 = vld [vmem:[%s2239 + $0x2c] sm:$0xf]
    %v2252 = vld [vmem:[%s2239 + $0x30] sm:$0xf]
    %v2253 = vld [vmem:[%s2239 + $0x34] sm:$0xf]
    %v2254 = vld [vmem:[%s2239 + $0x38] sm:$0xf]
    %v2255 = vld [vmem:[%s2239 + $0x3c] sm:$0xf]
    %v2256 = vpack.c.bf16 %v2228, %v2227
    %v2257 = vpack.c.bf16 %v2229, %v2229
    %s2258 = scalar_lea.vmem [#allocation2], 256
    %v2259 = vld [vmem:[%s2258] sm:$0xf]
    %v2260 = vld [vmem:[%s2258 + $0x4] sm:$0xf]
    %v2261 = vld [vmem:[%s2258 + $0x8] sm:$0xf]
    %v2262 = vld [vmem:[%s2258 + $0xc] sm:$0xf]
    %v2267 = vunpack.c.l.b16 %v2259
    %v2268 = vunpack.c.l.b16 %v2260
    %v2269 = vunpack.c.l.b16 %v2261
    %v2270 = vunpack.c.l.b16 %v2262
    %v2271 = vpack.c.b16 %v2268, %v2267
    %v2272 = vpack.c.b16 %v2270, %v2269
    %v2276 = vsel %vm88, %v2256, 0
    %v2279 = vsel %vm88, %v2257, 0
    %2281 = vmatprep.subr.bf16.mxu0 0
    %2282 = vmatpush1.bf16.msra.mxu0 0
    %2283 = vmatprep.subr.bf16.mxu0 0
    %2284 = vmatpush1.bf16.msra.mxu0 0
    %2285 = vmatprep.subr.bf16.mxu0 0
    %2286 = vmatpush1.bf16.msra.mxu0 0
    %2287 = vmatprep.subr.bf16.mxu0 0
    %2288 = vmatpush1.bf16.msra.mxu0 0
    %2289 = vmatprep.subr.bf16.mxu0 0
    %2290 = vmatpush1.bf16.msra.mxu0 0
    %2291 = vmatprep.subr.bf16.mxu0 0
    %2292 = vmatpush1.bf16.msra.mxu0 0
    %2293 = vmatprep.subr.bf16.mxu0 0
    %2294 = vmatpush1.bf16.msra.mxu0 %v2272
    %2295 = vmatprep.subr.bf16.mxu0 0
    %2296 = vmatpush1.bf16.msra.mxu0 %v2271
    %2297 = vmatprep.subr.bf16.mxu0 0
    %2298 = vmatpush2.bf16.msra.mxu0 0
    %2299 = vmatprep.subr.bf16.mxu0 0
    %2300 = vmatpush2.bf16.msra.mxu0 0
    %2301 = vmatprep.subr.bf16.mxu0 0
    %2302 = vmatpush2.bf16.msra.mxu0 0
    %2303 = vmatprep.subr.bf16.mxu0 0
    %2304 = vmatpush2.bf16.msra.mxu0 0
    %2305 = vmatprep.subr.bf16.mxu0 0
    %2306 = vmatpush2.bf16.msra.mxu0 0
    %2307 = vmatprep.subr.bf16.mxu0 0
    %2308 = vmatpush2.bf16.msra.mxu0 0
    %2309 = vmatprep.subr.bf16.mxu0 0
    %2310 = vmatpush2.bf16.msra.mxu0 0
    %2311 = vmatprep.subr.bf16.mxu0 0
    %2312 = vmatpush2.bf16.msra.mxu0 0
    %2313 = vmatprep.mubr.bf16.mxu0 0
    %2314 = vmatmul.mubr.bf16.gmra.mxu0 %v2276
    %v2315 = vpop.f32.mrf.mxu0
    %v2316 = vadd.f32 0.0, %v2315
    %v2317 = vpop.f32.mrf.mxu0
    %v2318 = vpop.f32.mrf.mxu0
    %v2319 = vadd.f32 0.0, %v2318
    %v2320 = vpop.f32.mrf.mxu0
    %2321 = vmatprep.mubr.bf16.mxu0 0
    %2322 = vmatmul.mubr.bf16.gmra.mxu0 %v2279
    %v2323 = vpop.f32.mrf.mxu0
    %v2324 = vadd.f32 0.0, %v2323
    %v2325 = vpop.f32.mrf.mxu0
    %v2326 = vpop.f32.mrf.mxu0
    %v2327 = vpop.f32.mrf.mxu0
    %2328 = vdwg.mxu0
    %s2329 = scalar_lea.vmem [#allocation2], 272
    %v2330 = vld [vmem:[%s2329] sm:$0xf]
    %v2331 = vld [vmem:[%s2329 + $0x4] sm:$0xf]
    %v2332 = vld [vmem:[%s2329 + $0x8] sm:$0xf]
    %v2333 = vld [vmem:[%s2329 + $0xc] sm:$0xf]
    %v2338 = vunpack.c.l.b16 %v2330
    %v2339 = vunpack.c.l.b16 %v2331
    %v2340 = vunpack.c.l.b16 %v2332
    %v2341 = vunpack.c.l.b16 %v2333
    %v2342 = vpack.c.b16 %v2339, %v2338
    %v2343 = vpack.c.b16 %v2341, %v2340
    %2346 = vmatprep.subr.bf16.mxu0 0
    %2347 = vmatpush1.bf16.msra.mxu0 0
    %2348 = vmatprep.subr.bf16.mxu0 0
    %2349 = vmatpush1.bf16.msra.mxu0 0
    %2350 = vmatprep.subr.bf16.mxu0 0
    %2351 = vmatpush1.bf16.msra.mxu0 0
    %2352 = vmatprep.subr.bf16.mxu0 0
    %2353 = vmatpush1.bf16.msra.mxu0 0
    %2354 = vmatprep.subr.bf16.mxu0 0
    %2355 = vmatpush1.bf16.msra.mxu0 0
    %2356 = vmatprep.subr.bf16.mxu0 0
    %2357 = vmatpush1.bf16.msra.mxu0 0
    %2358 = vmatprep.subr.bf16.mxu0 0
    %2359 = vmatpush1.bf16.msra.mxu0 %v2343
    %2360 = vmatprep.subr.bf16.mxu0 0
    %2361 = vmatpush1.bf16.msra.mxu0 %v2342
    %2362 = vmatprep.subr.bf16.mxu0 0
    %2363 = vmatpush2.bf16.msra.mxu0 0
    %2364 = vmatprep.subr.bf16.mxu0 0
    %2365 = vmatpush2.bf16.msra.mxu0 0
    %2366 = vmatprep.subr.bf16.mxu0 0
    %2367 = vmatpush2.bf16.msra.mxu0 0
    %2368 = vmatprep.subr.bf16.mxu0 0
    %2369 = vmatpush2.bf16.msra.mxu0 0
    %2370 = vmatprep.subr.bf16.mxu0 0
    %2371 = vmatpush2.bf16.msra.mxu0 0
    %2372 = vmatprep.subr.bf16.mxu0 0
    %2373 = vmatpush2.bf16.msra.mxu0 0
    %2374 = vmatprep.subr.bf16.mxu0 0
    %2375 = vmatpush2.bf16.msra.mxu0 0
    %2376 = vmatprep.subr.bf16.mxu0 0
    %2377 = vmatpush2.bf16.msra.mxu0 0
    %2378 = vmatprep.mubr.bf16.mxu0 0
    %2379 = vmatmul.mubr.bf16.gmra.mxu0 %v2276
    %v2380 = vpop.f32.mrf.mxu0
    %v2381 = vadd.f32 0.0, %v2380
    %v2382 = vpop.f32.mrf.mxu0
    %v2383 = vpop.f32.mrf.mxu0
    %v2384 = vadd.f32 0.0, %v2383
    %v2385 = vpop.f32.mrf.mxu0
    %2386 = vmatprep.mubr.bf16.mxu0 0
    %2387 = vmatmul.mubr.bf16.gmra.mxu0 %v2279
    %v2388 = vpop.f32.mrf.mxu0
    %v2389 = vadd.f32 0.0, %v2388
    %v2390 = vpop.f32.mrf.mxu0
    %v2391 = vpop.f32.mrf.mxu0
    %v2392 = vpop.f32.mrf.mxu0
    %2393 = vdwg.mxu0
    %s2394 = scalar_lea.vmem [#allocation2], 288
    %v2395 = vld [vmem:[%s2394] sm:$0xf]
    %v2396 = vld [vmem:[%s2394 + $0x4] sm:$0xf]
    %v2397 = vld [vmem:[%s2394 + $0x8] sm:$0xf]
    %v2398 = vld [vmem:[%s2394 + $0xc] sm:$0xf]
    %v2403 = vunpack.c.l.b16 %v2395
    %v2404 = vunpack.c.l.b16 %v2396
    %v2405 = vunpack.c.l.b16 %v2397
    %v2406 = vunpack.c.l.b16 %v2398
    %v2407 = vpack.c.b16 %v2404, %v2403
    %v2408 = vpack.c.b16 %v2406, %v2405
    %2411 = vmatprep.subr.bf16.mxu0 0
    %2412 = vmatpush1.bf16.msra.mxu0 0
    %2413 = vmatprep.subr.bf16.mxu0 0
    %2414 = vmatpush1.bf16.msra.mxu0 0
    %2415 = vmatprep.subr.bf16.mxu0 0
    %2416 = vmatpush1.bf16.msra.mxu0 0
    %2417 = vmatprep.subr.bf16.mxu0 0
    %2418 = vmatpush1.bf16.msra.mxu0 0
    %2419 = vmatprep.subr.bf16.mxu0 0
    %2420 = vmatpush1.bf16.msra.mxu0 0
    %2421 = vmatprep.subr.bf16.mxu0 0
    %2422 = vmatpush1.bf16.msra.mxu0 0
    %2423 = vmatprep.subr.bf16.mxu0 0
    %2424 = vmatpush1.bf16.msra.mxu0 %v2408
    %2425 = vmatprep.subr.bf16.mxu0 0
    %2426 = vmatpush1.bf16.msra.mxu0 %v2407
    %2427 = vmatprep.subr.bf16.mxu0 0
    %2428 = vmatpush2.bf16.msra.mxu0 0
    %2429 = vmatprep.subr.bf16.mxu0 0
    %2430 = vmatpush2.bf16.msra.mxu0 0
    %2431 = vmatprep.subr.bf16.mxu0 0
    %2432 = vmatpush2.bf16.msra.mxu0 0
    %2433 = vmatprep.subr.bf16.mxu0 0
    %2434 = vmatpush2.bf16.msra.mxu0 0
    %2435 = vmatprep.subr.bf16.mxu0 0
    %2436 = vmatpush2.bf16.msra.mxu0 0
    %2437 = vmatprep.subr.bf16.mxu0 0
    %2438 = vmatpush2.bf16.msra.mxu0 0
    %2439 = vmatprep.subr.bf16.mxu0 0
    %2440 = vmatpush2.bf16.msra.mxu0 0
    %2441 = vmatprep.subr.bf16.mxu0 0
    %2442 = vmatpush2.bf16.msra.mxu0 0
    %2443 = vmatprep.mubr.bf16.mxu0 0
    %2444 = vmatmul.mubr.bf16.gmra.mxu0 %v2276
    %v2445 = vpop.f32.mrf.mxu0
    %v2446 = vadd.f32 0.0, %v2445
    %v2447 = vpop.f32.mrf.mxu0
    %v2448 = vpop.f32.mrf.mxu0
    %v2449 = vadd.f32 0.0, %v2448
    %v2450 = vpop.f32.mrf.mxu0
    %2451 = vmatprep.mubr.bf16.mxu0 0
    %2452 = vmatmul.mubr.bf16.gmra.mxu0 %v2279
    %v2453 = vpop.f32.mrf.mxu0
    %v2454 = vadd.f32 0.0, %v2453
    %v2455 = vpop.f32.mrf.mxu0
    %v2456 = vpop.f32.mrf.mxu0
    %v2457 = vpop.f32.mrf.mxu0
    %2458 = vdwg.mxu0
    %v2460 = vsel %vm88, %v2316, 0
    %v2463 = vsel %vm88, %v2319, 0
    %v2466 = vsel %vm88, %v2324, 0
    %v2469 = vsel %vm88, %v2381, 0
    %v2472 = vsel %vm88, %v2384, 0
    %v2475 = vsel %vm88, %v2389, 0
    %2477 = vmatprep.subr.mxu0 0.0
    %2478 = vmatpush1.xpose.msra.mxu0 0.0
    %2479 = vmatprep.subr.mxu0 0.0
    %2480 = vmatpush1.xpose.msra.mxu0 0.0
    %2481 = vmatprep.subr.mxu0 0.0
    %2482 = vmatpush1.xpose.msra.mxu0 0.0
    %2483 = vmatprep.subr.mxu0 0.0
    %2484 = vmatpush1.xpose.msra.mxu0 0.0
    %2485 = vmatprep.subr.mxu0 0.0
    %2486 = vmatpush1.xpose.msra.mxu0 0.0
    %2487 = vmatprep.subr.mxu0 0.0
    %2488 = vmatpush1.xpose.msra.mxu0 0.0
    %2489 = vmatprep.subr.mxu0 0.0
    %2490 = vmatpush1.xpose.msra.mxu0 0.0
    %2491 = vmatprep.subr.mxu0 0.0
    %2492 = vmatpush1.xpose.msra.mxu0 0.0
    %2493 = vmatprep.subr.mxu0 0.0
    %2494 = vmatpush1.xpose.msra.mxu0 0.0
    %2495 = vmatprep.subr.mxu0 0.0
    %2496 = vmatpush1.xpose.msra.mxu0 0.0
    %2497 = vmatprep.subr.mxu0 0.0
    %2498 = vmatpush1.xpose.msra.mxu0 0.0
    %2499 = vmatprep.subr.mxu0 0.0
    %2500 = vmatpush1.xpose.msra.mxu0 0.0
    %2501 = vmatprep.subr.mxu0 0.0
    %2502 = vmatpush1.xpose.msra.mxu0 0.0
    %2503 = vmatprep.subr.mxu0 0.0
    %2504 = vmatpush1.xpose.msra.mxu0 %v2475
    %2505 = vmatprep.subr.mxu0 0.0
    %2506 = vmatpush1.xpose.msra.mxu0 %v2472
    %2507 = vmatprep.subr.mxu0 0.0
    %2508 = vmatpush1.xpose.msra.mxu0 %v2469
    %2509 = vmatprep.subr.mxu0 0.0
    %2510 = vmatpush2.xpose.msra.mxu0 0.0
    %2511 = vmatprep.subr.mxu0 0.0
    %2512 = vmatpush2.xpose.msra.mxu0 0.0
    %2513 = vmatprep.subr.mxu0 0.0
    %2514 = vmatpush2.xpose.msra.mxu0 0.0
    %2515 = vmatprep.subr.mxu0 0.0
    %2516 = vmatpush2.xpose.msra.mxu0 0.0
    %2517 = vmatprep.subr.mxu0 0.0
    %2518 = vmatpush2.xpose.msra.mxu0 0.0
    %2519 = vmatprep.subr.mxu0 0.0
    %2520 = vmatpush2.xpose.msra.mxu0 0.0
    %2521 = vmatprep.subr.mxu0 0.0
    %2522 = vmatpush2.xpose.msra.mxu0 0.0
    %2523 = vmatprep.subr.mxu0 0.0
    %2524 = vmatpush2.xpose.msra.mxu0 0.0
    %2525 = vmatprep.subr.mxu0 0.0
    %2526 = vmatpush2.xpose.msra.mxu0 0.0
    %2527 = vmatprep.subr.mxu0 0.0
    %2528 = vmatpush2.xpose.msra.mxu0 0.0
    %2529 = vmatprep.subr.mxu0 0.0
    %2530 = vmatpush2.xpose.msra.mxu0 0.0
    %2531 = vmatprep.subr.mxu0 0.0
    %2532 = vmatpush2.xpose.msra.mxu0 0.0
    %2533 = vmatprep.subr.mxu0 0.0
    %2534 = vmatpush2.xpose.msra.mxu0 0.0
    %2535 = vmatprep.subr.mxu0 0.0
    %2536 = vmatpush2.xpose.msra.mxu0 0.0
    %2537 = vmatprep.subr.mxu0 0.0
    %2538 = vmatpush2.xpose.msra.mxu0 0.0
    %2539 = vmatprep.subr.mxu0 0.0
    %2540 = vmatpush2.xpose.msra.mxu0 0.0
    %2541 = vmatprep.mubr.f32.mxu0 0.0
    %2542 = vmatmul.mubr.f32.gmra.mxu0 %v2460
    %v2543 = vpop.f32.mrf.mxu0
    %v2544 = vadd.f32 0.0, %v2543
    %v2545 = vpop.f32.mrf.mxu0
    %2546 = vmatprep.mubr.f32.mxu0 0.0
    %2547 = vmatmul.mubr.f32.gmra.mxu0 %v2463
    %v2548 = vpop.f32.mrf.mxu0
    %v2549 = vadd.f32 0.0, %v2548
    %v2550 = vpop.f32.mrf.mxu0
    %2551 = vmatprep.mubr.f32.mxu0 0.0
    %2552 = vmatmul.mubr.f32.gmra.mxu0 %v2466
    %v2553 = vpop.f32.mrf.mxu0
    %v2554 = vadd.f32 0.0, %v2553
    %v2555 = vpop.f32.mrf.mxu0
    %2556 = vdwg.mxu0
    %v2557 = vmul.f32 %v2544, %v45
    %v2558 = vmul.f32 %v2549, %v46
    %v2559 = vmul.f32 %v2554, %v47
    %v2561 = vsel %vm374, %v2557, 0
    %v2564 = vsel %vm374, %v2558, 0
    %v2567 = vsel %vm374, %v2559, 0
    %v2570 = vsel %vm384, %v2454, 0
    %2572 = vmatprep.subr.mxu0 0.0
    %2573 = vmatpush1.msra.mxu0 0.0
    %2574 = vmatprep.subr.mxu0 0.0
    %2575 = vmatpush1.msra.mxu0 0.0
    %2576 = vmatprep.subr.mxu0 0.0
    %2577 = vmatpush1.msra.mxu0 0.0
    %2578 = vmatprep.subr.mxu0 0.0
    %2579 = vmatpush1.msra.mxu0 0.0
    %2580 = vmatprep.subr.mxu0 0.0
    %2581 = vmatpush1.msra.mxu0 0.0
    %2582 = vmatprep.subr.mxu0 0.0
    %2583 = vmatpush1.msra.mxu0 0.0
    %2584 = vmatprep.subr.mxu0 0.0
    %2585 = vmatpush1.msra.mxu0 0.0
    %2586 = vmatprep.subr.mxu0 0.0
    %2587 = vmatpush1.msra.mxu0 0.0
    %2588 = vmatprep.subr.mxu0 0.0
    %2589 = vmatpush1.msra.mxu0 0.0
    %2590 = vmatprep.subr.mxu0 0.0
    %2591 = vmatpush1.msra.mxu0 0.0
    %2592 = vmatprep.subr.mxu0 0.0
    %2593 = vmatpush1.msra.mxu0 0.0
    %2594 = vmatprep.subr.mxu0 0.0
    %2595 = vmatpush1.msra.mxu0 0.0
    %2596 = vmatprep.subr.mxu0 0.0
    %2597 = vmatpush1.msra.mxu0 0.0
    %2598 = vmatprep.subr.mxu0 0.0
    %2599 = vmatpush1.msra.mxu0 %v2570
    %2600 = vmatprep.subr.mxu0 0.0
    %2601 = vmatpush1.msra.mxu0 %v2449
    %2602 = vmatprep.subr.mxu0 0.0
    %2603 = vmatpush1.msra.mxu0 %v2446
    %2604 = vmatprep.subr.mxu0 0.0
    %2605 = vmatpush2.msra.mxu0 0.0
    %2606 = vmatprep.subr.mxu0 0.0
    %2607 = vmatpush2.msra.mxu0 0.0
    %2608 = vmatprep.subr.mxu0 0.0
    %2609 = vmatpush2.msra.mxu0 0.0
    %2610 = vmatprep.subr.mxu0 0.0
    %2611 = vmatpush2.msra.mxu0 0.0
    %2612 = vmatprep.subr.mxu0 0.0
    %2613 = vmatpush2.msra.mxu0 0.0
    %2614 = vmatprep.subr.mxu0 0.0
    %2615 = vmatpush2.msra.mxu0 0.0
    %2616 = vmatprep.subr.mxu0 0.0
    %2617 = vmatpush2.msra.mxu0 0.0
    %2618 = vmatprep.subr.mxu0 0.0
    %2619 = vmatpush2.msra.mxu0 0.0
    %2620 = vmatprep.subr.mxu0 0.0
    %2621 = vmatpush2.msra.mxu0 0.0
    %2622 = vmatprep.subr.mxu0 0.0
    %2623 = vmatpush2.msra.mxu0 0.0
    %2624 = vmatprep.subr.mxu0 0.0
    %2625 = vmatpush2.msra.mxu0 0.0
    %2626 = vmatprep.subr.mxu0 0.0
    %2627 = vmatpush2.msra.mxu0 0.0
    %2628 = vmatprep.subr.mxu0 0.0
    %2629 = vmatpush2.msra.mxu0 0.0
    %2630 = vmatprep.subr.mxu0 0.0
    %2631 = vmatpush2.msra.mxu0 0.0
    %2632 = vmatprep.subr.mxu0 0.0
    %2633 = vmatpush2.msra.mxu0 0.0
    %2634 = vmatprep.subr.mxu0 0.0
    %2635 = vmatpush2.msra.mxu0 0.0
    %2636 = vmatprep.mubr.f32.mxu0 0.0
    %2637 = vmatmul.mubr.f32.gmra.mxu0 %v2561
    %v2638 = vpop.f32.mrf.mxu0
    %v2639 = vadd.f32 0.0, %v2638
    %v2640 = vpop.f32.mrf.mxu0
    %2641 = vmatprep.mubr.f32.mxu0 0.0
    %2642 = vmatmul.mubr.f32.gmra.mxu0 %v2564
    %v2643 = vpop.f32.mrf.mxu0
    %v2644 = vadd.f32 0.0, %v2643
    %v2645 = vpop.f32.mrf.mxu0
    %2646 = vmatprep.mubr.f32.mxu0 0.0
    %2647 = vmatmul.mubr.f32.gmra.mxu0 %v2567
    %v2648 = vpop.f32.mrf.mxu0
    %v2649 = vadd.f32 0.0, %v2648
    %v2650 = vpop.f32.mrf.mxu0
    %2651 = vdwg.mxu0
    %v2652 = vpack.c.bf16 %v2644, %v2639
    %v2653 = vpack.c.bf16 %v2649, %v2649
    %s2654 = scalar_lea.vmem [#allocation2], 304
    %v2655 = vld [vmem:[%s2654] sm:$0xf]
    %v2656 = vld [vmem:[%s2654 + $0x4] sm:$0xf]
    %v2657 = vld [vmem:[%s2654 + $0x8] sm:$0xf]
    %v2658 = vld [vmem:[%s2654 + $0xc] sm:$0xf]
    %s2659 = scalar_lea.vmem [#allocation2], 320
    %v2660 = vld [vmem:[%s2659] sm:$0xf]
    %v2661 = vld [vmem:[%s2659 + $0x4] sm:$0xf]
    %v2662 = vld [vmem:[%s2659 + $0x8] sm:$0xf]
    %v2663 = vld [vmem:[%s2659 + $0xc] sm:$0xf]
    %v2668 = vunpack.c.l.b16 %v2660
    %v2669 = vunpack.c.l.b16 %v2661
    %v2670 = vunpack.c.l.b16 %v2662
    %v2671 = vunpack.c.l.b16 %v2663
    %v2672 = vpack.c.b16 %v2669, %v2668
    %v2673 = vpack.c.b16 %v2671, %v2670
    %2676 = vmatprep.subr.bf16.mxu0 0
    %2677 = vmatpush1.bf16.msra.mxu0 0
    %2678 = vmatprep.subr.bf16.mxu0 0
    %2679 = vmatpush1.bf16.msra.mxu0 0
    %2680 = vmatprep.subr.bf16.mxu0 0
    %2681 = vmatpush1.bf16.msra.mxu0 0
    %2682 = vmatprep.subr.bf16.mxu0 0
    %2683 = vmatpush1.bf16.msra.mxu0 0
    %2684 = vmatprep.subr.bf16.mxu0 0
    %2685 = vmatpush1.bf16.msra.mxu0 0
    %2686 = vmatprep.subr.bf16.mxu0 0
    %2687 = vmatpush1.bf16.msra.mxu0 0
    %2688 = vmatprep.subr.bf16.mxu0 0
    %2689 = vmatpush1.bf16.msra.mxu0 %v2673
    %2690 = vmatprep.subr.bf16.mxu0 0
    %2691 = vmatpush1.bf16.msra.mxu0 %v2672
    %2692 = vmatprep.subr.bf16.mxu0 0
    %2693 = vmatpush2.bf16.msra.mxu0 0
    %2694 = vmatprep.subr.bf16.mxu0 0
    %2695 = vmatpush2.bf16.msra.mxu0 0
    %2696 = vmatprep.subr.bf16.mxu0 0
    %2697 = vmatpush2.bf16.msra.mxu0 0
    %2698 = vmatprep.subr.bf16.mxu0 0
    %2699 = vmatpush2.bf16.msra.mxu0 0
    %2700 = vmatprep.subr.bf16.mxu0 0
    %2701 = vmatpush2.bf16.msra.mxu0 0
    %2702 = vmatprep.subr.bf16.mxu0 0
    %2703 = vmatpush2.bf16.msra.mxu0 0
    %2704 = vmatprep.subr.bf16.mxu0 0
    %2705 = vmatpush2.bf16.msra.mxu0 0
    %2706 = vmatprep.subr.bf16.mxu0 0
    %2707 = vmatpush2.bf16.msra.mxu0 0
    %2708 = vmatprep.mubr.bf16.mxu0 0
    %2709 = vmatmul.mubr.bf16.gmra.mxu0 %v2276
    %v2710 = vpop.f32.mrf.mxu0
    %v2711 = vadd.f32 0.0, %v2710
    %v2712 = vpop.f32.mrf.mxu0
    %v2713 = vpop.f32.mrf.mxu0
    %v2714 = vadd.f32 0.0, %v2713
    %v2715 = vpop.f32.mrf.mxu0
    %2716 = vmatprep.mubr.bf16.mxu0 0
    %2717 = vmatmul.mubr.bf16.gmra.mxu0 %v2279
    %v2718 = vpop.f32.mrf.mxu0
    %v2719 = vadd.f32 0.0, %v2718
    %v2720 = vpop.f32.mrf.mxu0
    %v2721 = vpop.f32.mrf.mxu0
    %v2722 = vpop.f32.mrf.mxu0
    %2723 = vdwg.mxu0
    %s2724 = scalar_lea.vmem [#allocation2], 336
    %v2725 = vld [vmem:[%s2724] sm:$0xf]
    %v2726 = vld [vmem:[%s2724 + $0x4] sm:$0xf]
    %v2727 = vld [vmem:[%s2724 + $0x8] sm:$0xf]
    %v2728 = vld [vmem:[%s2724 + $0xc] sm:$0xf]
    %v2733 = vunpack.c.l.b16 %v2725
    %v2734 = vunpack.c.l.b16 %v2726
    %v2735 = vunpack.c.l.b16 %v2727
    %v2736 = vunpack.c.l.b16 %v2728
    %v2737 = vpack.c.b16 %v2734, %v2733
    %v2738 = vpack.c.b16 %v2736, %v2735
    %2741 = vmatprep.subr.bf16.mxu0 0
    %2742 = vmatpush1.bf16.msra.mxu0 0
    %2743 = vmatprep.subr.bf16.mxu0 0
    %2744 = vmatpush1.bf16.msra.mxu0 0
    %2745 = vmatprep.subr.bf16.mxu0 0
    %2746 = vmatpush1.bf16.msra.mxu0 0
    %2747 = vmatprep.subr.bf16.mxu0 0
    %2748 = vmatpush1.bf16.msra.mxu0 0
    %2749 = vmatprep.subr.bf16.mxu0 0
    %2750 = vmatpush1.bf16.msra.mxu0 0
    %2751 = vmatprep.subr.bf16.mxu0 0
    %2752 = vmatpush1.bf16.msra.mxu0 0
    %2753 = vmatprep.subr.bf16.mxu0 0
    %2754 = vmatpush1.bf16.msra.mxu0 %v2738
    %2755 = vmatprep.subr.bf16.mxu0 0
    %2756 = vmatpush1.bf16.msra.mxu0 %v2737
    %2757 = vmatprep.subr.bf16.mxu0 0
    %2758 = vmatpush2.bf16.msra.mxu0 0
    %2759 = vmatprep.subr.bf16.mxu0 0
    %2760 = vmatpush2.bf16.msra.mxu0 0
    %2761 = vmatprep.subr.bf16.mxu0 0
    %2762 = vmatpush2.bf16.msra.mxu0 0
    %2763 = vmatprep.subr.bf16.mxu0 0
    %2764 = vmatpush2.bf16.msra.mxu0 0
    %2765 = vmatprep.subr.bf16.mxu0 0
    %2766 = vmatpush2.bf16.msra.mxu0 0
    %2767 = vmatprep.subr.bf16.mxu0 0
    %2768 = vmatpush2.bf16.msra.mxu0 0
    %2769 = vmatprep.subr.bf16.mxu0 0
    %2770 = vmatpush2.bf16.msra.mxu0 0
    %2771 = vmatprep.subr.bf16.mxu0 0
    %2772 = vmatpush2.bf16.msra.mxu0 0
    %2773 = vmatprep.mubr.bf16.mxu0 0
    %2774 = vmatmul.mubr.bf16.gmra.mxu0 %v2276
    %v2775 = vpop.f32.mrf.mxu0
    %v2776 = vadd.f32 0.0, %v2775
    %v2777 = vpop.f32.mrf.mxu0
    %v2778 = vpop.f32.mrf.mxu0
    %v2779 = vadd.f32 0.0, %v2778
    %v2780 = vpop.f32.mrf.mxu0
    %2781 = vmatprep.mubr.bf16.mxu0 0
    %2782 = vmatmul.mubr.bf16.gmra.mxu0 %v2279
    %v2783 = vpop.f32.mrf.mxu0
    %v2784 = vadd.f32 0.0, %v2783
    %v2785 = vpop.f32.mrf.mxu0
    %v2786 = vpop.f32.mrf.mxu0
    %v2787 = vpop.f32.mrf.mxu0
    %2788 = vdwg.mxu0
    %s2789 = scalar_lea.vmem [#allocation2], 352
    %v2790 = vld [vmem:[%s2789] sm:$0xf]
    %v2791 = vld [vmem:[%s2789 + $0x4] sm:$0xf]
    %v2792 = vld [vmem:[%s2789 + $0x8] sm:$0xf]
    %v2793 = vld [vmem:[%s2789 + $0xc] sm:$0xf]
    %v2798 = vunpack.c.l.b16 %v2790
    %v2799 = vunpack.c.l.b16 %v2791
    %v2800 = vunpack.c.l.b16 %v2792
    %v2801 = vunpack.c.l.b16 %v2793
    %v2802 = vpack.c.b16 %v2799, %v2798
    %v2803 = vpack.c.b16 %v2801, %v2800
    %2806 = vmatprep.subr.bf16.mxu0 0
    %2807 = vmatpush1.bf16.msra.mxu0 0
    %2808 = vmatprep.subr.bf16.mxu0 0
    %2809 = vmatpush1.bf16.msra.mxu0 0
    %2810 = vmatprep.subr.bf16.mxu0 0
    %2811 = vmatpush1.bf16.msra.mxu0 0
    %2812 = vmatprep.subr.bf16.mxu0 0
    %2813 = vmatpush1.bf16.msra.mxu0 0
    %2814 = vmatprep.subr.bf16.mxu0 0
    %2815 = vmatpush1.bf16.msra.mxu0 0
    %2816 = vmatprep.subr.bf16.mxu0 0
    %2817 = vmatpush1.bf16.msra.mxu0 0
    %2818 = vmatprep.subr.bf16.mxu0 0
    %2819 = vmatpush1.bf16.msra.mxu0 %v2803
    %2820 = vmatprep.subr.bf16.mxu0 0
    %2821 = vmatpush1.bf16.msra.mxu0 %v2802
    %2822 = vmatprep.subr.bf16.mxu0 0
    %2823 = vmatpush2.bf16.msra.mxu0 0
    %2824 = vmatprep.subr.bf16.mxu0 0
    %2825 = vmatpush2.bf16.msra.mxu0 0
    %2826 = vmatprep.subr.bf16.mxu0 0
    %2827 = vmatpush2.bf16.msra.mxu0 0
    %2828 = vmatprep.subr.bf16.mxu0 0
    %2829 = vmatpush2.bf16.msra.mxu0 0
    %2830 = vmatprep.subr.bf16.mxu0 0
    %2831 = vmatpush2.bf16.msra.mxu0 0
    %2832 = vmatprep.subr.bf16.mxu0 0
    %2833 = vmatpush2.bf16.msra.mxu0 0
    %2834 = vmatprep.subr.bf16.mxu0 0
    %2835 = vmatpush2.bf16.msra.mxu0 0
    %2836 = vmatprep.subr.bf16.mxu0 0
    %2837 = vmatpush2.bf16.msra.mxu0 0
    %2838 = vmatprep.mubr.bf16.mxu0 0
    %2839 = vmatmul.mubr.bf16.gmra.mxu0 %v2276
    %v2840 = vpop.f32.mrf.mxu0
    %v2841 = vadd.f32 0.0, %v2840
    %v2842 = vpop.f32.mrf.mxu0
    %v2843 = vpop.f32.mrf.mxu0
    %v2844 = vadd.f32 0.0, %v2843
    %v2845 = vpop.f32.mrf.mxu0
    %2846 = vmatprep.mubr.bf16.mxu0 0
    %2847 = vmatmul.mubr.bf16.gmra.mxu0 %v2279
    %v2848 = vpop.f32.mrf.mxu0
    %v2849 = vadd.f32 0.0, %v2848
    %v2850 = vpop.f32.mrf.mxu0
    %v2851 = vpop.f32.mrf.mxu0
    %v2852 = vpop.f32.mrf.mxu0
    %2853 = vdwg.mxu0
    %v2855 = vsel %vm88, %v2711, 0
    %v2858 = vsel %vm88, %v2714, 0
    %v2861 = vsel %vm88, %v2719, 0
    %v2864 = vsel %vm88, %v2776, 0
    %v2867 = vsel %vm88, %v2779, 0
    %v2870 = vsel %vm88, %v2784, 0
    %2872 = vmatprep.subr.mxu0 0.0
    %2873 = vmatpush1.xpose.msra.mxu0 0.0
    %2874 = vmatprep.subr.mxu0 0.0
    %2875 = vmatpush1.xpose.msra.mxu0 0.0
    %2876 = vmatprep.subr.mxu0 0.0
    %2877 = vmatpush1.xpose.msra.mxu0 0.0
    %2878 = vmatprep.subr.mxu0 0.0
    %2879 = vmatpush1.xpose.msra.mxu0 0.0
    %2880 = vmatprep.subr.mxu0 0.0
    %2881 = vmatpush1.xpose.msra.mxu0 0.0
    %2882 = vmatprep.subr.mxu0 0.0
    %2883 = vmatpush1.xpose.msra.mxu0 0.0
    %2884 = vmatprep.subr.mxu0 0.0
    %2885 = vmatpush1.xpose.msra.mxu0 0.0
    %2886 = vmatprep.subr.mxu0 0.0
    %2887 = vmatpush1.xpose.msra.mxu0 0.0
    %2888 = vmatprep.subr.mxu0 0.0
    %2889 = vmatpush1.xpose.msra.mxu0 0.0
    %2890 = vmatprep.subr.mxu0 0.0
    %2891 = vmatpush1.xpose.msra.mxu0 0.0
    %2892 = vmatprep.subr.mxu0 0.0
    %2893 = vmatpush1.xpose.msra.mxu0 0.0
    %2894 = vmatprep.subr.mxu0 0.0
    %2895 = vmatpush1.xpose.msra.mxu0 0.0
    %2896 = vmatprep.subr.mxu0 0.0
    %2897 = vmatpush1.xpose.msra.mxu0 0.0
    %2898 = vmatprep.subr.mxu0 0.0
    %2899 = vmatpush1.xpose.msra.mxu0 %v2870
    %2900 = vmatprep.subr.mxu0 0.0
    %2901 = vmatpush1.xpose.msra.mxu0 %v2867
    %2902 = vmatprep.subr.mxu0 0.0
    %2903 = vmatpush1.xpose.msra.mxu0 %v2864
    %2904 = vmatprep.subr.mxu0 0.0
    %2905 = vmatpush2.xpose.msra.mxu0 0.0
    %2906 = vmatprep.subr.mxu0 0.0
    %2907 = vmatpush2.xpose.msra.mxu0 0.0
    %2908 = vmatprep.subr.mxu0 0.0
    %2909 = vmatpush2.xpose.msra.mxu0 0.0
    %2910 = vmatprep.subr.mxu0 0.0
    %2911 = vmatpush2.xpose.msra.mxu0 0.0
    %2912 = vmatprep.subr.mxu0 0.0
    %2913 = vmatpush2.xpose.msra.mxu0 0.0
    %2914 = vmatprep.subr.mxu0 0.0
    %2915 = vmatpush2.xpose.msra.mxu0 0.0
    %2916 = vmatprep.subr.mxu0 0.0
    %2917 = vmatpush2.xpose.msra.mxu0 0.0
    %2918 = vmatprep.subr.mxu0 0.0
    %2919 = vmatpush2.xpose.msra.mxu0 0.0
    %2920 = vmatprep.subr.mxu0 0.0
    %2921 = vmatpush2.xpose.msra.mxu0 0.0
    %2922 = vmatprep.subr.mxu0 0.0
    %2923 = vmatpush2.xpose.msra.mxu0 0.0
    %2924 = vmatprep.subr.mxu0 0.0
    %2925 = vmatpush2.xpose.msra.mxu0 0.0
    %2926 = vmatprep.subr.mxu0 0.0
    %2927 = vmatpush2.xpose.msra.mxu0 0.0
    %2928 = vmatprep.subr.mxu0 0.0
    %2929 = vmatpush2.xpose.msra.mxu0 0.0
    %2930 = vmatprep.subr.mxu0 0.0
    %2931 = vmatpush2.xpose.msra.mxu0 0.0
    %2932 = vmatprep.subr.mxu0 0.0
    %2933 = vmatpush2.xpose.msra.mxu0 0.0
    %2934 = vmatprep.subr.mxu0 0.0
    %2935 = vmatpush2.xpose.msra.mxu0 0.0
    %2936 = vmatprep.mubr.f32.mxu0 0.0
    %2937 = vmatmul.mubr.f32.gmra.mxu0 %v2855
    %v2938 = vpop.f32.mrf.mxu0
    %v2939 = vadd.f32 0.0, %v2938
    %v2940 = vpop.f32.mrf.mxu0
    %2941 = vmatprep.mubr.f32.mxu0 0.0
    %2942 = vmatmul.mubr.f32.gmra.mxu0 %v2858
    %v2943 = vpop.f32.mrf.mxu0
    %v2944 = vadd.f32 0.0, %v2943
    %v2945 = vpop.f32.mrf.mxu0
    %2946 = vmatprep.mubr.f32.mxu0 0.0
    %2947 = vmatmul.mubr.f32.gmra.mxu0 %v2861
    %v2948 = vpop.f32.mrf.mxu0
    %v2949 = vadd.f32 0.0, %v2948
    %v2950 = vpop.f32.mrf.mxu0
    %2951 = vdwg.mxu0
    %v2952 = vmul.f32 %v2939, %v45
    %v2953 = vmul.f32 %v2944, %v46
    %v2954 = vmul.f32 %v2949, %v47
    %v2956 = vsel %vm374, %v2952, 0
    %v2959 = vsel %vm374, %v2953, 0
    %v2962 = vsel %vm374, %v2954, 0
    %v2965 = vsel %vm384, %v2849, 0
    %2967 = vmatprep.subr.mxu0 0.0
    %2968 = vmatpush1.msra.mxu0 0.0
    %2969 = vmatprep.subr.mxu0 0.0
    %2970 = vmatpush1.msra.mxu0 0.0
    %2971 = vmatprep.subr.mxu0 0.0
    %2972 = vmatpush1.msra.mxu0 0.0
    %2973 = vmatprep.subr.mxu0 0.0
    %2974 = vmatpush1.msra.mxu0 0.0
    %2975 = vmatprep.subr.mxu0 0.0
    %2976 = vmatpush1.msra.mxu0 0.0
    %2977 = vmatprep.subr.mxu0 0.0
    %2978 = vmatpush1.msra.mxu0 0.0
    %2979 = vmatprep.subr.mxu0 0.0
    %2980 = vmatpush1.msra.mxu0 0.0
    %2981 = vmatprep.subr.mxu0 0.0
    %2982 = vmatpush1.msra.mxu0 0.0
    %2983 = vmatprep.subr.mxu0 0.0
    %2984 = vmatpush1.msra.mxu0 0.0
    %2985 = vmatprep.subr.mxu0 0.0
    %2986 = vmatpush1.msra.mxu0 0.0
    %2987 = vmatprep.subr.mxu0 0.0
    %2988 = vmatpush1.msra.mxu0 0.0
    %2989 = vmatprep.subr.mxu0 0.0
    %2990 = vmatpush1.msra.mxu0 0.0
    %2991 = vmatprep.subr.mxu0 0.0
    %2992 = vmatpush1.msra.mxu0 0.0
    %2993 = vmatprep.subr.mxu0 0.0
    %2994 = vmatpush1.msra.mxu0 %v2965
    %2995 = vmatprep.subr.mxu0 0.0
    %2996 = vmatpush1.msra.mxu0 %v2844
    %2997 = vmatprep.subr.mxu0 0.0
    %2998 = vmatpush1.msra.mxu0 %v2841
    %2999 = vmatprep.subr.mxu0 0.0
    %3000 = vmatpush2.msra.mxu0 0.0
    %3001 = vmatprep.subr.mxu0 0.0
    %3002 = vmatpush2.msra.mxu0 0.0
    %3003 = vmatprep.subr.mxu0 0.0
    %3004 = vmatpush2.msra.mxu0 0.0
    %3005 = vmatprep.subr.mxu0 0.0
    %3006 = vmatpush2.msra.mxu0 0.0
    %3007 = vmatprep.subr.mxu0 0.0
    %3008 = vmatpush2.msra.mxu0 0.0
    %3009 = vmatprep.subr.mxu0 0.0
    %3010 = vmatpush2.msra.mxu0 0.0
    %3011 = vmatprep.subr.mxu0 0.0
    %3012 = vmatpush2.msra.mxu0 0.0
    %3013 = vmatprep.subr.mxu0 0.0
    %3014 = vmatpush2.msra.mxu0 0.0
    %3015 = vmatprep.subr.mxu0 0.0
    %3016 = vmatpush2.msra.mxu0 0.0
    %3017 = vmatprep.subr.mxu0 0.0
    %3018 = vmatpush2.msra.mxu0 0.0
    %3019 = vmatprep.subr.mxu0 0.0
    %3020 = vmatpush2.msra.mxu0 0.0
    %3021 = vmatprep.subr.mxu0 0.0
    %3022 = vmatpush2.msra.mxu0 0.0
    %3023 = vmatprep.subr.mxu0 0.0
    %3024 = vmatpush2.msra.mxu0 0.0
    %3025 = vmatprep.subr.mxu0 0.0
    %3026 = vmatpush2.msra.mxu0 0.0
    %3027 = vmatprep.subr.mxu0 0.0
    %3028 = vmatpush2.msra.mxu0 0.0
    %3029 = vmatprep.subr.mxu0 0.0
    %3030 = vmatpush2.msra.mxu0 0.0
    %3031 = vmatprep.mubr.f32.mxu0 0.0
    %3032 = vmatmul.mubr.f32.gmra.mxu0 %v2956
    %v3033 = vpop.f32.mrf.mxu0
    %v3034 = vadd.f32 0.0, %v3033
    %v3035 = vpop.f32.mrf.mxu0
    %3036 = vmatprep.mubr.f32.mxu0 0.0
    %3037 = vmatmul.mubr.f32.gmra.mxu0 %v2959
    %v3038 = vpop.f32.mrf.mxu0
    %v3039 = vadd.f32 0.0, %v3038
    %v3040 = vpop.f32.mrf.mxu0
    %3041 = vmatprep.mubr.f32.mxu0 0.0
    %3042 = vmatmul.mubr.f32.gmra.mxu0 %v2962
    %v3043 = vpop.f32.mrf.mxu0
    %v3044 = vadd.f32 0.0, %v3043
    %v3045 = vpop.f32.mrf.mxu0
    %3046 = vdwg.mxu0
    %v3047 = vpack.c.bf16 %v3039, %v3034
    %v3048 = vpack.c.bf16 %v3044, %v3044
    %s3049 = scalar_lea.vmem [#allocation2], 368
    %v3050 = vld [vmem:[%s3049] sm:$0xf]
    %v3051 = vld [vmem:[%s3049 + $0x4] sm:$0xf]
    %v3052 = vld [vmem:[%s3049 + $0x8] sm:$0xf]
    %v3053 = vld [vmem:[%s3049 + $0xc] sm:$0xf]
    %v3058 = vunpack.c.l.b16 %v3050
    %v3059 = vunpack.c.l.b16 %v3051
    %v3060 = vunpack.c.l.b16 %v3052
    %v3061 = vunpack.c.l.b16 %v3053
    %v3062 = vpack.c.b16 %v3059, %v3058
    %v3063 = vpack.c.b16 %v3061, %v3060
    %v3067 = vsel %vm88, %v3047, 0
    %v3070 = vsel %vm88, %v3048, 0
    %3072 = vmatprep.subr.bf16.mxu0 0
    %3073 = vmatpush1.bf16.msra.mxu0 0
    %3074 = vmatprep.subr.bf16.mxu0 0
    %3075 = vmatpush1.bf16.msra.mxu0 0
    %3076 = vmatprep.subr.bf16.mxu0 0
    %3077 = vmatpush1.bf16.msra.mxu0 0
    %3078 = vmatprep.subr.bf16.mxu0 0
    %3079 = vmatpush1.bf16.msra.mxu0 0
    %3080 = vmatprep.subr.bf16.mxu0 0
    %3081 = vmatpush1.bf16.msra.mxu0 0
    %3082 = vmatprep.subr.bf16.mxu0 0
    %3083 = vmatpush1.bf16.msra.mxu0 0
    %3084 = vmatprep.subr.bf16.mxu0 0
    %3085 = vmatpush1.bf16.msra.mxu0 %v3063
    %3086 = vmatprep.subr.bf16.mxu0 0
    %3087 = vmatpush1.bf16.msra.mxu0 %v3062
    %3088 = vmatprep.subr.bf16.mxu0 0
    %3089 = vmatpush2.bf16.msra.mxu0 0
    %3090 = vmatprep.subr.bf16.mxu0 0
    %3091 = vmatpush2.bf16.msra.mxu0 0
    %3092 = vmatprep.subr.bf16.mxu0 0
    %3093 = vmatpush2.bf16.msra.mxu0 0
    %3094 = vmatprep.subr.bf16.mxu0 0
    %3095 = vmatpush2.bf16.msra.mxu0 0
    %3096 = vmatprep.subr.bf16.mxu0 0
    %3097 = vmatpush2.bf16.msra.mxu0 0
    %3098 = vmatprep.subr.bf16.mxu0 0
    %3099 = vmatpush2.bf16.msra.mxu0 0
    %3100 = vmatprep.subr.bf16.mxu0 0
    %3101 = vmatpush2.bf16.msra.mxu0 0
    %3102 = vmatprep.subr.bf16.mxu0 0
    %3103 = vmatpush2.bf16.msra.mxu0 0
    %3104 = vmatprep.mubr.bf16.mxu0 0
    %3105 = vmatmul.mubr.bf16.gmra.mxu0 %v3067
    %v3106 = vpop.f32.mrf.mxu0
    %v3107 = vadd.f32 0.0, %v3106
    %v3108 = vpop.f32.mrf.mxu0
    %v3109 = vpop.f32.mrf.mxu0
    %v3110 = vadd.f32 0.0, %v3109
    %v3111 = vpop.f32.mrf.mxu0
    %3112 = vmatprep.mubr.bf16.mxu0 0
    %3113 = vmatmul.mubr.bf16.gmra.mxu0 %v3070
    %v3114 = vpop.f32.mrf.mxu0
    %v3115 = vadd.f32 0.0, %v3114
    %v3116 = vpop.f32.mrf.mxu0
    %v3117 = vpop.f32.mrf.mxu0
    %v3118 = vpop.f32.mrf.mxu0
    %3119 = vdwg.mxu0
    %v3124 = vunpack.c.l.b16 %v2655
    %v3125 = vunpack.c.l.b16 %v2656
    %v3126 = vunpack.c.l.b16 %v2657
    %v3127 = vunpack.c.l.b16 %v2658
    %v3128 = vpack.c.b16 %v3125, %v3124
    %v3129 = vpack.c.b16 %v3127, %v3126
    %v3133 = vsel %vm88, %v2652, 0
    %v3136 = vsel %vm88, %v2653, 0
    %3138 = vmatprep.subr.bf16.mxu0 0
    %3139 = vmatpush1.bf16.msra.mxu0 0
    %3140 = vmatprep.subr.bf16.mxu0 0
    %3141 = vmatpush1.bf16.msra.mxu0 0
    %3142 = vmatprep.subr.bf16.mxu0 0
    %3143 = vmatpush1.bf16.msra.mxu0 0
    %3144 = vmatprep.subr.bf16.mxu0 0
    %3145 = vmatpush1.bf16.msra.mxu0 0
    %3146 = vmatprep.subr.bf16.mxu0 0
    %3147 = vmatpush1.bf16.msra.mxu0 0
    %3148 = vmatprep.subr.bf16.mxu0 0
    %3149 = vmatpush1.bf16.msra.mxu0 0
    %3150 = vmatprep.subr.bf16.mxu0 0
    %3151 = vmatpush1.bf16.msra.mxu0 %v3129
    %3152 = vmatprep.subr.bf16.mxu0 0
    %3153 = vmatpush1.bf16.msra.mxu0 %v3128
    %3154 = vmatprep.subr.bf16.mxu0 0
    %3155 = vmatpush2.bf16.msra.mxu0 0
    %3156 = vmatprep.subr.bf16.mxu0 0
    %3157 = vmatpush2.bf16.msra.mxu0 0
    %3158 = vmatprep.subr.bf16.mxu0 0
    %3159 = vmatpush2.bf16.msra.mxu0 0
    %3160 = vmatprep.subr.bf16.mxu0 0
    %3161 = vmatpush2.bf16.msra.mxu0 0
    %3162 = vmatprep.subr.bf16.mxu0 0
    %3163 = vmatpush2.bf16.msra.mxu0 0
    %3164 = vmatprep.subr.bf16.mxu0 0
    %3165 = vmatpush2.bf16.msra.mxu0 0
    %3166 = vmatprep.subr.bf16.mxu0 0
    %3167 = vmatpush2.bf16.msra.mxu0 0
    %3168 = vmatprep.subr.bf16.mxu0 0
    %3169 = vmatpush2.bf16.msra.mxu0 0
    %3170 = vmatprep.mubr.bf16.mxu0 0
    %3171 = vmatmul.mubr.bf16.gmra.mxu0 %v3133
    %v3172 = vpop.f32.mrf.mxu0
    %v3173 = vadd.f32 %v3107, %v3172
    %v3174 = vpop.f32.mrf.mxu0
    %v3175 = vpop.f32.mrf.mxu0
    %v3176 = vadd.f32 %v3110, %v3175
    %v3177 = vpop.f32.mrf.mxu0
    %3178 = vmatprep.mubr.bf16.mxu0 0
    %3179 = vmatmul.mubr.bf16.gmra.mxu0 %v3136
    %v3180 = vpop.f32.mrf.mxu0
    %v3181 = vadd.f32 %v3115, %v3180
    %v3182 = vpop.f32.mrf.mxu0
    %v3183 = vpop.f32.mrf.mxu0
    %v3184 = vpop.f32.mrf.mxu0
    %3185 = vdwg.mxu0
    %s3186 = scalar_lea.vmem [#allocation2], 384
    %v3187 = vld [vmem:[%s3186] sm:$0xf]
    %v3188 = vld [vmem:[%s3186 + $0x4] sm:$0xf]
    %v3189 = vld [vmem:[%s3186 + $0x8] sm:$0xf]
    %v3190 = vld [vmem:[%s3186 + $0xc] sm:$0xf]
    %v3195 = vunpack.c.l.b16 %v3187
    %v3196 = vunpack.c.l.b16 %v3188
    %v3197 = vunpack.c.l.b16 %v3189
    %v3198 = vunpack.c.l.b16 %v3190
    %v3199 = vpack.c.b16 %v3196, %v3195
    %v3200 = vpack.c.b16 %v3198, %v3197
    %3203 = vmatprep.subr.bf16.mxu0 0
    %3204 = vmatpush1.bf16.msra.mxu0 0
    %3205 = vmatprep.subr.bf16.mxu0 0
    %3206 = vmatpush1.bf16.msra.mxu0 0
    %3207 = vmatprep.subr.bf16.mxu0 0
    %3208 = vmatpush1.bf16.msra.mxu0 0
    %3209 = vmatprep.subr.bf16.mxu0 0
    %3210 = vmatpush1.bf16.msra.mxu0 0
    %3211 = vmatprep.subr.bf16.mxu0 0
    %3212 = vmatpush1.bf16.msra.mxu0 0
    %3213 = vmatprep.subr.bf16.mxu0 0
    %3214 = vmatpush1.bf16.msra.mxu0 0
    %3215 = vmatprep.subr.bf16.mxu0 0
    %3216 = vmatpush1.bf16.msra.mxu0 %v3200
    %3217 = vmatprep.subr.bf16.mxu0 0
    %3218 = vmatpush1.bf16.msra.mxu0 %v3199
    %3219 = vmatprep.subr.bf16.mxu0 0
    %3220 = vmatpush2.bf16.msra.mxu0 0
    %3221 = vmatprep.subr.bf16.mxu0 0
    %3222 = vmatpush2.bf16.msra.mxu0 0
    %3223 = vmatprep.subr.bf16.mxu0 0
    %3224 = vmatpush2.bf16.msra.mxu0 0
    %3225 = vmatprep.subr.bf16.mxu0 0
    %3226 = vmatpush2.bf16.msra.mxu0 0
    %3227 = vmatprep.subr.bf16.mxu0 0
    %3228 = vmatpush2.bf16.msra.mxu0 0
    %3229 = vmatprep.subr.bf16.mxu0 0
    %3230 = vmatpush2.bf16.msra.mxu0 0
    %3231 = vmatprep.subr.bf16.mxu0 0
    %3232 = vmatpush2.bf16.msra.mxu0 0
    %3233 = vmatprep.subr.bf16.mxu0 0
    %3234 = vmatpush2.bf16.msra.mxu0 0
    %3235 = vmatprep.mubr.bf16.mxu0 0
    %3236 = vmatmul.mubr.bf16.gmra.mxu0 %v2276
    %v3237 = vpop.f32.mrf.mxu0
    %v3238 = vadd.f32 0.0, %v3237
    %v3239 = vpop.f32.mrf.mxu0
    %v3240 = vpop.f32.mrf.mxu0
    %v3241 = vadd.f32 0.0, %v3240
    %v3242 = vpop.f32.mrf.mxu0
    %3243 = vmatprep.mubr.bf16.mxu0 0
    %3244 = vmatmul.mubr.bf16.gmra.mxu0 %v2279
    %v3245 = vpop.f32.mrf.mxu0
    %v3246 = vadd.f32 0.0, %v3245
    %v3247 = vpop.f32.mrf.mxu0
    %v3248 = vpop.f32.mrf.mxu0
    %v3249 = vpop.f32.mrf.mxu0
    %3250 = vdwg.mxu0
    %s3251 = scalar_lea.vmem [#allocation2], 400
    %v3252 = vld [vmem:[%s3251] sm:$0xf]
    %v3253 = vld [vmem:[%s3251 + $0x4] sm:$0xf]
    %v3254 = vld [vmem:[%s3251 + $0x8] sm:$0xf]
    %v3255 = vld [vmem:[%s3251 + $0xc] sm:$0xf]
    %v3260 = vunpack.c.l.b16 %v3252
    %v3261 = vunpack.c.l.b16 %v3253
    %v3262 = vunpack.c.l.b16 %v3254
    %v3263 = vunpack.c.l.b16 %v3255
    %v3264 = vpack.c.b16 %v3261, %v3260
    %v3265 = vpack.c.b16 %v3263, %v3262
    %3268 = vmatprep.subr.bf16.mxu0 0
    %3269 = vmatpush1.bf16.msra.mxu0 0
    %3270 = vmatprep.subr.bf16.mxu0 0
    %3271 = vmatpush1.bf16.msra.mxu0 0
    %3272 = vmatprep.subr.bf16.mxu0 0
    %3273 = vmatpush1.bf16.msra.mxu0 0
    %3274 = vmatprep.subr.bf16.mxu0 0
    %3275 = vmatpush1.bf16.msra.mxu0 0
    %3276 = vmatprep.subr.bf16.mxu0 0
    %3277 = vmatpush1.bf16.msra.mxu0 0
    %3278 = vmatprep.subr.bf16.mxu0 0
    %3279 = vmatpush1.bf16.msra.mxu0 0
    %3280 = vmatprep.subr.bf16.mxu0 0
    %3281 = vmatpush1.bf16.msra.mxu0 %v3265
    %3282 = vmatprep.subr.bf16.mxu0 0
    %3283 = vmatpush1.bf16.msra.mxu0 %v3264
    %3284 = vmatprep.subr.bf16.mxu0 0
    %3285 = vmatpush2.bf16.msra.mxu0 0
    %3286 = vmatprep.subr.bf16.mxu0 0
    %3287 = vmatpush2.bf16.msra.mxu0 0
    %3288 = vmatprep.subr.bf16.mxu0 0
    %3289 = vmatpush2.bf16.msra.mxu0 0
    %3290 = vmatprep.subr.bf16.mxu0 0
    %3291 = vmatpush2.bf16.msra.mxu0 0
    %3292 = vmatprep.subr.bf16.mxu0 0
    %3293 = vmatpush2.bf16.msra.mxu0 0
    %3294 = vmatprep.subr.bf16.mxu0 0
    %3295 = vmatpush2.bf16.msra.mxu0 0
    %3296 = vmatprep.subr.bf16.mxu0 0
    %3297 = vmatpush2.bf16.msra.mxu0 0
    %3298 = vmatprep.subr.bf16.mxu0 0
    %3299 = vmatpush2.bf16.msra.mxu0 0
    %3300 = vmatprep.mubr.bf16.mxu0 0
    %3301 = vmatmul.mubr.bf16.gmra.mxu0 %v2276
    %v3302 = vpop.f32.mrf.mxu0
    %v3303 = vadd.f32 0.0, %v3302
    %v3304 = vpop.f32.mrf.mxu0
    %v3305 = vpop.f32.mrf.mxu0
    %v3306 = vadd.f32 0.0, %v3305
    %v3307 = vpop.f32.mrf.mxu0
    %3308 = vmatprep.mubr.bf16.mxu0 0
    %3309 = vmatmul.mubr.bf16.gmra.mxu0 %v2279
    %v3310 = vpop.f32.mrf.mxu0
    %v3311 = vadd.f32 0.0, %v3310
    %v3312 = vpop.f32.mrf.mxu0
    %v3313 = vpop.f32.mrf.mxu0
    %v3314 = vpop.f32.mrf.mxu0
    %3315 = vdwg.mxu0
    %s3316 = scalar_lea.vmem [#allocation2], 416
    %v3317 = vld [vmem:[%s3316] sm:$0xf]
    %v3318 = vld [vmem:[%s3316 + $0x4] sm:$0xf]
    %v3319 = vld [vmem:[%s3316 + $0x8] sm:$0xf]
    %v3320 = vld [vmem:[%s3316 + $0xc] sm:$0xf]
    %v3325 = vunpack.c.l.b16 %v3317
    %v3326 = vunpack.c.l.b16 %v3318
    %v3327 = vunpack.c.l.b16 %v3319
    %v3328 = vunpack.c.l.b16 %v3320
    %v3329 = vpack.c.b16 %v3326, %v3325
    %v3330 = vpack.c.b16 %v3328, %v3327
    %3333 = vmatprep.subr.bf16.mxu0 0
    %3334 = vmatpush1.bf16.msra.mxu0 0
    %3335 = vmatprep.subr.bf16.mxu0 0
    %3336 = vmatpush1.bf16.msra.mxu0 0
    %3337 = vmatprep.subr.bf16.mxu0 0
    %3338 = vmatpush1.bf16.msra.mxu0 0
    %3339 = vmatprep.subr.bf16.mxu0 0
    %3340 = vmatpush1.bf16.msra.mxu0 0
    %3341 = vmatprep.subr.bf16.mxu0 0
    %3342 = vmatpush1.bf16.msra.mxu0 0
    %3343 = vmatprep.subr.bf16.mxu0 0
    %3344 = vmatpush1.bf16.msra.mxu0 0
    %3345 = vmatprep.subr.bf16.mxu0 0
    %3346 = vmatpush1.bf16.msra.mxu0 %v3330
    %3347 = vmatprep.subr.bf16.mxu0 0
    %3348 = vmatpush1.bf16.msra.mxu0 %v3329
    %3349 = vmatprep.subr.bf16.mxu0 0
    %3350 = vmatpush2.bf16.msra.mxu0 0
    %3351 = vmatprep.subr.bf16.mxu0 0
    %3352 = vmatpush2.bf16.msra.mxu0 0
    %3353 = vmatprep.subr.bf16.mxu0 0
    %3354 = vmatpush2.bf16.msra.mxu0 0
    %3355 = vmatprep.subr.bf16.mxu0 0
    %3356 = vmatpush2.bf16.msra.mxu0 0
    %3357 = vmatprep.subr.bf16.mxu0 0
    %3358 = vmatpush2.bf16.msra.mxu0 0
    %3359 = vmatprep.subr.bf16.mxu0 0
    %3360 = vmatpush2.bf16.msra.mxu0 0
    %3361 = vmatprep.subr.bf16.mxu0 0
    %3362 = vmatpush2.bf16.msra.mxu0 0
    %3363 = vmatprep.subr.bf16.mxu0 0
    %3364 = vmatpush2.bf16.msra.mxu0 0
    %3365 = vmatprep.mubr.bf16.mxu0 0
    %3366 = vmatmul.mubr.bf16.gmra.mxu0 %v2276
    %v3367 = vpop.f32.mrf.mxu0
    %v3368 = vadd.f32 0.0, %v3367
    %v3369 = vpop.f32.mrf.mxu0
    %v3370 = vpop.f32.mrf.mxu0
    %v3371 = vadd.f32 0.0, %v3370
    %v3372 = vpop.f32.mrf.mxu0
    %3373 = vmatprep.mubr.bf16.mxu0 0
    %3374 = vmatmul.mubr.bf16.gmra.mxu0 %v2279
    %v3375 = vpop.f32.mrf.mxu0
    %v3376 = vadd.f32 0.0, %v3375
    %v3377 = vpop.f32.mrf.mxu0
    %v3378 = vpop.f32.mrf.mxu0
    %v3379 = vpop.f32.mrf.mxu0
    %3380 = vdwg.mxu0
    %v3382 = vsel %vm88, %v3238, 0
    %v3385 = vsel %vm88, %v3241, 0
    %v3388 = vsel %vm88, %v3246, 0
    %v3391 = vsel %vm88, %v3303, 0
    %v3394 = vsel %vm88, %v3306, 0
    %v3397 = vsel %vm88, %v3311, 0
    %3399 = vmatprep.subr.mxu0 0.0
    %3400 = vmatpush1.xpose.msra.mxu0 0.0
    %3401 = vmatprep.subr.mxu0 0.0
    %3402 = vmatpush1.xpose.msra.mxu0 0.0
    %3403 = vmatprep.subr.mxu0 0.0
    %3404 = vmatpush1.xpose.msra.mxu0 0.0
    %3405 = vmatprep.subr.mxu0 0.0
    %3406 = vmatpush1.xpose.msra.mxu0 0.0
    %3407 = vmatprep.subr.mxu0 0.0
    %3408 = vmatpush1.xpose.msra.mxu0 0.0
    %3409 = vmatprep.subr.mxu0 0.0
    %3410 = vmatpush1.xpose.msra.mxu0 0.0
    %3411 = vmatprep.subr.mxu0 0.0
    %3412 = vmatpush1.xpose.msra.mxu0 0.0
    %3413 = vmatprep.subr.mxu0 0.0
    %3414 = vmatpush1.xpose.msra.mxu0 0.0
    %3415 = vmatprep.subr.mxu0 0.0
    %3416 = vmatpush1.xpose.msra.mxu0 0.0
    %3417 = vmatprep.subr.mxu0 0.0
    %3418 = vmatpush1.xpose.msra.mxu0 0.0
    %3419 = vmatprep.subr.mxu0 0.0
    %3420 = vmatpush1.xpose.msra.mxu0 0.0
    %3421 = vmatprep.subr.mxu0 0.0
    %3422 = vmatpush1.xpose.msra.mxu0 0.0
    %3423 = vmatprep.subr.mxu0 0.0
    %3424 = vmatpush1.xpose.msra.mxu0 0.0
    %3425 = vmatprep.subr.mxu0 0.0
    %3426 = vmatpush1.xpose.msra.mxu0 %v3397
    %3427 = vmatprep.subr.mxu0 0.0
    %3428 = vmatpush1.xpose.msra.mxu0 %v3394
    %3429 = vmatprep.subr.mxu0 0.0
    %3430 = vmatpush1.xpose.msra.mxu0 %v3391
    %3431 = vmatprep.subr.mxu0 0.0
    %3432 = vmatpush2.xpose.msra.mxu0 0.0
    %3433 = vmatprep.subr.mxu0 0.0
    %3434 = vmatpush2.xpose.msra.mxu0 0.0
    %3435 = vmatprep.subr.mxu0 0.0
    %3436 = vmatpush2.xpose.msra.mxu0 0.0
    %3437 = vmatprep.subr.mxu0 0.0
    %3438 = vmatpush2.xpose.msra.mxu0 0.0
    %3439 = vmatprep.subr.mxu0 0.0
    %3440 = vmatpush2.xpose.msra.mxu0 0.0
    %3441 = vmatprep.subr.mxu0 0.0
    %3442 = vmatpush2.xpose.msra.mxu0 0.0
    %3443 = vmatprep.subr.mxu0 0.0
    %3444 = vmatpush2.xpose.msra.mxu0 0.0
    %3445 = vmatprep.subr.mxu0 0.0
    %3446 = vmatpush2.xpose.msra.mxu0 0.0
    %3447 = vmatprep.subr.mxu0 0.0
    %3448 = vmatpush2.xpose.msra.mxu0 0.0
    %3449 = vmatprep.subr.mxu0 0.0
    %3450 = vmatpush2.xpose.msra.mxu0 0.0
    %3451 = vmatprep.subr.mxu0 0.0
    %3452 = vmatpush2.xpose.msra.mxu0 0.0
    %3453 = vmatprep.subr.mxu0 0.0
    %3454 = vmatpush2.xpose.msra.mxu0 0.0
    %3455 = vmatprep.subr.mxu0 0.0
    %3456 = vmatpush2.xpose.msra.mxu0 0.0
    %3457 = vmatprep.subr.mxu0 0.0
    %3458 = vmatpush2.xpose.msra.mxu0 0.0
    %3459 = vmatprep.subr.mxu0 0.0
    %3460 = vmatpush2.xpose.msra.mxu0 0.0
    %3461 = vmatprep.subr.mxu0 0.0
    %3462 = vmatpush2.xpose.msra.mxu0 0.0
    %3463 = vmatprep.mubr.f32.mxu0 0.0
    %3464 = vmatmul.mubr.f32.gmra.mxu0 %v3382
    %v3465 = vpop.f32.mrf.mxu0
    %v3466 = vadd.f32 0.0, %v3465
    %v3467 = vpop.f32.mrf.mxu0
    %3468 = vmatprep.mubr.f32.mxu0 0.0
    %3469 = vmatmul.mubr.f32.gmra.mxu0 %v3385
    %v3470 = vpop.f32.mrf.mxu0
    %v3471 = vadd.f32 0.0, %v3470
    %v3472 = vpop.f32.mrf.mxu0
    %3473 = vmatprep.mubr.f32.mxu0 0.0
    %3474 = vmatmul.mubr.f32.gmra.mxu0 %v3388
    %v3475 = vpop.f32.mrf.mxu0
    %v3476 = vadd.f32 0.0, %v3475
    %v3477 = vpop.f32.mrf.mxu0
    %3478 = vdwg.mxu0
    %v3479 = vmul.f32 %v3466, %v45
    %v3480 = vmul.f32 %v3471, %v46
    %v3481 = vmul.f32 %v3476, %v47
    %v3483 = vsel %vm374, %v3479, 0
    %v3486 = vsel %vm374, %v3480, 0
    %v3489 = vsel %vm374, %v3481, 0
    %v3492 = vsel %vm384, %v3376, 0
    %3494 = vmatprep.subr.mxu0 0.0
    %3495 = vmatpush1.msra.mxu0 0.0
    %3496 = vmatprep.subr.mxu0 0.0
    %3497 = vmatpush1.msra.mxu0 0.0
    %3498 = vmatprep.subr.mxu0 0.0
    %3499 = vmatpush1.msra.mxu0 0.0
    %3500 = vmatprep.subr.mxu0 0.0
    %3501 = vmatpush1.msra.mxu0 0.0
    %3502 = vmatprep.subr.mxu0 0.0
    %3503 = vmatpush1.msra.mxu0 0.0
    %3504 = vmatprep.subr.mxu0 0.0
    %3505 = vmatpush1.msra.mxu0 0.0
    %3506 = vmatprep.subr.mxu0 0.0
    %3507 = vmatpush1.msra.mxu0 0.0
    %3508 = vmatprep.subr.mxu0 0.0
    %3509 = vmatpush1.msra.mxu0 0.0
    %3510 = vmatprep.subr.mxu0 0.0
    %3511 = vmatpush1.msra.mxu0 0.0
    %3512 = vmatprep.subr.mxu0 0.0
    %3513 = vmatpush1.msra.mxu0 0.0
    %3514 = vmatprep.subr.mxu0 0.0
    %3515 = vmatpush1.msra.mxu0 0.0
    %3516 = vmatprep.subr.mxu0 0.0
    %3517 = vmatpush1.msra.mxu0 0.0
    %3518 = vmatprep.subr.mxu0 0.0
    %3519 = vmatpush1.msra.mxu0 0.0
    %3520 = vmatprep.subr.mxu0 0.0
    %3521 = vmatpush1.msra.mxu0 %v3492
    %3522 = vmatprep.subr.mxu0 0.0
    %3523 = vmatpush1.msra.mxu0 %v3371
    %3524 = vmatprep.subr.mxu0 0.0
    %3525 = vmatpush1.msra.mxu0 %v3368
    %3526 = vmatprep.subr.mxu0 0.0
    %3527 = vmatpush2.msra.mxu0 0.0
    %3528 = vmatprep.subr.mxu0 0.0
    %3529 = vmatpush2.msra.mxu0 0.0
    %3530 = vmatprep.subr.mxu0 0.0
    %3531 = vmatpush2.msra.mxu0 0.0
    %3532 = vmatprep.subr.mxu0 0.0
    %3533 = vmatpush2.msra.mxu0 0.0
    %3534 = vmatprep.subr.mxu0 0.0
    %3535 = vmatpush2.msra.mxu0 0.0
    %3536 = vmatprep.subr.mxu0 0.0
    %3537 = vmatpush2.msra.mxu0 0.0
    %3538 = vmatprep.subr.mxu0 0.0
    %3539 = vmatpush2.msra.mxu0 0.0
    %3540 = vmatprep.subr.mxu0 0.0
    %3541 = vmatpush2.msra.mxu0 0.0
    %3542 = vmatprep.subr.mxu0 0.0
    %3543 = vmatpush2.msra.mxu0 0.0
    %3544 = vmatprep.subr.mxu0 0.0
    %3545 = vmatpush2.msra.mxu0 0.0
    %3546 = vmatprep.subr.mxu0 0.0
    %3547 = vmatpush2.msra.mxu0 0.0
    %3548 = vmatprep.subr.mxu0 0.0
    %3549 = vmatpush2.msra.mxu0 0.0
    %3550 = vmatprep.subr.mxu0 0.0
    %3551 = vmatpush2.msra.mxu0 0.0
    %3552 = vmatprep.subr.mxu0 0.0
    %3553 = vmatpush2.msra.mxu0 0.0
    %3554 = vmatprep.subr.mxu0 0.0
    %3555 = vmatpush2.msra.mxu0 0.0
    %3556 = vmatprep.subr.mxu0 0.0
    %3557 = vmatpush2.msra.mxu0 0.0
    %3558 = vmatprep.mubr.f32.mxu0 0.0
    %3559 = vmatmul.mubr.f32.gmra.mxu0 %v3483
    %v3560 = vpop.f32.mrf.mxu0
    %v3561 = vadd.f32 0.0, %v3560
    %v3562 = vpop.f32.mrf.mxu0
    %3563 = vmatprep.mubr.f32.mxu0 0.0
    %3564 = vmatmul.mubr.f32.gmra.mxu0 %v3486
    %v3565 = vpop.f32.mrf.mxu0
    %v3566 = vadd.f32 0.0, %v3565
    %v3567 = vpop.f32.mrf.mxu0
    %3568 = vmatprep.mubr.f32.mxu0 0.0
    %3569 = vmatmul.mubr.f32.gmra.mxu0 %v3489
    %v3570 = vpop.f32.mrf.mxu0
    %v3571 = vadd.f32 0.0, %v3570
    %v3572 = vpop.f32.mrf.mxu0
    %3573 = vdwg.mxu0
    %v3574 = vpack.c.bf16 %v3566, %v3561
    %v3575 = vpack.c.bf16 %v3571, %v3571
    %s3576 = scalar_lea.vmem [#allocation2], 432
    %v3577 = vld [vmem:[%s3576] sm:$0xf]
    %v3578 = vld [vmem:[%s3576 + $0x4] sm:$0xf]
    %v3579 = vld [vmem:[%s3576 + $0x8] sm:$0xf]
    %v3580 = vld [vmem:[%s3576 + $0xc] sm:$0xf]
    %v3585 = vunpack.c.l.b16 %v3577
    %v3586 = vunpack.c.l.b16 %v3578
    %v3587 = vunpack.c.l.b16 %v3579
    %v3588 = vunpack.c.l.b16 %v3580
    %v3589 = vpack.c.b16 %v3586, %v3585
    %v3590 = vpack.c.b16 %v3588, %v3587
    %v3594 = vsel %vm88, %v3574, 0
    %v3597 = vsel %vm88, %v3575, 0
    %3599 = vmatprep.subr.bf16.mxu0 0
    %3600 = vmatpush1.bf16.msra.mxu0 0
    %3601 = vmatprep.subr.bf16.mxu0 0
    %3602 = vmatpush1.bf16.msra.mxu0 0
    %3603 = vmatprep.subr.bf16.mxu0 0
    %3604 = vmatpush1.bf16.msra.mxu0 0
    %3605 = vmatprep.subr.bf16.mxu0 0
    %3606 = vmatpush1.bf16.msra.mxu0 0
    %3607 = vmatprep.subr.bf16.mxu0 0
    %3608 = vmatpush1.bf16.msra.mxu0 0
    %3609 = vmatprep.subr.bf16.mxu0 0
    %3610 = vmatpush1.bf16.msra.mxu0 0
    %3611 = vmatprep.subr.bf16.mxu0 0
    %3612 = vmatpush1.bf16.msra.mxu0 %v3590
    %3613 = vmatprep.subr.bf16.mxu0 0
    %3614 = vmatpush1.bf16.msra.mxu0 %v3589
    %3615 = vmatprep.subr.bf16.mxu0 0
    %3616 = vmatpush2.bf16.msra.mxu0 0
    %3617 = vmatprep.subr.bf16.mxu0 0
    %3618 = vmatpush2.bf16.msra.mxu0 0
    %3619 = vmatprep.subr.bf16.mxu0 0
    %3620 = vmatpush2.bf16.msra.mxu0 0
    %3621 = vmatprep.subr.bf16.mxu0 0
    %3622 = vmatpush2.bf16.msra.mxu0 0
    %3623 = vmatprep.subr.bf16.mxu0 0
    %3624 = vmatpush2.bf16.msra.mxu0 0
    %3625 = vmatprep.subr.bf16.mxu0 0
    %3626 = vmatpush2.bf16.msra.mxu0 0
    %3627 = vmatprep.subr.bf16.mxu0 0
    %3628 = vmatpush2.bf16.msra.mxu0 0
    %3629 = vmatprep.subr.bf16.mxu0 0
    %3630 = vmatpush2.bf16.msra.mxu0 0
    %3631 = vmatprep.mubr.bf16.mxu0 0
    %3632 = vmatmul.mubr.bf16.gmra.mxu0 %v3594
    %v3633 = vpop.f32.mrf.mxu0
    %v3634 = vadd.f32 0.0, %v3633
    %v3635 = vpop.f32.mrf.mxu0
    %v3636 = vpop.f32.mrf.mxu0
    %v3637 = vadd.f32 0.0, %v3636
    %v3638 = vpop.f32.mrf.mxu0
    %3639 = vmatprep.mubr.bf16.mxu0 0
    %3640 = vmatmul.mubr.bf16.gmra.mxu0 %v3597
    %v3641 = vpop.f32.mrf.mxu0
    %v3642 = vadd.f32 0.0, %v3641
    %v3643 = vpop.f32.mrf.mxu0
    %v3644 = vpop.f32.mrf.mxu0
    %v3645 = vpop.f32.mrf.mxu0
    %3646 = vdwg.mxu0
    %v3647 = vadd.f32 %v3173, %v3634
    %v3648 = vadd.f32 %v3176, %v3637
    %v3649 = vadd.f32 %v3181, %v3642
    %s3650 = scalar_lea.vmem [#allocation2], 448
    %v3651 = vld [vmem:[%s3650] sm:$0xf]
    %v3652 = vld [vmem:[%s3650 + $0x4] sm:$0xf]
    %v3653 = vld [vmem:[%s3650 + $0x8] sm:$0xf]
    %v3654 = vld [vmem:[%s3650 + $0xc] sm:$0xf]
    %v3659 = vunpack.c.l.b16 %v3651
    %v3660 = vunpack.c.l.b16 %v3652
    %v3661 = vunpack.c.l.b16 %v3653
    %v3662 = vunpack.c.l.b16 %v3654
    %v3663 = vpack.c.b16 %v3660, %v3659
    %v3664 = vpack.c.b16 %v3662, %v3661
    %3667 = vmatprep.subr.bf16.mxu0 0
    %3668 = vmatpush1.bf16.msra.mxu0 0
    %3669 = vmatprep.subr.bf16.mxu0 0
    %3670 = vmatpush1.bf16.msra.mxu0 0
    %3671 = vmatprep.subr.bf16.mxu0 0
    %3672 = vmatpush1.bf16.msra.mxu0 0
    %3673 = vmatprep.subr.bf16.mxu0 0
    %3674 = vmatpush1.bf16.msra.mxu0 0
    %3675 = vmatprep.subr.bf16.mxu0 0
    %3676 = vmatpush1.bf16.msra.mxu0 0
    %3677 = vmatprep.subr.bf16.mxu0 0
    %3678 = vmatpush1.bf16.msra.mxu0 0
    %3679 = vmatprep.subr.bf16.mxu0 0
    %3680 = vmatpush1.bf16.msra.mxu0 %v3664
    %3681 = vmatprep.subr.bf16.mxu0 0
    %3682 = vmatpush1.bf16.msra.mxu0 %v3663
    %3683 = vmatprep.subr.bf16.mxu0 0
    %3684 = vmatpush2.bf16.msra.mxu0 0
    %3685 = vmatprep.subr.bf16.mxu0 0
    %3686 = vmatpush2.bf16.msra.mxu0 0
    %3687 = vmatprep.subr.bf16.mxu0 0
    %3688 = vmatpush2.bf16.msra.mxu0 0
    %3689 = vmatprep.subr.bf16.mxu0 0
    %3690 = vmatpush2.bf16.msra.mxu0 0
    %3691 = vmatprep.subr.bf16.mxu0 0
    %3692 = vmatpush2.bf16.msra.mxu0 0
    %3693 = vmatprep.subr.bf16.mxu0 0
    %3694 = vmatpush2.bf16.msra.mxu0 0
    %3695 = vmatprep.subr.bf16.mxu0 0
    %3696 = vmatpush2.bf16.msra.mxu0 0
    %3697 = vmatprep.subr.bf16.mxu0 0
    %3698 = vmatpush2.bf16.msra.mxu0 0
    %3699 = vmatprep.mubr.bf16.mxu0 0
    %3700 = vmatmul.mubr.bf16.gmra.mxu0 %v2276
    %v3701 = vpop.f32.mrf.mxu0
    %v3702 = vadd.f32 0.0, %v3701
    %v3703 = vpop.f32.mrf.mxu0
    %v3704 = vpop.f32.mrf.mxu0
    %v3705 = vadd.f32 0.0, %v3704
    %v3706 = vpop.f32.mrf.mxu0
    %3707 = vmatprep.mubr.bf16.mxu0 0
    %3708 = vmatmul.mubr.bf16.gmra.mxu0 %v2279
    %v3709 = vpop.f32.mrf.mxu0
    %v3710 = vadd.f32 0.0, %v3709
    %v3711 = vpop.f32.mrf.mxu0
    %v3712 = vpop.f32.mrf.mxu0
    %v3713 = vpop.f32.mrf.mxu0
    %3714 = vdwg.mxu0
    %s3715 = scalar_lea.vmem [#allocation2], 464
    %v3716 = vld [vmem:[%s3715] sm:$0xf]
    %v3717 = vld [vmem:[%s3715 + $0x4] sm:$0xf]
    %v3718 = vld [vmem:[%s3715 + $0x8] sm:$0xf]
    %v3719 = vld [vmem:[%s3715 + $0xc] sm:$0xf]
    %v3724 = vunpack.c.l.b16 %v3716
    %v3725 = vunpack.c.l.b16 %v3717
    %v3726 = vunpack.c.l.b16 %v3718
    %v3727 = vunpack.c.l.b16 %v3719
    %v3728 = vpack.c.b16 %v3725, %v3724
    %v3729 = vpack.c.b16 %v3727, %v3726
    %3732 = vmatprep.subr.bf16.mxu0 0
    %3733 = vmatpush1.bf16.msra.mxu0 0
    %3734 = vmatprep.subr.bf16.mxu0 0
    %3735 = vmatpush1.bf16.msra.mxu0 0
    %3736 = vmatprep.subr.bf16.mxu0 0
    %3737 = vmatpush1.bf16.msra.mxu0 0
    %3738 = vmatprep.subr.bf16.mxu0 0
    %3739 = vmatpush1.bf16.msra.mxu0 0
    %3740 = vmatprep.subr.bf16.mxu0 0
    %3741 = vmatpush1.bf16.msra.mxu0 0
    %3742 = vmatprep.subr.bf16.mxu0 0
    %3743 = vmatpush1.bf16.msra.mxu0 0
    %3744 = vmatprep.subr.bf16.mxu0 0
    %3745 = vmatpush1.bf16.msra.mxu0 %v3729
    %3746 = vmatprep.subr.bf16.mxu0 0
    %3747 = vmatpush1.bf16.msra.mxu0 %v3728
    %3748 = vmatprep.subr.bf16.mxu0 0
    %3749 = vmatpush2.bf16.msra.mxu0 0
    %3750 = vmatprep.subr.bf16.mxu0 0
    %3751 = vmatpush2.bf16.msra.mxu0 0
    %3752 = vmatprep.subr.bf16.mxu0 0
    %3753 = vmatpush2.bf16.msra.mxu0 0
    %3754 = vmatprep.subr.bf16.mxu0 0
    %3755 = vmatpush2.bf16.msra.mxu0 0
    %3756 = vmatprep.subr.bf16.mxu0 0
    %3757 = vmatpush2.bf16.msra.mxu0 0
    %3758 = vmatprep.subr.bf16.mxu0 0
    %3759 = vmatpush2.bf16.msra.mxu0 0
    %3760 = vmatprep.subr.bf16.mxu0 0
    %3761 = vmatpush2.bf16.msra.mxu0 0
    %3762 = vmatprep.subr.bf16.mxu0 0
    %3763 = vmatpush2.bf16.msra.mxu0 0
    %3764 = vmatprep.mubr.bf16.mxu0 0
    %3765 = vmatmul.mubr.bf16.gmra.mxu0 %v2276
    %v3766 = vpop.f32.mrf.mxu0
    %v3767 = vadd.f32 0.0, %v3766
    %v3768 = vpop.f32.mrf.mxu0
    %v3769 = vpop.f32.mrf.mxu0
    %v3770 = vadd.f32 0.0, %v3769
    %v3771 = vpop.f32.mrf.mxu0
    %3772 = vmatprep.mubr.bf16.mxu0 0
    %3773 = vmatmul.mubr.bf16.gmra.mxu0 %v2279
    %v3774 = vpop.f32.mrf.mxu0
    %v3775 = vadd.f32 0.0, %v3774
    %v3776 = vpop.f32.mrf.mxu0
    %v3777 = vpop.f32.mrf.mxu0
    %v3778 = vpop.f32.mrf.mxu0
    %3779 = vdwg.mxu0
    %s3780 = scalar_lea.vmem [#allocation2], 480
    %v3781 = vld [vmem:[%s3780] sm:$0xf]
    %v3782 = vld [vmem:[%s3780 + $0x4] sm:$0xf]
    %v3783 = vld [vmem:[%s3780 + $0x8] sm:$0xf]
    %v3784 = vld [vmem:[%s3780 + $0xc] sm:$0xf]
    %v3789 = vunpack.c.l.b16 %v3781
    %v3790 = vunpack.c.l.b16 %v3782
    %v3791 = vunpack.c.l.b16 %v3783
    %v3792 = vunpack.c.l.b16 %v3784
    %v3793 = vpack.c.b16 %v3790, %v3789
    %v3794 = vpack.c.b16 %v3792, %v3791
    %3797 = vmatprep.subr.bf16.mxu0 0
    %3798 = vmatpush1.bf16.msra.mxu0 0
    %3799 = vmatprep.subr.bf16.mxu0 0
    %3800 = vmatpush1.bf16.msra.mxu0 0
    %3801 = vmatprep.subr.bf16.mxu0 0
    %3802 = vmatpush1.bf16.msra.mxu0 0
    %3803 = vmatprep.subr.bf16.mxu0 0
    %3804 = vmatpush1.bf16.msra.mxu0 0
    %3805 = vmatprep.subr.bf16.mxu0 0
    %3806 = vmatpush1.bf16.msra.mxu0 0
    %3807 = vmatprep.subr.bf16.mxu0 0
    %3808 = vmatpush1.bf16.msra.mxu0 0
    %3809 = vmatprep.subr.bf16.mxu0 0
    %3810 = vmatpush1.bf16.msra.mxu0 %v3794
    %3811 = vmatprep.subr.bf16.mxu0 0
    %3812 = vmatpush1.bf16.msra.mxu0 %v3793
    %3813 = vmatprep.subr.bf16.mxu0 0
    %3814 = vmatpush2.bf16.msra.mxu0 0
    %3815 = vmatprep.subr.bf16.mxu0 0
    %3816 = vmatpush2.bf16.msra.mxu0 0
    %3817 = vmatprep.subr.bf16.mxu0 0
    %3818 = vmatpush2.bf16.msra.mxu0 0
    %3819 = vmatprep.subr.bf16.mxu0 0
    %3820 = vmatpush2.bf16.msra.mxu0 0
    %3821 = vmatprep.subr.bf16.mxu0 0
    %3822 = vmatpush2.bf16.msra.mxu0 0
    %3823 = vmatprep.subr.bf16.mxu0 0
    %3824 = vmatpush2.bf16.msra.mxu0 0
    %3825 = vmatprep.subr.bf16.mxu0 0
    %3826 = vmatpush2.bf16.msra.mxu0 0
    %3827 = vmatprep.subr.bf16.mxu0 0
    %3828 = vmatpush2.bf16.msra.mxu0 0
    %3829 = vmatprep.mubr.bf16.mxu0 0
    %3830 = vmatmul.mubr.bf16.gmra.mxu0 %v2276
    %v3831 = vpop.f32.mrf.mxu0
    %v3832 = vadd.f32 0.0, %v3831
    %v3833 = vpop.f32.mrf.mxu0
    %v3834 = vpop.f32.mrf.mxu0
    %v3835 = vadd.f32 0.0, %v3834
    %v3836 = vpop.f32.mrf.mxu0
    %3837 = vmatprep.mubr.bf16.mxu0 0
    %3838 = vmatmul.mubr.bf16.gmra.mxu0 %v2279
    %v3839 = vpop.f32.mrf.mxu0
    %v3840 = vadd.f32 0.0, %v3839
    %v3841 = vpop.f32.mrf.mxu0
    %v3842 = vpop.f32.mrf.mxu0
    %v3843 = vpop.f32.mrf.mxu0
    %3844 = vdwg.mxu0
    %v3846 = vsel %vm88, %v3702, 0
    %v3849 = vsel %vm88, %v3705, 0
    %v3852 = vsel %vm88, %v3710, 0
    %v3855 = vsel %vm88, %v3767, 0
    %v3858 = vsel %vm88, %v3770, 0
    %v3861 = vsel %vm88, %v3775, 0
    %3863 = vmatprep.subr.mxu0 0.0
    %3864 = vmatpush1.xpose.msra.mxu0 0.0
    %3865 = vmatprep.subr.mxu0 0.0
    %3866 = vmatpush1.xpose.msra.mxu0 0.0
    %3867 = vmatprep.subr.mxu0 0.0
    %3868 = vmatpush1.xpose.msra.mxu0 0.0
    %3869 = vmatprep.subr.mxu0 0.0
    %3870 = vmatpush1.xpose.msra.mxu0 0.0
    %3871 = vmatprep.subr.mxu0 0.0
    %3872 = vmatpush1.xpose.msra.mxu0 0.0
    %3873 = vmatprep.subr.mxu0 0.0
    %3874 = vmatpush1.xpose.msra.mxu0 0.0
    %3875 = vmatprep.subr.mxu0 0.0
    %3876 = vmatpush1.xpose.msra.mxu0 0.0
    %3877 = vmatprep.subr.mxu0 0.0
    %3878 = vmatpush1.xpose.msra.mxu0 0.0
    %3879 = vmatprep.subr.mxu0 0.0
    %3880 = vmatpush1.xpose.msra.mxu0 0.0
    %3881 = vmatprep.subr.mxu0 0.0
    %3882 = vmatpush1.xpose.msra.mxu0 0.0
    %3883 = vmatprep.subr.mxu0 0.0
    %3884 = vmatpush1.xpose.msra.mxu0 0.0
    %3885 = vmatprep.subr.mxu0 0.0
    %3886 = vmatpush1.xpose.msra.mxu0 0.0
    %3887 = vmatprep.subr.mxu0 0.0
    %3888 = vmatpush1.xpose.msra.mxu0 0.0
    %3889 = vmatprep.subr.mxu0 0.0
    %3890 = vmatpush1.xpose.msra.mxu0 %v3861
    %3891 = vmatprep.subr.mxu0 0.0
    %3892 = vmatpush1.xpose.msra.mxu0 %v3858
    %3893 = vmatprep.subr.mxu0 0.0
    %3894 = vmatpush1.xpose.msra.mxu0 %v3855
    %3895 = vmatprep.subr.mxu0 0.0
    %3896 = vmatpush2.xpose.msra.mxu0 0.0
    %3897 = vmatprep.subr.mxu0 0.0
    %3898 = vmatpush2.xpose.msra.mxu0 0.0
    %3899 = vmatprep.subr.mxu0 0.0
    %3900 = vmatpush2.xpose.msra.mxu0 0.0
    %3901 = vmatprep.subr.mxu0 0.0
    %3902 = vmatpush2.xpose.msra.mxu0 0.0
    %3903 = vmatprep.subr.mxu0 0.0
    %3904 = vmatpush2.xpose.msra.mxu0 0.0
    %3905 = vmatprep.subr.mxu0 0.0
    %3906 = vmatpush2.xpose.msra.mxu0 0.0
    %3907 = vmatprep.subr.mxu0 0.0
    %3908 = vmatpush2.xpose.msra.mxu0 0.0
    %3909 = vmatprep.subr.mxu0 0.0
    %3910 = vmatpush2.xpose.msra.mxu0 0.0
    %3911 = vmatprep.subr.mxu0 0.0
    %3912 = vmatpush2.xpose.msra.mxu0 0.0
    %3913 = vmatprep.subr.mxu0 0.0
    %3914 = vmatpush2.xpose.msra.mxu0 0.0
    %3915 = vmatprep.subr.mxu0 0.0
    %3916 = vmatpush2.xpose.msra.mxu0 0.0
    %3917 = vmatprep.subr.mxu0 0.0
    %3918 = vmatpush2.xpose.msra.mxu0 0.0
    %3919 = vmatprep.subr.mxu0 0.0
    %3920 = vmatpush2.xpose.msra.mxu0 0.0
    %3921 = vmatprep.subr.mxu0 0.0
    %3922 = vmatpush2.xpose.msra.mxu0 0.0
    %3923 = vmatprep.subr.mxu0 0.0
    %3924 = vmatpush2.xpose.msra.mxu0 0.0
    %3925 = vmatprep.subr.mxu0 0.0
    %3926 = vmatpush2.xpose.msra.mxu0 0.0
    %3927 = vmatprep.mubr.f32.mxu0 0.0
    %3928 = vmatmul.mubr.f32.gmra.mxu0 %v3846
    %v3929 = vpop.f32.mrf.mxu0
    %v3930 = vadd.f32 0.0, %v3929
    %v3931 = vpop.f32.mrf.mxu0
    %3932 = vmatprep.mubr.f32.mxu0 0.0
    %3933 = vmatmul.mubr.f32.gmra.mxu0 %v3849
    %v3934 = vpop.f32.mrf.mxu0
    %v3935 = vadd.f32 0.0, %v3934
    %v3936 = vpop.f32.mrf.mxu0
    %3937 = vmatprep.mubr.f32.mxu0 0.0
    %3938 = vmatmul.mubr.f32.gmra.mxu0 %v3852
    %v3939 = vpop.f32.mrf.mxu0
    %v3940 = vadd.f32 0.0, %v3939
    %v3941 = vpop.f32.mrf.mxu0
    %3942 = vdwg.mxu0
    %v3943 = vmul.f32 %v3930, %v45
    %v3944 = vmul.f32 %v3935, %v46
    %v3945 = vmul.f32 %v3940, %v47
    %v3947 = vsel %vm374, %v3943, 0
    %v3950 = vsel %vm374, %v3944, 0
    %v3953 = vsel %vm374, %v3945, 0
    %v3956 = vsel %vm384, %v3840, 0
    %3958 = vmatprep.subr.mxu0 0.0
    %3959 = vmatpush1.msra.mxu0 0.0
    %3960 = vmatprep.subr.mxu0 0.0
    %3961 = vmatpush1.msra.mxu0 0.0
    %3962 = vmatprep.subr.mxu0 0.0
    %3963 = vmatpush1.msra.mxu0 0.0
    %3964 = vmatprep.subr.mxu0 0.0
    %3965 = vmatpush1.msra.mxu0 0.0
    %3966 = vmatprep.subr.mxu0 0.0
    %3967 = vmatpush1.msra.mxu0 0.0
    %3968 = vmatprep.subr.mxu0 0.0
    %3969 = vmatpush1.msra.mxu0 0.0
    %3970 = vmatprep.subr.mxu0 0.0
    %3971 = vmatpush1.msra.mxu0 0.0
    %3972 = vmatprep.subr.mxu0 0.0
    %3973 = vmatpush1.msra.mxu0 0.0
    %3974 = vmatprep.subr.mxu0 0.0
    %3975 = vmatpush1.msra.mxu0 0.0
    %3976 = vmatprep.subr.mxu0 0.0
    %3977 = vmatpush1.msra.mxu0 0.0
    %3978 = vmatprep.subr.mxu0 0.0
    %3979 = vmatpush1.msra.mxu0 0.0
    %3980 = vmatprep.subr.mxu0 0.0
    %3981 = vmatpush1.msra.mxu0 0.0
    %3982 = vmatprep.subr.mxu0 0.0
    %3983 = vmatpush1.msra.mxu0 0.0
    %3984 = vmatprep.subr.mxu0 0.0
    %3985 = vmatpush1.msra.mxu0 %v3956
    %3986 = vmatprep.subr.mxu0 0.0
    %3987 = vmatpush1.msra.mxu0 %v3835
    %3988 = vmatprep.subr.mxu0 0.0
    %3989 = vmatpush1.msra.mxu0 %v3832
    %3990 = vmatprep.subr.mxu0 0.0
    %3991 = vmatpush2.msra.mxu0 0.0
    %3992 = vmatprep.subr.mxu0 0.0
    %3993 = vmatpush2.msra.mxu0 0.0
    %3994 = vmatprep.subr.mxu0 0.0
    %3995 = vmatpush2.msra.mxu0 0.0
    %3996 = vmatprep.subr.mxu0 0.0
    %3997 = vmatpush2.msra.mxu0 0.0
    %3998 = vmatprep.subr.mxu0 0.0
    %3999 = vmatpush2.msra.mxu0 0.0
    %4000 = vmatprep.subr.mxu0 0.0
    %4001 = vmatpush2.msra.mxu0 0.0
    %4002 = vmatprep.subr.mxu0 0.0
    %4003 = vmatpush2.msra.mxu0 0.0
    %4004 = vmatprep.subr.mxu0 0.0
    %4005 = vmatpush2.msra.mxu0 0.0
    %4006 = vmatprep.subr.mxu0 0.0
    %4007 = vmatpush2.msra.mxu0 0.0
    %4008 = vmatprep.subr.mxu0 0.0
    %4009 = vmatpush2.msra.mxu0 0.0
    %4010 = vmatprep.subr.mxu0 0.0
    %4011 = vmatpush2.msra.mxu0 0.0
    %4012 = vmatprep.subr.mxu0 0.0
    %4013 = vmatpush2.msra.mxu0 0.0
    %4014 = vmatprep.subr.mxu0 0.0
    %4015 = vmatpush2.msra.mxu0 0.0
    %4016 = vmatprep.subr.mxu0 0.0
    %4017 = vmatpush2.msra.mxu0 0.0
    %4018 = vmatprep.subr.mxu0 0.0
    %4019 = vmatpush2.msra.mxu0 0.0
    %4020 = vmatprep.subr.mxu0 0.0
    %4021 = vmatpush2.msra.mxu0 0.0
    %4022 = vmatprep.mubr.f32.mxu0 0.0
    %4023 = vmatmul.mubr.f32.gmra.mxu0 %v3947
    %v4024 = vpop.f32.mrf.mxu0
    %v4025 = vadd.f32 0.0, %v4024
    %v4026 = vpop.f32.mrf.mxu0
    %4027 = vmatprep.mubr.f32.mxu0 0.0
    %4028 = vmatmul.mubr.f32.gmra.mxu0 %v3950
    %v4029 = vpop.f32.mrf.mxu0
    %v4030 = vadd.f32 0.0, %v4029
    %v4031 = vpop.f32.mrf.mxu0
    %4032 = vmatprep.mubr.f32.mxu0 0.0
    %4033 = vmatmul.mubr.f32.gmra.mxu0 %v3953
    %v4034 = vpop.f32.mrf.mxu0
    %v4035 = vadd.f32 0.0, %v4034
    %v4036 = vpop.f32.mrf.mxu0
    %4037 = vdwg.mxu0
    %v4038 = vpack.c.bf16 %v4030, %v4025
    %v4039 = vpack.c.bf16 %v4035, %v4035
    %s4040 = scalar_lea.vmem [#allocation2], 496
    %v4041 = vld [vmem:[%s4040] sm:$0xf]
    %v4042 = vld [vmem:[%s4040 + $0x4] sm:$0xf]
    %v4043 = vld [vmem:[%s4040 + $0x8] sm:$0xf]
    %v4044 = vld [vmem:[%s4040 + $0xc] sm:$0xf]
    %v4049 = vunpack.c.l.b16 %v4041
    %v4050 = vunpack.c.l.b16 %v4042
    %v4051 = vunpack.c.l.b16 %v4043
    %v4052 = vunpack.c.l.b16 %v4044
    %v4053 = vpack.c.b16 %v4050, %v4049
    %v4054 = vpack.c.b16 %v4052, %v4051
    %v4058 = vsel %vm88, %v4038, 0
    %v4061 = vsel %vm88, %v4039, 0
    %4063 = vmatprep.subr.bf16.mxu0 0
    %4064 = vmatpush1.bf16.msra.mxu0 0
    %4065 = vmatprep.subr.bf16.mxu0 0
    %4066 = vmatpush1.bf16.msra.mxu0 0
    %4067 = vmatprep.subr.bf16.mxu0 0
    %4068 = vmatpush1.bf16.msra.mxu0 0
    %4069 = vmatprep.subr.bf16.mxu0 0
    %4070 = vmatpush1.bf16.msra.mxu0 0
    %4071 = vmatprep.subr.bf16.mxu0 0
    %4072 = vmatpush1.bf16.msra.mxu0 0
    %4073 = vmatprep.subr.bf16.mxu0 0
    %4074 = vmatpush1.bf16.msra.mxu0 0
    %4075 = vmatprep.subr.bf16.mxu0 0
    %4076 = vmatpush1.bf16.msra.mxu0 %v4054
    %4077 = vmatprep.subr.bf16.mxu0 0
    %4078 = vmatpush1.bf16.msra.mxu0 %v4053
    %4079 = vmatprep.subr.bf16.mxu0 0
    %4080 = vmatpush2.bf16.msra.mxu0 0
    %4081 = vmatprep.subr.bf16.mxu0 0
    %4082 = vmatpush2.bf16.msra.mxu0 0
    %4083 = vmatprep.subr.bf16.mxu0 0
    %4084 = vmatpush2.bf16.msra.mxu0 0
    %4085 = vmatprep.subr.bf16.mxu0 0
    %4086 = vmatpush2.bf16.msra.mxu0 0
    %4087 = vmatprep.subr.bf16.mxu0 0
    %4088 = vmatpush2.bf16.msra.mxu0 0
    %4089 = vmatprep.subr.bf16.mxu0 0
    %4090 = vmatpush2.bf16.msra.mxu0 0
    %4091 = vmatprep.subr.bf16.mxu0 0
    %4092 = vmatpush2.bf16.msra.mxu0 0
    %4093 = vmatprep.subr.bf16.mxu0 0
    %4094 = vmatpush2.bf16.msra.mxu0 0
    %4095 = vmatprep.mubr.bf16.mxu0 0
    %4096 = vmatmul.mubr.bf16.gmra.mxu0 %v4058
    %v4097 = vpop.f32.mrf.mxu0
    %v4098 = vadd.f32 0.0, %v4097
    %v4099 = vpop.f32.mrf.mxu0
    %v4100 = vpop.f32.mrf.mxu0
    %v4101 = vadd.f32 0.0, %v4100
    %v4102 = vpop.f32.mrf.mxu0
    %4103 = vmatprep.mubr.bf16.mxu0 0
    %4104 = vmatmul.mubr.bf16.gmra.mxu0 %v4061
    %v4105 = vpop.f32.mrf.mxu0
    %v4106 = vadd.f32 0.0, %v4105
    %v4107 = vpop.f32.mrf.mxu0
    %v4108 = vpop.f32.mrf.mxu0
    %v4109 = vpop.f32.mrf.mxu0
    %4110 = vdwg.mxu0
    %v4111 = vadd.f32 %v3647, %v4098
    %v4112 = vadd.f32 %v3648, %v4101
    %v4113 = vadd.f32 %v3649, %v4106
    %v4114 = vlaneseq
    %v4115 = vshrl.u32 %v4114, 7
    %v4116 = vsub.s32 0, %v4115
    %v4117 = vrot.slane %v2231, %v4116
    %v4118 = vadd.f32 %v4111, %v4117
    %v4119 = vadd.f32 %v4112, %v4117
    %v4120 = vadd.f32 %v4113, %v4117
    %v4121 = vadd.f32 %v4118, %v2227
    %v4122 = vadd.f32 %v4119, %v2228
    %v4123 = vadd.f32 %v4120, %v2229
    %v4124 = vsel %vm88, %v4121, 0.0
    %4125 = vadd.xlane.f32.xlu0 %v4124
    %v4126 = vpop.xlane.xlu0 %4125
    %v4127 = vsel %vm88, %v4122, 0.0
    %4128 = vadd.xlane.f32.xlu0 %v4127
    %v4129 = vpop.xlane.xlu0 %4128
    %v4130 = vsel %vm1946, %v4123, 0.0
    %4131 = vadd.xlane.f32.xlu0 %v4130
    %v4132 = vpop.xlane.xlu0 %4131
    %v4133 = vmul.f32 %v4126, %v1950
    %v4134 = vmul.f32 %v4129, %v1950
    %v4135 = vmul.f32 %v4132, %v1950
    %v4136 = vsub.f32 %v4121, %v4133
    %v4137 = vsub.f32 %v4122, %v4134
    %v4138 = vsub.f32 %v4123, %v4135
    %v4139 = vmul.f32 %v4136, %v4136
    %v4140 = vmul.f32 %v4137, %v4137
    %v4141 = vmul.f32 %v4138, %v4138
    %v4142 = vsel %vm88, %v4139, 0.0
    %4143 = vadd.xlane.f32.xlu0 %v4142
    %v4144 = vpop.xlane.xlu0 %4143
    %v4145 = vsel %vm88, %v4140, 0.0
    %4146 = vadd.xlane.f32.xlu0 %v4145
    %v4147 = vpop.xlane.xlu0 %4146
    %v4148 = vsel %vm1946, %v4141, 0.0
    %4149 = vadd.xlane.f32.xlu0 %v4148
    %v4150 = vpop.xlane.xlu0 %4149
    %v4151 = vmul.f32 %v4144, %v1950
    %v4152 = vmul.f32 %v4147, %v1950
    %v4153 = vmul.f32 %v4150, %v1950
    %v4154 = vadd.f32 %v4151, 1e-05
    %v4155 = vadd.f32 %v4152, 1e-05
    %v4156 = vadd.f32 %v4153, 1e-05
    %v4157 = vrsqrt.pop %v4154
    %v4158 = vrsqrt.pop %v4155
    %v4159 = vrsqrt.pop %v4156
    %v4160 = vmul.f32 %v4136, %v4157
    %v4161 = vmul.f32 %v4137, %v4158
    %v4162 = vmul.f32 %v4138, %v4159
    %v4163 = vlaneseq
    %v4164 = vshrl.u32 %v4163, 7
    %v4165 = vsub.s32 1, %v4164
    %v4166 = vrot.slane %v2231, %v4165
    %v4167 = vmul.f32 %v4160, %v4166
    %v4168 = vmul.f32 %v4161, %v4166
    %v4169 = vmul.f32 %v4162, %v4166
    %v4170 = vlaneseq
    %v4171 = vshrl.u32 %v4170, 7
    %v4172 = vsub.s32 2, %v4171
    %v4173 = vrot.slane %v2231, %v4172
    %v4174 = vadd.f32 %v4167, %v4173
    %v4175 = vadd.f32 %v4168, %v4173
    %v4176 = vadd.f32 %v4169, %v4173
    %v4177 = vpack.c.bf16 %v4175, %v4174
    %v4178 = vpack.c.bf16 %v4176, %v4176
    %v4180 = vlaneseq
    %v4181 = vshrl.u32 %v4180, 7
    %v4182 = vsub.s32 0, %v4181
    %v4183 = vrot.slane %v2233, %v4182
    %v4189 = vunpack.c.l.b16 %v2235
    %v4190 = vunpack.c.l.b16 %v2236
    %v4191 = vunpack.c.l.b16 %v2237
    %v4192 = vunpack.c.l.b16 %v2238
    %v4193 = vpack.c.b16 %v4190, %v4189
    %v4194 = vpack.c.b16 %v4192, %v4191
    %v4198 = vsel %vm88, %v4177, 0
    %v4201 = vsel %vm88, %v4178, 0
    %4203 = vmatprep.subr.bf16.mxu0 0
    %4204 = vmatpush1.bf16.msra.mxu0 0
    %4205 = vmatprep.subr.bf16.mxu0 0
    %4206 = vmatpush1.bf16.msra.mxu0 0
    %4207 = vmatprep.subr.bf16.mxu0 0
    %4208 = vmatpush1.bf16.msra.mxu0 0
    %4209 = vmatprep.subr.bf16.mxu0 0
    %4210 = vmatpush1.bf16.msra.mxu0 0
    %4211 = vmatprep.subr.bf16.mxu0 0
    %4212 = vmatpush1.bf16.msra.mxu0 0
    %4213 = vmatprep.subr.bf16.mxu0 0
    %4214 = vmatpush1.bf16.msra.mxu0 0
    %4215 = vmatprep.subr.bf16.mxu0 0
    %4216 = vmatpush1.bf16.msra.mxu0 %v4194
    %4217 = vmatprep.subr.bf16.mxu0 0
    %4218 = vmatpush1.bf16.msra.mxu0 %v4193
    %4219 = vmatprep.subr.bf16.mxu0 0
    %4220 = vmatpush2.bf16.msra.mxu0 0
    %4221 = vmatprep.subr.bf16.mxu0 0
    %4222 = vmatpush2.bf16.msra.mxu0 0
    %4223 = vmatprep.subr.bf16.mxu0 0
    %4224 = vmatpush2.bf16.msra.mxu0 0
    %4225 = vmatprep.subr.bf16.mxu0 0
    %4226 = vmatpush2.bf16.msra.mxu0 0
    %4227 = vmatprep.subr.bf16.mxu0 0
    %4228 = vmatpush2.bf16.msra.mxu0 0
    %4229 = vmatprep.subr.bf16.mxu0 0
    %4230 = vmatpush2.bf16.msra.mxu0 0
    %4231 = vmatprep.subr.bf16.mxu0 0
    %4232 = vmatpush2.bf16.msra.mxu0 0
    %4233 = vmatprep.subr.bf16.mxu0 0
    %4234 = vmatpush2.bf16.msra.mxu0 0
    %4235 = vmatprep.mubr.bf16.mxu0 0
    %4236 = vmatmul.mubr.bf16.gmra.mxu0 %v4198
    %v4237 = vpop.f32.mrf.mxu0
    %v4238 = vadd.f32 %v4183, %v4237
    %v4239 = vpop.f32.mrf.mxu0
    %v4240 = vpop.f32.mrf.mxu0
    %v4241 = vadd.f32 %v4183, %v4240
    %v4242 = vpop.f32.mrf.mxu0
    %4243 = vmatprep.mubr.bf16.mxu0 0
    %4244 = vmatmul.mubr.bf16.gmra.mxu0 %v4201
    %v4245 = vpop.f32.mrf.mxu0
    %v4246 = vadd.f32 %v4183, %v4245
    %v4247 = vpop.f32.mrf.mxu0
    %v4248 = vpop.f32.mrf.mxu0
    %v4249 = vpop.f32.mrf.mxu0
    %4250 = vdwg.mxu0
    %v4251 = vmax.f32 %v4238, 0.0
    %v4252 = vmax.f32 %v4241, 0.0
    %v4253 = vmax.f32 %v4246, 0.0
    %v4254 = vpack.c.bf16 %v4252, %v4251
    %v4255 = vpack.c.bf16 %v4253, %v4253
    %v4256 = vlaneseq
    %v4257 = vshrl.u32 %v4256, 7
    %v4258 = vsub.s32 3, %v4257
    %v4259 = vrot.slane %v2231, %v4258
    %v4276 = vunpack.c.l.b16 %v2240
    %v4277 = vunpack.c.l.b16 %v2241
    %v4278 = vunpack.c.l.b16 %v2242
    %v4279 = vunpack.c.l.b16 %v2243
    %v4280 = vunpack.c.l.b16 %v2244
    %v4281 = vunpack.c.l.b16 %v2245
    %v4282 = vunpack.c.l.b16 %v2246
    %v4283 = vunpack.c.l.b16 %v2247
    %v4284 = vunpack.c.l.b16 %v2248
    %v4285 = vunpack.c.l.b16 %v2249
    %v4286 = vunpack.c.l.b16 %v2250
    %v4287 = vunpack.c.l.b16 %v2251
    %v4288 = vunpack.c.l.b16 %v2252
    %v4289 = vunpack.c.l.b16 %v2253
    %v4290 = vunpack.c.l.b16 %v2254
    %v4291 = vunpack.c.l.b16 %v2255
    %v4292 = vpack.c.b16 %v4277, %v4276
    %v4293 = vpack.c.b16 %v4279, %v4278
    %v4294 = vpack.c.b16 %v4281, %v4280
    %v4295 = vpack.c.b16 %v4283, %v4282
    %v4296 = vpack.c.b16 %v4285, %v4284
    %v4297 = vpack.c.b16 %v4287, %v4286
    %v4298 = vpack.c.b16 %v4289, %v4288
    %v4299 = vpack.c.b16 %v4291, %v4290
    %4308 = vmatprep.subr.bf16.mxu0 0
    %4309 = vmatpush1.bf16.msra.mxu0 %v4299
    %4310 = vmatprep.subr.bf16.mxu0 0
    %4311 = vmatpush1.bf16.msra.mxu0 %v4298
    %4312 = vmatprep.subr.bf16.mxu0 0
    %4313 = vmatpush1.bf16.msra.mxu0 %v4297
    %4314 = vmatprep.subr.bf16.mxu0 0
    %4315 = vmatpush1.bf16.msra.mxu0 %v4296
    %4316 = vmatprep.subr.bf16.mxu0 0
    %4317 = vmatpush1.bf16.msra.mxu0 %v4295
    %4318 = vmatprep.subr.bf16.mxu0 0
    %4319 = vmatpush1.bf16.msra.mxu0 %v4294
    %4320 = vmatprep.subr.bf16.mxu0 0
    %4321 = vmatpush1.bf16.msra.mxu0 %v4293
    %4322 = vmatprep.subr.bf16.mxu0 0
    %4323 = vmatpush1.bf16.msra.mxu0 %v4292
    %4324 = vmatprep.subr.bf16.mxu0 0
    %4325 = vmatpush2.bf16.msra.mxu0 0
    %4326 = vmatprep.subr.bf16.mxu0 0
    %4327 = vmatpush2.bf16.msra.mxu0 0
    %4328 = vmatprep.subr.bf16.mxu0 0
    %4329 = vmatpush2.bf16.msra.mxu0 0
    %4330 = vmatprep.subr.bf16.mxu0 0
    %4331 = vmatpush2.bf16.msra.mxu0 0
    %4332 = vmatprep.subr.bf16.mxu0 0
    %4333 = vmatpush2.bf16.msra.mxu0 0
    %4334 = vmatprep.subr.bf16.mxu0 0
    %4335 = vmatpush2.bf16.msra.mxu0 0
    %4336 = vmatprep.subr.bf16.mxu0 0
    %4337 = vmatpush2.bf16.msra.mxu0 0
    %4338 = vmatprep.subr.bf16.mxu0 0
    %4339 = vmatpush2.bf16.msra.mxu0 0
    %4340 = vmatprep.mubr.bf16.mxu0 0
    %4341 = vmatmul.mubr.bf16.gmra.mxu0 %v4254
    %v4342 = vpop.f32.mrf.mxu0
    %v4343 = vadd.f32 %v4259, %v4342
    %v4344 = vpop.f32.mrf.mxu0
    %v4345 = vpop.f32.mrf.mxu0
    %v4346 = vadd.f32 %v4259, %v4345
    %v4347 = vpop.f32.mrf.mxu0
    %4348 = vmatprep.mubr.bf16.mxu0 0
    %4349 = vmatmul.mubr.bf16.gmra.mxu0 %v4255
    %v4350 = vpop.f32.mrf.mxu0
    %v4351 = vadd.f32 %v4259, %v4350
    %v4352 = vpop.f32.mrf.mxu0
    %v4353 = vpop.f32.mrf.mxu0
    %v4354 = vpop.f32.mrf.mxu0
    %4355 = vdwg.mxu0
    %v4356 = vadd.f32 %v4343, %v4174
    %v4357 = vadd.f32 %v4346, %v4175
    %v4358 = vadd.f32 %v4351, %v4176
    %v4359 = vsel %vm88, %v4356, 0.0
    %4360 = vadd.xlane.f32.xlu0 %v4359
    %v4361 = vpop.xlane.xlu0 %4360
    %v4362 = vsel %vm88, %v4357, 0.0
    %4363 = vadd.xlane.f32.xlu0 %v4362
    %v4364 = vpop.xlane.xlu0 %4363
    %v4365 = vsel %vm1946, %v4358, 0.0
    %4366 = vadd.xlane.f32.xlu0 %v4365
    %v4367 = vpop.xlane.xlu0 %4366
    %v4368 = vmul.f32 %v4361, %v1950
    %v4369 = vmul.f32 %v4364, %v1950
    %v4370 = vmul.f32 %v4367, %v1950
    %v4371 = vsub.f32 %v4356, %v4368
    %v4372 = vsub.f32 %v4357, %v4369
    %v4373 = vsub.f32 %v4358, %v4370
    %v4374 = vmul.f32 %v4371, %v4371
    %v4375 = vmul.f32 %v4372, %v4372
    %v4376 = vmul.f32 %v4373, %v4373
    %v4377 = vsel %vm88, %v4374, 0.0
    %4378 = vadd.xlane.f32.xlu0 %v4377
    %v4379 = vpop.xlane.xlu0 %4378
    %v4380 = vsel %vm88, %v4375, 0.0
    %4381 = vadd.xlane.f32.xlu0 %v4380
    %v4382 = vpop.xlane.xlu0 %4381
    %v4383 = vsel %vm1946, %v4376, 0.0
    %4384 = vadd.xlane.f32.xlu0 %v4383
    %v4385 = vpop.xlane.xlu0 %4384
    %v4386 = vmul.f32 %v4379, %v1950
    %v4387 = vmul.f32 %v4382, %v1950
    %v4388 = vmul.f32 %v4385, %v1950
    %v4389 = vadd.f32 %v4386, 1e-05
    %v4390 = vadd.f32 %v4387, 1e-05
    %v4391 = vadd.f32 %v4388, 1e-05
    %v4392 = vrsqrt.pop %v4389
    %v4393 = vrsqrt.pop %v4390
    %v4394 = vrsqrt.pop %v4391
    %v4395 = vmul.f32 %v4371, %v4392
    %v4396 = vmul.f32 %v4372, %v4393
    %v4397 = vmul.f32 %v4373, %v4394
    %v4398 = vlaneseq
    %v4399 = vshrl.u32 %v4398, 7
    %v4400 = vsub.s32 4, %v4399
    %v4401 = vrot.slane %v2231, %v4400
    %v4402 = vmul.f32 %v4395, %v4401
    %v4403 = vmul.f32 %v4396, %v4401
    %v4404 = vmul.f32 %v4397, %v4401
    %v4405 = vlaneseq
    %v4406 = vshrl.u32 %v4405, 7
    %v4407 = vsub.s32 5, %v4406
    %v4408 = vrot.slane %v2231, %v4407
    %v4409 = vadd.f32 %v4402, %v4408
    %v4410 = vadd.f32 %v4403, %v4408
    %v4411 = vadd.f32 %v4404, %v4408
    %4412 = vst.msk [vmem:[#allocation5] sm:$0xff] %vm88, %v4409
    %4413 = vst.msk [vmem:[#allocation5 + $0x8] sm:$0xff] %vm88, %v4410
    %4414 = vst.msk [vmem:[#allocation5 + $0x10] sm:$0x3] %vm1946, %v4411
    // Predicated region
    $region34: #{tpu_custom_call.1} parent=1 // pred_check
      _
    $region35: #{tpu_custom_call.1} parent=1 // pred_check_branch
      %4416 = sbr.rel (0) target = $region37
    $region36: #{tpu_custom_call.1} parent=1 // pred_region
      %s4418 = ssub.s32 384, 384
      %4419 = vsyncadd [#allocation4], %s4418
      %s4420 = sshll.u32 [#allocation5], 4
      %s4421 = int_to_ptr.vmem [resolvable:$true] %s4420
      %4426 = dma.vmem_to_hbm [thread:$0]  %s4421, 384, %s7, [#allocation4], 128, 128, 8
    $region37: #{tpu_custom_call.1} parent=1 // pred_fallthru
      _
    // Predicated region
    $region38: #{tpu_custom_call.1} parent=1 // pred_check
      _
    $region39: #{tpu_custom_call.1} parent=1 // pred_check_branch
      %4428 = sbr.rel (0) target = $region41
    $region40: #{tpu_custom_call.1} parent=1 // pred_region
      %4429 = dma.done [#allocation4], 384
    $region41: #{tpu_custom_call.1} parent=1 // pred_fallthru
      _
    %4430 = vsyncpa [#allocation3], 1
    %4431 = vsyncpa [#allocation4], 1

</llo_original>
